<compile_context>
chip_gen: v7x
topology: tpu7x:2x2x1
jax: 0.10.0
libtpu: 0.0.40
codegen_flags: <defaults>
</compile_context>

<pallas_src>
import functools

import jax
import jax.numpy as jnp
from jax.experimental import pallas as pl
from jax.experimental.pallas import tpu as pltpu


def _hw_defaults():
    """Per-generation (TM_MAX, vmem_limit_bytes)."""
    kind = ""
    try:
        kind = jax.devices()[0].device_kind.lower()
    except Exception:
        pass
    if "v7" in kind or "7x" in kind:
        return 512, 48 * 1024 * 1024          # 64 MiB VMEM/TC: stay conservative
    if "v5 lite" in kind or "v5e" in kind or "v6" in kind:
        return 1024, 96 * 1024 * 1024         # 128 MiB VMEM: larger tiles, deeper pipeline
    return 512, 32 * 1024 * 1024              # unknown / older: safe defaults


TM_MAX, VMEM_LIMIT = _hw_defaults()


def _pair(v):
    return (v, v) if isinstance(v, int) else tuple(v)


# ---------------------------------------------------------------------------
# Pallas kernels
# ---------------------------------------------------------------------------

def _matmul_kernel(x_ref, w_ref, s_ref, t_ref, o_ref, *, relu):
    """y = relu?( (x @ w) * scale + shift ); bf16 MXU operands, f32 accum/epilogue."""
    y = jnp.dot(x_ref[...], w_ref[...], preferred_element_type=jnp.float32)
    y = y * s_ref[...] + t_ref[...]
    if relu:
        y = jnp.maximum(y, 0.0)
    o_ref[...] = y.astype(o_ref.dtype)


def _resblock_kernel(cols_ref, w1_ref, s1_ref, t1_ref,
                     w2_ref, s2_ref, t2_ref, o_ref, *, c, out_relu):
    """Fused ResBlock: ReLU -> 3x3 conv(BN) -> ReLU -> 1x1 conv(BN) -> +res [-> ReLU].

    The residual is the centre tap of the im2col columns (no separate stream)."""
    cols = cols_ref[...]                                   # (tm, 9C) bf16, pre-ReLU x
    res = cols[:, 4 * c:5 * c].astype(jnp.float32)         # centre tap == x
    x = jnp.maximum(cols, 0)                               # leading ReLU
    h = jnp.dot(x, w1_ref[...], preferred_element_type=jnp.float32)
    h = jnp.maximum(h * s1_ref[...] + t1_ref[...], 0.0)    # BN + ReLU (f32)
    y = jnp.dot(h.astype(jnp.bfloat16), w2_ref[...],
                preferred_element_type=jnp.float32)
    y = y * s2_ref[...] + t2_ref[...] + res                # BN + residual (f32)
    if out_relu:
        y = jnp.maximum(y, 0.0)
    o_ref[...] = y.astype(o_ref.dtype)


def _preq_vq_kernel(x_ref, w_ref, b_ref, e_ref, q_ref, loss_ref, *, m_true, tm):
    """Fused 1x1 pre-quantize conv + VQ nearest-neighbour + per-tile MSE partial.

    bf16 MXU operands for the two big dots; norms / argmin / loss stay f32."""
    f = jnp.dot(x_ref[...], w_ref[...],
                preferred_element_type=jnp.float32) + b_ref[...]     # (tm, D) f32
    e = e_ref[...]                                                    # (K, D) f32
    k = e.shape[0]
    fe = jax.lax.dot_general(f.astype(jnp.bfloat16), e.astype(jnp.bfloat16),
                             (((1,), (1,)), ((), ())),
                             preferred_element_type=jnp.float32)      # (tm, K)
    dist = (jnp.sum(f * f, axis=1, keepdims=True)
            + jnp.sum(e * e, axis=1)[None, :] - 2.0 * fe)
    iota_k = jax.lax.broadcasted_iota(jnp.int32, dist.shape, 1)
    dmin = jnp.min(dist, axis=1, keepdims=True)
    idx = jnp.min(jnp.where(dist == dmin, iota_k, k), axis=1, keepdims=True)
    onehot = (iota_k == idx).astype(jnp.float32)                      # scatter_(1, idx, 1)
    q = jnp.dot(onehot, e, preferred_element_type=jnp.float32)        # exact codebook rows
    q_ref[...] = q.astype(q_ref.dtype)        # straight-through: forward value = quantize
    # Per-tile partial loss; mask rows beyond the true M (partial last tile).
    row = (jax.lax.broadcasted_iota(jnp.int32, (f.shape[0], 1), 0)
           + pl.program_id(0) * tm)
    diff = jnp.where(row < m_true, q - f, 0.0)
    loss_ref[...] = jnp.sum(diff * diff).reshape(1, 1, 1)


# ---------------------------------------------------------------------------
# Wrappers: fused matmul, im2col, conv / conv-transpose, resblock, VQ
# ---------------------------------------------------------------------------

def fused_matmul(x, w, scale, shift, *, relu, out_dtype=jnp.bfloat16):
    """relu?( (x @ w) * scale + shift ), tiled over M ("parallel" axis)."""
    M, K = x.shape
    N = w.shape[1]
    tm = M if M <= TM_MAX else TM_MAX
    # NOTE: constant-index weight/scale blocks are only re-DMA'd when their block
    # index changes; at these weight sizes (<=128 KiB) single- vs double-buffering
    # them is immaterial, so pipeline_mode is left at the default.
    return pl.pallas_call(
        functools.partial(_matmul_kernel, relu=relu),
        out_shape=jax.ShapeDtypeStruct((M, N), out_dtype),
        grid=(pl.cdiv(M, tm),),
        in_specs=[pl.BlockSpec((tm, K), lambda i: (i, 0)),
                  pl.BlockSpec((K, N), lambda i: (0, 0)),
                  pl.BlockSpec((1, N), lambda i: (0, 0)),
                  pl.BlockSpec((1, N), lambda i: (0, 0))],
        out_specs=pl.BlockSpec((tm, N), lambda i: (i, 0)),
        compiler_params=pltpu.CompilerParams(
            dimension_semantics=("parallel",),
            vmem_limit_bytes=VMEM_LIMIT),
    )(x, w, scale, shift)


def _im2col(x, kh, kw, sh, sw, ph, pw):
    """NHWC im2col -> (B*ho*wo, kh*kw*C); K index = (u*kw+v)*C + c.  Keeps x dtype."""
    B, H, W, C = x.shape
    xp = jnp.pad(x, ((0, 0), (ph, ph), (pw, pw), (0, 0)))
    ho = (H + 2 * ph - kh) // sh + 1
    wo = (W + 2 * pw - kw) // sw + 1
    taps = []
    for u in range(kh):
        for v in range(kw):
            taps.append(xp[:, u:u + sh * ho:sh, v:v + sw * wo:sw, :])
    cols = jnp.stack(taps, axis=3).reshape(B * ho * wo, kh * kw * C)
    return cols, ho, wo


def conv2d(x, pk, ksize, stride, pad, *, relu=False, out_dtype=jnp.bfloat16):
    """NHWC Conv2d (+folded BN) (+ReLU) via im2col + fused Pallas matmul."""
    kh, kw = _pair(ksize)
    sh, sw = _pair(stride)
    ph, pw = _pair(pad)
    B, H, W, C = x.shape
    if (kh, kw, sh, sw, ph, pw) == (1, 1, 1, 1, 0, 0):     # 1x1 conv: plain matmul
        cols, ho, wo = x.reshape(B * H * W, C), H, W
    else:
        cols, ho, wo = _im2col(x, kh, kw, sh, sw, ph, pw)
    Cout = pk['w'].shape[1]
    y = fused_matmul(cols, pk['w'], pk['s'], pk['t'], relu=relu, out_dtype=out_dtype)
    return y.reshape(B, ho, wo, Cout)


def resblock(x, pk, *, out_relu):
    """Single-kernel ResBlock; out = x + block(x), optional trailing ReLU fused."""
    B, H, W, C = x.shape
    M = B * H * W
    C4 = pk['w1'].shape[1]
    K1 = 9 * C
    cols, _, _ = _im2col(x, 3, 3, 1, 1, 1, 1)               # bf16 (M, 9C)
    tm = M if M <= TM_MAX else TM_MAX
    out = pl.pallas_call(
        functools.partial(_resblock_kernel, c=C, out_relu=out_relu),
        out_shape=jax.ShapeDtypeStruct((M, C), jnp.bfloat16),
        grid=(pl.cdiv(M, tm),),
        in_specs=[pl.BlockSpec((tm, K1), lambda i: (i, 0)),
                  pl.BlockSpec((K1, C4), lambda i: (0, 0)),
                  pl.BlockSpec((1, C4), lambda i: (0, 0)),
                  pl.BlockSpec((1, C4), lambda i: (0, 0)),
                  pl.BlockSpec((C4, C), lambda i: (0, 0)),
                  pl.BlockSpec((1, C), lambda i: (0, 0)),
                  pl.BlockSpec((1, C), lambda i: (0, 0))],
        out_specs=pl.BlockSpec((tm, C), lambda i: (i, 0)),
        compiler_params=pltpu.CompilerParams(
            dimension_semantics=("parallel",),
            vmem_limit_bytes=VMEM_LIMIT),
    )(cols, pk['w1'], pk['s1'], pk['t1'], pk['w2'], pk['s2'], pk['t2'])
    return out.reshape(B, H, W, C)


def conv_transpose2d_s2(x, pk, *, relu=False):
    """ConvTranspose2d(Cin, Cout, 4, stride=2, pad=1) (+BN)(+ReLU), NHWC, sub-pixel."""
    B, H, W, _ = x.shape
    cols, _, _ = _im2col(x, 3, 3, 1, 1, 1, 1)   # real data only, no zero dilation
    y = fused_matmul(cols, pk['w'], pk['s'], pk['t'], relu=relu,
                     out_dtype=jnp.bfloat16)
    Cout = pk['w'].shape[1] // 4
    y = y.reshape(B, H, W, 2, 2, Cout).transpose(0, 1, 3, 2, 4, 5)   # pixel shuffle
    return y.reshape(B, 2 * H, 2 * W, Cout)


def preq_vq(x, pk, emb):
    """Fused pre-quantize 1x1 conv + vector quantization; NHWC in, bf16 out + loss."""
    B, H, W, Cin = x.shape
    K_codes, D = emb.shape
    M = B * H * W
    flat = x.reshape(M, Cin)                                # bf16
    tm = M if M <= TM_MAX else TM_MAX                       # dist/onehot are (tm, K) f32
    nt = pl.cdiv(M, tm)
    q, partial = pl.pallas_call(
        functools.partial(_preq_vq_kernel, m_true=M, tm=tm),
        out_shape=(jax.ShapeDtypeStruct((M, D), jnp.bfloat16),
                   jax.ShapeDtypeStruct((nt, 1, 1), jnp.float32)),
        grid=(nt,),
        in_specs=[pl.BlockSpec((tm, Cin), lambda i: (i, 0)),
                  pl.BlockSpec((Cin, D), lambda i: (0, 0)),
                  pl.BlockSpec((1, D), lambda i: (0, 0)),
                  pl.BlockSpec((K_codes, D), lambda i: (0, 0))],
        out_specs=(pl.BlockSpec((tm, D), lambda i: (i, 0)),
                   pl.BlockSpec((1, 1, 1), lambda i: (i, 0, 0))),
        compiler_params=pltpu.CompilerParams(
            dimension_semantics=("parallel",),
            vmem_limit_bytes=VMEM_LIMIT),
    )(flat, pk['w'], pk['b'], emb)
    loss = (jnp.sum(partial) / float(M * D)).reshape(1)
    return q.reshape(B, H, W, D), loss


# ---------------------------------------------------------------------------
# One-time weight packing (hoisted out of the jitted step)
# ---------------------------------------------------------------------------

def _fold_bn(bias, bn, cout):
    if bn is None:
        return jnp.ones((cout,), jnp.float32), bias.astype(jnp.float32)
    s = bn['gamma'] / jnp.sqrt(bn['var'] + 1e-5)    # eval-mode running statistics
    return s, (bias - bn['mean']) * s + bn['beta']


def pack_conv(p, bn=None):
    w, b = p['w'], p['b']                            # (Cout, Cin, kh, kw)
    cout, cin, kh, kw = w.shape
    wm = w.transpose(2, 3, 1, 0).reshape(kh * kw * cin, cout).astype(jnp.bfloat16)
    s, t = _fold_bn(b, bn, cout)
    return {'w': wm,
            's': s.reshape(1, cout).astype(jnp.float32),
            't': t.reshape(1, cout).astype(jnp.float32)}


def pack_res(p):
    c1 = pack_conv(p['c1'], p['bn1'])
    c2 = pack_conv(p['c2'], p['bn2'])
    return {'w1': c1['w'], 's1': c1['s'], 't1': c1['t'],
            'w2': c2['w'], 's2': c2['s'], 't2': c2['t']}


def _subpixel_weight(w):
    """ConvTranspose2d(k=4, s=2, p=1) weight -> (9*Cin, 4*Cout) sub-pixel matrix.

    Index arithmetic (ky = 3-2u+r, kx = 3-2v+c) verified against the PyTorch
    ConvTranspose2d definition y = 2i - 1 + ky: output pixel (2h+r, 2w+c) reads
    input (h+u-1, w+v-1) with kernel tap (ky, kx)."""
    Cin, Cout = w.shape[0], w.shape[1]
    wm = jnp.zeros((3, 3, Cin, 2, 2, Cout), w.dtype)
    for r in range(2):
        for c in range(2):
            for u in range(r, r + 2):
                for v in range(c, c + 2):
                    ky = 3 - 2 * u + r
                    kx = 3 - 2 * v + c
                    wm = wm.at[u, v, :, r, c, :].set(w[:, :, ky, kx])
    return wm.reshape(9 * Cin, 4 * Cout)


def pack_convT_s2(p, bn=None):
    w, b = p['w'], p['b']                            # (Cin, Cout, 4, 4)
    cout = w.shape[1]
    wm = _subpixel_weight(w).astype(jnp.bfloat16)
    s, t = _fold_bn(b, bn, cout)
    return {'w': wm,
            's': jnp.tile(s, 4).reshape(1, 4 * cout).astype(jnp.float32),
            't': jnp.tile(t, 4).reshape(1, 4 * cout).astype(jnp.float32)}


def pack_convT_s1(p, n_pad_to=8):
    """Stride-1 ConvTranspose2d == Conv2d with flipped kernel; the single output
    channel is zero-padded to 8 columns for a friendlier MXU/store shape (the
    forward slices back to the true width once, at the network output)."""
    w, b = p['w'], p['b']                            # (Cin, Cout, kh, kw)
    w_eq = jnp.flip(w, axis=(2, 3)).transpose(1, 0, 2, 3)
    pk = pack_conv({'w': w_eq, 'b': b})
    n = pk['w'].shape[1]
    if n < n_pad_to:
        pad = n_pad_to - n
        pk = {'w': jnp.pad(pk['w'], ((0, 0), (0, pad))),
              's': jnp.pad(pk['s'], ((0, 0), (0, pad))),
              't': jnp.pad(pk['t'], ((0, 0), (0, pad)))}
    return pk


def pack_1x1(p):
    w, b = p['w'], p['b']                            # (D, Cin, 1, 1)
    d, cin = w.shape[0], w.shape[1]
    return {'w': w.reshape(d, cin).T.astype(jnp.bfloat16),
            'b': b.astype(jnp.float32).reshape(1, d)}


def pack_encoder(p, stride):
    if stride == 4:
        out = {'c1': pack_conv(p['c1'], p['bn1']),
               'c2': pack_conv(p['c2'], p['bn2']),
               'c3': pack_conv(p['c3'])}
    else:
        out = {'c1': pack_conv(p['c1'], p['bn1']),
               'c2': pack_conv(p['c2'])}
    out['r1'] = pack_res(p['r1'])
    out['r2'] = pack_res(p['r2'])
    return out


def pack_decoder(p, stride):
    out = {'c1': pack_conv(p['c1']),
           'r1': pack_res(p['r1']),
           'r2': pack_res(p['r2'])}
    if stride == 4:
        out['d1'] = pack_convT_s2(p['d1'], p['bn1'])
        out['d2'] = pack_convT_s2(p['d2'], p['bn2'])
    else:
        out['d1'] = pack_convT_s2(p['d1'])
    return out


def pack_params(params):
    return {
        'filter_e': pack_conv(params['filter_e']['c'], params['filter_e']['bn']),
        'enc_b': pack_encoder(params['encoder_b'], 4),
        'enc_t': pack_encoder(params['encoder_t'], 2),
        'pre_q_t': pack_1x1(params['pre_q_t']),
        'emb_t': params['emb_t'].astype(jnp.float32),
        'dec_t': pack_decoder(params['decoder_t'], 2),
        'pre_q_b': pack_1x1(params['pre_q_b']),
        'emb_b': params['emb_b'].astype(jnp.float32),
        'up_t': pack_convT_s2(params['upsample_t']),
        'dec': pack_decoder(params['decoder'], 4),
        'filter_d': pack_convT_s1(params['filter_d']),
        # params['decoder_b'] is defined but unused in the PyTorch forward.
    }


# ---------------------------------------------------------------------------
# Module forwards (NHWC, bf16 activations)
# ---------------------------------------------------------------------------

def resblock_pair(p1, p2, x):
    x = resblock(x, p1, out_relu=False)
    return resblock(x, p2, out_relu=True)            # trailing nn.ReLU fused here


def encoder_fwd(p, x, stride):
    if stride == 4:
        x = jnp.transpose(x, (0, 3, 2, 1))           # Transpose module (NHWC form)
        x = conv2d(x, p['c1'], 4, 2, 1, relu=True)
        x = conv2d(x, p['c2'], 4, 2, 1, relu=True)
        x = conv2d(x, p['c3'], 3, 1, 1)
    else:
        x = conv2d(x, p['c1'], 4, 2, 1, relu=True)
        x = conv2d(x, p['c2'], 3, 1, 1)
    return resblock_pair(p['r1'], p['r2'], x)


def decoder_fwd(p, x, stride):
    x = conv2d(x, p['c1'], 3, 1, 1)
    x = resblock_pair(p['r1'], p['r2'], x)           # ReLU before ConvTranspose fused
    if stride == 4:
        x = conv_transpose2d_s2(x, p['d1'], relu=True)
        x = conv_transpose2d_s2(x, p['d2'], relu=True)
        x = jnp.transpose(x, (0, 3, 2, 1))           # Transpose module (NHWC form)
    else:
        x = conv_transpose2d_s2(x, p['d1'])
    return x


def vqvae2_forward(pp, x):
    xh = jnp.transpose(x, (0, 2, 3, 1)).astype(jnp.bfloat16)   # NCHW -> NHWC, once
    fe_k = pp['filter_e']['w'].shape[0] // xh.shape[-1]         # = f_dim (Cin == 1)
    x_f = conv2d(xh, pp['filter_e'], (fe_k, 1), 1, 0, relu=True)
    z_e_b = encoder_fwd(pp['enc_b'], x_f, 4)
    z_e_t = encoder_fwd(pp['enc_t'], z_e_b, 2)
    z_q_t, latent_loss_t = preq_vq(z_e_t, pp['pre_q_t'], pp['emb_t'])
    z_d_t = decoder_fwd(pp['dec_t'], z_q_t, 2)
    z_cat = jnp.concatenate([z_d_t, z_e_b], axis=-1)
    z_q_b, latent_loss_b = preq_vq(z_cat, pp['pre_q_b'], pp['emb_b'])
    z_q_x = conv_transpose2d_s2(z_q_t, pp['up_t'])
    z_q_x = jnp.concatenate([z_q_x, z_q_b], axis=-1)
    x_b = decoder_fwd(pp['dec'], z_q_x, 4)
    x_c = jnp.concatenate([x_f, x_b], axis=-1)
    fd_k = pp['filter_d']['w'].shape[0] // x_c.shape[-1]        # = f_dim
    x_tilde = conv2d(x_c, pp['filter_d'], (fd_k, 1), 1, (fd_k - 1, 0),
                     relu=False, out_dtype=jnp.float32)
    x_tilde = x_tilde[..., :1]                       # filter_d true out_channels == 1
    x_tilde = jnp.transpose(x_tilde, (0, 3, 1, 2))   # NHWC -> NCHW, once
    return x_tilde, latent_loss_t + latent_loss_b


# ---------------------------------------------------------------------------
# Deterministic parameter initialization (shapes follow the PyTorch __init__)
# ---------------------------------------------------------------------------

class KeyGen:
    def __init__(self, key):
        self.key = key

    def __call__(self):
        self.key, k = jax.random.split(self.key)
        return k


def init_conv(kg, cout, cin, kh, kw):
    bound = 1.0 / (cin * kh * kw) ** 0.5
    return {'w': jax.random.uniform(kg(), (cout, cin, kh, kw), jnp.float32,
                                    -bound, bound),
            'b': jax.random.uniform(kg(), (cout,), jnp.float32, -bound, bound)}


def init_convT(kg, cin, cout, kh, kw):
    bound = 1.0 / (cout * kh * kw) ** 0.5
    return {'w': jax.random.uniform(kg(), (cin, cout, kh, kw), jnp.float32,
                                    -bound, bound),
            'b': jax.random.uniform(kg(), (cout,), jnp.float32, -bound, bound)}


def init_bn(kg, c):
    return {'gamma': 1.0 + 0.1 * jax.random.normal(kg(), (c,), jnp.float32),
            'beta': 0.1 * jax.random.normal(kg(), (c,), jnp.float32),
            'mean': jnp.zeros((c,), jnp.float32),
            'var': jnp.ones((c,), jnp.float32)}


def init_resblock(kg, dim):
    return {'c1': init_conv(kg, dim // 4, dim, 3, 3), 'bn1': init_bn(kg, dim // 4),
            'c2': init_conv(kg, dim, dim // 4, 1, 1), 'bn2': init_bn(kg, dim)}


def init_encoder(kg, in_dim, dim, stride):
    p = {}
    if stride == 4:
        p['c1'] = init_conv(kg, dim // 2, in_dim, 4, 4)
        p['bn1'] = init_bn(kg, dim // 2)
        p['c2'] = init_conv(kg, dim, dim // 2, 4, 4)
        p['bn2'] = init_bn(kg, dim)
        p['c3'] = init_conv(kg, dim, dim, 3, 3)
    else:
        p['c1'] = init_conv(kg, dim // 2, in_dim, 4, 4)
        p['bn1'] = init_bn(kg, dim // 2)
        p['c2'] = init_conv(kg, dim, dim // 2, 3, 3)
    p['r1'] = init_resblock(kg, dim)
    p['r2'] = init_resblock(kg, dim)
    return p


def init_decoder(kg, in_dim, out_dim, dim, stride):
    p = {'c1': init_conv(kg, dim, in_dim, 3, 3),
         'r1': init_resblock(kg, dim),
         'r2': init_resblock(kg, dim)}
    if stride == 4:
        p['d1'] = init_convT(kg, dim, dim // 2, 4, 4)
        p['bn1'] = init_bn(kg, dim // 2)
        p['d2'] = init_convT(kg, dim // 2, out_dim, 4, 4)
        p['bn2'] = init_bn(kg, out_dim)
    else:
        p['d1'] = init_convT(kg, dim, out_dim, 4, 4)
    return p


def init_vqvae2(key, f_dim, dim, K, D):
    kg = KeyGen(key)
    return {
        'filter_e': {'c': init_conv(kg, dim // 2, 1, f_dim, 1),
                     'bn': init_bn(kg, dim // 2)},
        'encoder_b': init_encoder(kg, 1, dim, 4),
        'encoder_t': init_encoder(kg, dim, dim, 2),
        'pre_q_t': init_conv(kg, D, dim, 1, 1),
        'emb_t': jax.random.normal(kg(), (K, D), jnp.float32),
        'decoder_t': init_decoder(kg, D, D, dim, 2),
        'pre_q_b': init_conv(kg, D, D + dim, 1, 1),
        'emb_b': jax.random.normal(kg(), (K, D), jnp.float32),
        'upsample_t': init_convT(kg, D, D, 4, 4),
        'decoder': init_decoder(kg, D + D, 1, dim, 4),
        'decoder_b': init_decoder(kg, D, 1, dim, 4),   # defined but unused (as in PyTorch)
        'filter_d': init_convT(kg, dim, 1, f_dim, 1),
    }


# ---------------------------------------------------------------------------

if __name__ == "__main__":
    f_dim, dim, K, D = 8, 16, 16, 8
    B, W = 2, 16

    key = jax.random.PRNGKey(0)
    pkey, xkey = jax.random.split(key)
    params = init_vqvae2(pkey, f_dim, dim, K, D)
    packed = pack_params(params)        # one-time weight packing, hoisted out of the step
    # x is a (B, 1, f_dim, W) "spectrogram" so Filterencoder collapses the
    # frequency axis to 1 (required for the subsequent Transpose + Conv2d(1, ...)).
    x = jax.random.normal(xkey, (B, 1, f_dim, W), jnp.float32)

    fwd = jax.jit(vqvae2_forward)
    x_tilde, latent_loss = jax.block_until_ready(fwd(packed, x))

    assert x_tilde.shape == (B, 1, f_dim, W), x_tilde.shape
    assert x_tilde.dtype == jnp.float32, x_tilde.dtype
    assert latent_loss.shape == (1,), latent_loss.shape
    assert jnp.all(jnp.isfinite(x_tilde)) and jnp.all(jnp.isfinite(latent_loss))
    print("KERNEL_OK")
</pallas_src>

<mosaic_0001>
module attributes {stable_mosaic.version = 11 : i64} {
  func.func @_matmul_kernel(%arg0: i32, %arg1: memref<32x8xbf16, #tpu.memory_space<vmem>>, %arg2: memref<8x8xbf16, #tpu.memory_space<vmem>>, %arg3: memref<1x8xf32, #tpu.memory_space<vmem>>, %arg4: memref<1x8xf32, #tpu.memory_space<vmem>>, %arg5: memref<32x8xbf16, #tpu.memory_space<vmem>>) attributes {dimension_semantics = [#tpu.dimension_semantics<parallel>], iteration_bounds = array<i64: 1>, scalar_prefetch = 0 : i64, scratch_operands = 0 : i64, tpu.core_type = #tpu.core_type<tc>, window_params = [{transform_indices = @transform_0, window_bounds = array<i64: 32, 8>}, {pipeline_mode = #tpu.pipeline_mode<synchronous>, transform_indices = @transform_1, window_bounds = array<i64: 8, 8>}, {pipeline_mode = #tpu.pipeline_mode<synchronous>, transform_indices = @transform_2, window_bounds = array<i64: 1, 8>}, {pipeline_mode = #tpu.pipeline_mode<synchronous>, transform_indices = @transform_3, window_bounds = array<i64: 1, 8>}, {transform_indices = @transform_4, window_bounds = array<i64: 32, 8>}]} {
    %c0 = arith.constant 0 : index
    %c0_0 = arith.constant 0 : index
    %0 = vector.load %arg1[%c0, %c0_0] : memref<32x8xbf16, #tpu.memory_space<vmem>>, vector<32x8xbf16>
    %c0_1 = arith.constant 0 : index
    %c0_2 = arith.constant 0 : index
    %1 = vector.load %arg2[%c0_1, %c0_2] : memref<8x8xbf16, #tpu.memory_space<vmem>>, vector<8x8xbf16>
    %cst = arith.constant dense<0.000000e+00> : vector<32x8xf32>
    %2 = tpu.matmul %0, %1, %cst {dimension_numbers = #tpu.dot_dimension_numbers<[1], [0], [0], [1], [0, 0, 1, 1], [], []>} : vector<32x8xbf16>, vector<8x8xbf16>, vector<32x8xf32> -> vector<32x8xf32>
    %c0_3 = arith.constant 0 : index
    %c0_4 = arith.constant 0 : index
    %3 = vector.load %arg3[%c0_3, %c0_4] : memref<1x8xf32, #tpu.memory_space<vmem>>, vector<1x8xf32>
    %4 = vector.broadcast %3 : vector<1x8xf32> to vector<32x8xf32>
    %5 = arith.mulf %2, %4 : vector<32x8xf32>
    %c0_5 = arith.constant 0 : index
    %c0_6 = arith.constant 0 : index
    %6 = vector.load %arg4[%c0_5, %c0_6] : memref<1x8xf32, #tpu.memory_space<vmem>>, vector<1x8xf32>
    %7 = vector.broadcast %6 : vector<1x8xf32> to vector<32x8xf32>
    %8 = arith.addf %5, %7 : vector<32x8xf32>
    %cst_7 = arith.constant 0.000000e+00 : f32
    %9 = vector.broadcast %cst_7 : f32 to vector<32x8xf32>
    %10 = arith.maximumf %8, %9 : vector<32x8xf32>
    %11 = arith.truncf %10 : vector<32x8xf32> to vector<32x8xbf16>
    %c0_8 = arith.constant 0 : index
    %c0_9 = arith.constant 0 : index
    %12 = vector.load %arg5[%c0_8, %c0_9] : memref<32x8xbf16, #tpu.memory_space<vmem>>, vector<32x8xbf16>
    tpu.vector_store %arg5[%c0_8, %c0_9], %11 {strides = array<i32>} : memref<32x8xbf16, #tpu.memory_space<vmem>>, vector<32x8xbf16>,
    return
  }
  func.func @transform_0(%arg0: i32) -> (i32, i32) {
    %c0_i32 = arith.constant 0 : i32
    %c0_i32_0 = arith.constant 0 : i32
    return %arg0, %c0_i32 : i32, i32
  }
  func.func @transform_1(%arg0: i32) -> (i32, i32) {
    %c0_i32 = arith.constant 0 : i32
    %c0_i32_0 = arith.constant 0 : i32
    %c0_i32_1 = arith.constant 0 : i32
    return %c0_i32, %c0_i32_0 : i32, i32
  }
  func.func @transform_2(%arg0: i32) -> (i32, i32) {
    %c0_i32 = arith.constant 0 : i32
    %c0_i32_0 = arith.constant 0 : i32
    %c0_i32_1 = arith.constant 0 : i32
    return %c0_i32, %c0_i32_0 : i32, i32
  }
  func.func @transform_3(%arg0: i32) -> (i32, i32) {
    %c0_i32 = arith.constant 0 : i32
    %c0_i32_0 = arith.constant 0 : i32
    %c0_i32_1 = arith.constant 0 : i32
    return %c0_i32, %c0_i32_0 : i32, i32
  }
  func.func @transform_4(%arg0: i32) -> (i32, i32) {
    %c0_i32 = arith.constant 0 : i32
    %c0_i32_0 = arith.constant 0 : i32
    return %arg0, %c0_i32 : i32, i32
  }
}

module attributes {stable_mosaic.version = 11 : i64} {
  func.func @_matmul_kernel(%arg0: i32, %arg1: memref<64x16xbf16, #tpu.memory_space<vmem>>, %arg2: memref<16x8xbf16, #tpu.memory_space<vmem>>, %arg3: memref<1x8xf32, #tpu.memory_space<vmem>>, %arg4: memref<1x8xf32, #tpu.memory_space<vmem>>, %arg5: memref<64x8xbf16, #tpu.memory_space<vmem>>) attributes {dimension_semantics = [#tpu.dimension_semantics<parallel>], iteration_bounds = array<i64: 1>, scalar_prefetch = 0 : i64, scratch_operands = 0 : i64, tpu.core_type = #tpu.core_type<tc>, window_params = [{transform_indices = @transform_0, window_bounds = array<i64: 64, 16>}, {pipeline_mode = #tpu.pipeline_mode<synchronous>, transform_indices = @transform_1, window_bounds = array<i64: 16, 8>}, {pipeline_mode = #tpu.pipeline_mode<synchronous>, transform_indices = @transform_2, window_bounds = array<i64: 1, 8>}, {pipeline_mode = #tpu.pipeline_mode<synchronous>, transform_indices = @transform_3, window_bounds = array<i64: 1, 8>}, {transform_indices = @transform_4, window_bounds = array<i64: 64, 8>}]} {
    %c0 = arith.constant 0 : index
    %c0_0 = arith.constant 0 : index
    %0 = vector.load %arg1[%c0, %c0_0] : memref<64x16xbf16, #tpu.memory_space<vmem>>, vector<64x16xbf16>
    %c0_1 = arith.constant 0 : index
    %c0_2 = arith.constant 0 : index
    %1 = vector.load %arg2[%c0_1, %c0_2] : memref<16x8xbf16, #tpu.memory_space<vmem>>, vector<16x8xbf16>
    %cst = arith.constant dense<0.000000e+00> : vector<64x8xf32>
    %2 = tpu.matmul %0, %1, %cst {dimension_numbers = #tpu.dot_dimension_numbers<[1], [0], [0], [1], [0, 0, 1, 1], [], []>} : vector<64x16xbf16>, vector<16x8xbf16>, vector<64x8xf32> -> vector<64x8xf32>
    %c0_3 = arith.constant 0 : index
    %c0_4 = arith.constant 0 : index
    %3 = vector.load %arg3[%c0_3, %c0_4] : memref<1x8xf32, #tpu.memory_space<vmem>>, vector<1x8xf32>
    %4 = vector.broadcast %3 : vector<1x8xf32> to vector<64x8xf32>
    %5 = arith.mulf %2, %4 : vector<64x8xf32>
    %c0_5 = arith.constant 0 : index
    %c0_6 = arith.constant 0 : index
    %6 = vector.load %arg4[%c0_5, %c0_6] : memref<1x8xf32, #tpu.memory_space<vmem>>, vector<1x8xf32>
    %7 = vector.broadcast %6 : vector<1x8xf32> to vector<64x8xf32>
    %8 = arith.addf %5, %7 : vector<64x8xf32>
    %cst_7 = arith.constant 0.000000e+00 : f32
    %9 = vector.broadcast %cst_7 : f32 to vector<64x8xf32>
    %10 = arith.maximumf %8, %9 : vector<64x8xf32>
    %11 = arith.truncf %10 : vector<64x8xf32> to vector<64x8xbf16>
    %c0_8 = arith.constant 0 : index
    %c0_9 = arith.constant 0 : index
    %12 = vector.load %arg5[%c0_8, %c0_9] : memref<64x8xbf16, #tpu.memory_space<vmem>>, vector<64x8xbf16>
    tpu.vector_store %arg5[%c0_8, %c0_9], %11 {strides = array<i32>} : memref<64x8xbf16, #tpu.memory_space<vmem>>, vector<64x8xbf16>,
    return
  }
  func.func @transform_0(%arg0: i32) -> (i32, i32) {
    %c0_i32 = arith.constant 0 : i32
    %c0_i32_0 = arith.constant 0 : i32
    return %arg0, %c0_i32 : i32, i32
  }
  func.func @transform_1(%arg0: i32) -> (i32, i32) {
    %c0_i32 = arith.constant 0 : i32
    %c0_i32_0 = arith.constant 0 : i32
    %c0_i32_1 = arith.constant 0 : i32
    return %c0_i32, %c0_i32_0 : i32, i32
  }
  func.func @transform_2(%arg0: i32) -> (i32, i32) {
    %c0_i32 = arith.constant 0 : i32
    %c0_i32_0 = arith.constant 0 : i32
    %c0_i32_1 = arith.constant 0 : i32
    return %c0_i32, %c0_i32_0 : i32, i32
  }
  func.func @transform_3(%arg0: i32) -> (i32, i32) {
    %c0_i32 = arith.constant 0 : i32
    %c0_i32_0 = arith.constant 0 : i32
    %c0_i32_1 = arith.constant 0 : i32
    return %c0_i32, %c0_i32_0 : i32, i32
  }
  func.func @transform_4(%arg0: i32) -> (i32, i32) {
    %c0_i32 = arith.constant 0 : i32
    %c0_i32_0 = arith.constant 0 : i32
    return %arg0, %c0_i32 : i32, i32
  }
}

module attributes {stable_mosaic.version = 11 : i64} {
  func.func @_matmul_kernel(%arg0: i32, %arg1: memref<16x128xbf16, #tpu.memory_space<vmem>>, %arg2: memref<128x16xbf16, #tpu.memory_space<vmem>>, %arg3: memref<1x16xf32, #tpu.memory_space<vmem>>, %arg4: memref<1x16xf32, #tpu.memory_space<vmem>>, %arg5: memref<16x16xbf16, #tpu.memory_space<vmem>>) attributes {dimension_semantics = [#tpu.dimension_semantics<parallel>], iteration_bounds = array<i64: 1>, scalar_prefetch = 0 : i64, scratch_operands = 0 : i64, tpu.core_type = #tpu.core_type<tc>, window_params = [{transform_indices = @transform_0, window_bounds = array<i64: 16, 128>}, {pipeline_mode = #tpu.pipeline_mode<synchronous>, transform_indices = @transform_1, window_bounds = array<i64: 128, 16>}, {pipeline_mode = #tpu.pipeline_mode<synchronous>, transform_indices = @transform_2, window_bounds = array<i64: 1, 16>}, {pipeline_mode = #tpu.pipeline_mode<synchronous>, transform_indices = @transform_3, window_bounds = array<i64: 1, 16>}, {transform_indices = @transform_4, window_bounds = array<i64: 16, 16>}]} {
    %c0 = arith.constant 0 : index
    %c0_0 = arith.constant 0 : index
    %0 = vector.load %arg1[%c0, %c0_0] : memref<16x128xbf16, #tpu.memory_space<vmem>>, vector<16x128xbf16>
    %c0_1 = arith.constant 0 : index
    %c0_2 = arith.constant 0 : index
    %1 = vector.load %arg2[%c0_1, %c0_2] : memref<128x16xbf16, #tpu.memory_space<vmem>>, vector<128x16xbf16>
    %cst = arith.constant dense<0.000000e+00> : vector<16x16xf32>
    %2 = tpu.matmul %0, %1, %cst {dimension_numbers = #tpu.dot_dimension_numbers<[1], [0], [0], [1], [0, 0, 1, 1], [], []>} : vector<16x128xbf16>, vector<128x16xbf16>, vector<16x16xf32> -> vector<16x16xf32>
    %c0_3 = arith.constant 0 : index
    %c0_4 = arith.constant 0 : index
    %3 = vector.load %arg3[%c0_3, %c0_4] : memref<1x16xf32, #tpu.memory_space<vmem>>, vector<1x16xf32>
    %4 = vector.broadcast %3 : vector<1x16xf32> to vector<16x16xf32>
    %5 = arith.mulf %2, %4 : vector<16x16xf32>
    %c0_5 = arith.constant 0 : index
    %c0_6 = arith.constant 0 : index
    %6 = vector.load %arg4[%c0_5, %c0_6] : memref<1x16xf32, #tpu.memory_space<vmem>>, vector<1x16xf32>
    %7 = vector.broadcast %6 : vector<1x16xf32> to vector<16x16xf32>
    %8 = arith.addf %5, %7 : vector<16x16xf32>
    %cst_7 = arith.constant 0.000000e+00 : f32
    %9 = vector.broadcast %cst_7 : f32 to vector<16x16xf32>
    %10 = arith.maximumf %8, %9 : vector<16x16xf32>
    %11 = arith.truncf %10 : vector<16x16xf32> to vector<16x16xbf16>
    %c0_8 = arith.constant 0 : index
    %c0_9 = arith.constant 0 : index
    %12 = vector.load %arg5[%c0_8, %c0_9] : memref<16x16xbf16, #tpu.memory_space<vmem>>, vector<16x16xbf16>
    tpu.vector_store %arg5[%c0_8, %c0_9], %11 {strides = array<i32>} : memref<16x16xbf16, #tpu.memory_space<vmem>>, vector<16x16xbf16>,
    return
  }
  func.func @transform_0(%arg0: i32) -> (i32, i32) {
    %c0_i32 = arith.constant 0 : i32
    %c0_i32_0 = arith.constant 0 : i32
    return %arg0, %c0_i32 : i32, i32
  }
  func.func @transform_1(%arg0: i32) -> (i32, i32) {
    %c0_i32 = arith.constant 0 : i32
    %c0_i32_0 = arith.constant 0 : i32
    %c0_i32_1 = arith.constant 0 : i32
    return %c0_i32, %c0_i32_0 : i32, i32
  }
  func.func @transform_2(%arg0: i32) -> (i32, i32) {
    %c0_i32 = arith.constant 0 : i32
    %c0_i32_0 = arith.constant 0 : i32
    %c0_i32_1 = arith.constant 0 : i32
    return %c0_i32, %c0_i32_0 : i32, i32
  }
  func.func @transform_3(%arg0: i32) -> (i32, i32) {
    %c0_i32 = arith.constant 0 : i32
    %c0_i32_0 = arith.constant 0 : i32
    %c0_i32_1 = arith.constant 0 : i32
    return %c0_i32, %c0_i32_0 : i32, i32
  }
  func.func @transform_4(%arg0: i32) -> (i32, i32) {
    %c0_i32 = arith.constant 0 : i32
    %c0_i32_0 = arith.constant 0 : i32
    return %arg0, %c0_i32 : i32, i32
  }
}

module attributes {stable_mosaic.version = 11 : i64} {
  func.func @_matmul_kernel(%arg0: i32, %arg1: memref<16x144xbf16, #tpu.memory_space<vmem>>, %arg2: memref<144x16xbf16, #tpu.memory_space<vmem>>, %arg3: memref<1x16xf32, #tpu.memory_space<vmem>>, %arg4: memref<1x16xf32, #tpu.memory_space<vmem>>, %arg5: memref<16x16xbf16, #tpu.memory_space<vmem>>) attributes {dimension_semantics = [#tpu.dimension_semantics<parallel>], iteration_bounds = array<i64: 1>, scalar_prefetch = 0 : i64, scratch_operands = 0 : i64, tpu.core_type = #tpu.core_type<tc>, window_params = [{transform_indices = @transform_0, window_bounds = array<i64: 16, 144>}, {pipeline_mode = #tpu.pipeline_mode<synchronous>, transform_indices = @transform_1, window_bounds = array<i64: 144, 16>}, {pipeline_mode = #tpu.pipeline_mode<synchronous>, transform_indices = @transform_2, window_bounds = array<i64: 1, 16>}, {pipeline_mode = #tpu.pipeline_mode<synchronous>, transform_indices = @transform_3, window_bounds = array<i64: 1, 16>}, {transform_indices = @transform_4, window_bounds = array<i64: 16, 16>}]} {
    %c0 = arith.constant 0 : index
    %c0_0 = arith.constant 0 : index
    %0 = vector.load %arg1[%c0, %c0_0] : memref<16x144xbf16, #tpu.memory_space<vmem>>, vector<16x144xbf16>
    %c0_1 = arith.constant 0 : index
    %c0_2 = arith.constant 0 : index
    %1 = vector.load %arg2[%c0_1, %c0_2] : memref<144x16xbf16, #tpu.memory_space<vmem>>, vector<144x16xbf16>
    %cst = arith.constant dense<0.000000e+00> : vector<16x16xf32>
    %2 = tpu.matmul %0, %1, %cst {dimension_numbers = #tpu.dot_dimension_numbers<[1], [0], [0], [1], [0, 0, 1, 1], [], []>} : vector<16x144xbf16>, vector<144x16xbf16>, vector<16x16xf32> -> vector<16x16xf32>
    %c0_3 = arith.constant 0 : index
    %c0_4 = arith.constant 0 : index
    %3 = vector.load %arg3[%c0_3, %c0_4] : memref<1x16xf32, #tpu.memory_space<vmem>>, vector<1x16xf32>
    %4 = vector.broadcast %3 : vector<1x16xf32> to vector<16x16xf32>
    %5 = arith.mulf %2, %4 : vector<16x16xf32>
    %c0_5 = arith.constant 0 : index
    %c0_6 = arith.constant 0 : index
    %6 = vector.load %arg4[%c0_5, %c0_6] : memref<1x16xf32, #tpu.memory_space<vmem>>, vector<1x16xf32>
    %7 = vector.broadcast %6 : vector<1x16xf32> to vector<16x16xf32>
    %8 = arith.addf %5, %7 : vector<16x16xf32>
    %9 = arith.truncf %8 : vector<16x16xf32> to vector<16x16xbf16>
    %c0_7 = arith.constant 0 : index
    %c0_8 = arith.constant 0 : index
    %10 = vector.load %arg5[%c0_7, %c0_8] : memref<16x16xbf16, #tpu.memory_space<vmem>>, vector<16x16xbf16>
    tpu.vector_store %arg5[%c0_7, %c0_8], %9 {strides = array<i32>} : memref<16x16xbf16, #tpu.memory_space<vmem>>, vector<16x16xbf16>,
    return
  }
  func.func @transform_0(%arg0: i32) -> (i32, i32) {
    %c0_i32 = arith.constant 0 : i32
    %c0_i32_0 = arith.constant 0 : i32
    return %arg0, %c0_i32 : i32, i32
  }
  func.func @transform_1(%arg0: i32) -> (i32, i32) {
    %c0_i32 = arith.constant 0 : i32
    %c0_i32_0 = arith.constant 0 : i32
    %c0_i32_1 = arith.constant 0 : i32
    return %c0_i32, %c0_i32_0 : i32, i32
  }
  func.func @transform_2(%arg0: i32) -> (i32, i32) {
    %c0_i32 = arith.constant 0 : i32
    %c0_i32_0 = arith.constant 0 : i32
    %c0_i32_1 = arith.constant 0 : i32
    return %c0_i32, %c0_i32_0 : i32, i32
  }
  func.func @transform_3(%arg0: i32) -> (i32, i32) {
    %c0_i32 = arith.constant 0 : i32
    %c0_i32_0 = arith.constant 0 : i32
    %c0_i32_1 = arith.constant 0 : i32
    return %c0_i32, %c0_i32_0 : i32, i32
  }
  func.func @transform_4(%arg0: i32) -> (i32, i32) {
    %c0_i32 = arith.constant 0 : i32
    %c0_i32_0 = arith.constant 0 : i32
    return %arg0, %c0_i32 : i32, i32
  }
}

module attributes {stable_mosaic.version = 11 : i64} {
  func.func @_resblock_kernel(%arg0: i32, %arg1: memref<16x144xbf16, #tpu.memory_space<vmem>>, %arg2: memref<144x4xbf16, #tpu.memory_space<vmem>>, %arg3: memref<1x4xf32, #tpu.memory_space<vmem>>, %arg4: memref<1x4xf32, #tpu.memory_space<vmem>>, %arg5: memref<4x16xbf16, #tpu.memory_space<vmem>>, %arg6: memref<1x16xf32, #tpu.memory_space<vmem>>, %arg7: memref<1x16xf32, #tpu.memory_space<vmem>>, %arg8: memref<16x16xbf16, #tpu.memory_space<vmem>>) attributes {dimension_semantics = [#tpu.dimension_semantics<parallel>], iteration_bounds = array<i64: 1>, scalar_prefetch = 0 : i64, scratch_operands = 0 : i64, tpu.core_type = #tpu.core_type<tc>, window_params = [{transform_indices = @transform_0, window_bounds = array<i64: 16, 144>}, {pipeline_mode = #tpu.pipeline_mode<synchronous>, transform_indices = @transform_1, window_bounds = array<i64: 144, 4>}, {pipeline_mode = #tpu.pipeline_mode<synchronous>, transform_indices = @transform_2, window_bounds = array<i64: 1, 4>}, {pipeline_mode = #tpu.pipeline_mode<synchronous>, transform_indices = @transform_3, window_bounds = array<i64: 1, 4>}, {pipeline_mode = #tpu.pipeline_mode<synchronous>, transform_indices = @transform_4, window_bounds = array<i64: 4, 16>}, {pipeline_mode = #tpu.pipeline_mode<synchronous>, transform_indices = @transform_5, window_bounds = array<i64: 1, 16>}, {pipeline_mode = #tpu.pipeline_mode<synchronous>, transform_indices = @transform_6, window_bounds = array<i64: 1, 16>}, {transform_indices = @transform_7, window_bounds = array<i64: 16, 16>}]} {
    %c0 = arith.constant 0 : index
    %c0_0 = arith.constant 0 : index
    %0 = vector.load %arg1[%c0, %c0_0] : memref<16x144xbf16, #tpu.memory_space<vmem>>, vector<16x144xbf16>
    %1 = vector.extract_strided_slice %0 {offsets = [0, 64], sizes = [16, 16], strides = [1, 1]} : vector<16x144xbf16> to vector<16x16xbf16>
    %2 = arith.extf %1 : vector<16x16xbf16> to vector<16x16xf32>
    %cst = arith.constant 0.000000e+00 : bf16
    %3 = vector.broadcast %cst : bf16 to vector<16x144xbf16>
    %4 = arith.maximumf %0, %3 : vector<16x144xbf16>
    %c0_1 = arith.constant 0 : index
    %c0_2 = arith.constant 0 : index
    %5 = vector.load %arg2[%c0_1, %c0_2] : memref<144x4xbf16, #tpu.memory_space<vmem>>, vector<144x4xbf16>
    %cst_3 = arith.constant dense<0.000000e+00> : vector<16x4xf32>
    %6 = tpu.matmul %4, %5, %cst_3 {dimension_numbers = #tpu.dot_dimension_numbers<[1], [0], [0], [1], [0, 0, 1, 1], [], []>} : vector<16x144xbf16>, vector<144x4xbf16>, vector<16x4xf32> -> vector<16x4xf32>
    %c0_4 = arith.constant 0 : index
    %c0_5 = arith.constant 0 : index
    %7 = vector.load %arg3[%c0_4, %c0_5] : memref<1x4xf32, #tpu.memory_space<vmem>>, vector<1x4xf32>
    %8 = vector.broadcast %7 : vector<1x4xf32> to vector<16x4xf32>
    %9 = arith.mulf %6, %8 : vector<16x4xf32>
    %c0_6 = arith.constant 0 : index
    %c0_7 = arith.constant 0 : index
    %10 = vector.load %arg4[%c0_6, %c0_7] : memref<1x4xf32, #tpu.memory_space<vmem>>, vector<1x4xf32>
    %11 = vector.broadcast %10 : vector<1x4xf32> to vector<16x4xf32>
    %12 = arith.addf %9, %11 : vector<16x4xf32>
    %cst_8 = arith.constant 0.000000e+00 : f32
    %13 = vector.broadcast %cst_8 : f32 to vector<16x4xf32>
    %14 = arith.maximumf %12, %13 : vector<16x4xf32>
    %15 = arith.truncf %14 : vector<16x4xf32> to vector<16x4xbf16>
    %c0_9 = arith.constant 0 : index
    %c0_10 = arith.constant 0 : index
    %16 = vector.load %arg5[%c0_9, %c0_10] : memref<4x16xbf16, #tpu.memory_space<vmem>>, vector<4x16xbf16>
    %cst_11 = arith.constant dense<0.000000e+00> : vector<16x16xf32>
    %17 = tpu.matmul %15, %16, %cst_11 {dimension_numbers = #tpu.dot_dimension_numbers<[1], [0], [0], [1], [0, 0, 1, 1], [], []>} : vector<16x4xbf16>, vector<4x16xbf16>, vector<16x16xf32> -> vector<16x16xf32>
    %c0_12 = arith.constant 0 : index
    %c0_13 = arith.constant 0 : index
    %18 = vector.load %arg6[%c0_12, %c0_13] : memref<1x16xf32, #tpu.memory_space<vmem>>, vector<1x16xf32>
    %19 = vector.broadcast %18 : vector<1x16xf32> to vector<16x16xf32>
    %20 = arith.mulf %17, %19 : vector<16x16xf32>
    %c0_14 = arith.constant 0 : index
    %c0_15 = arith.constant 0 : index
    %21 = vector.load %arg7[%c0_14, %c0_15] : memref<1x16xf32, #tpu.memory_space<vmem>>, vector<1x16xf32>
    %22 = vector.broadcast %21 : vector<1x16xf32> to vector<16x16xf32>
    %23 = arith.addf %20, %22 : vector<16x16xf32>
    %24 = arith.addf %23, %2 : vector<16x16xf32>
    %25 = arith.truncf %24 : vector<16x16xf32> to vector<16x16xbf16>
    %c0_16 = arith.constant 0 : index
    %c0_17 = arith.constant 0 : index
    %26 = vector.load %arg8[%c0_16, %c0_17] : memref<16x16xbf16, #tpu.memory_space<vmem>>, vector<16x16xbf16>
    tpu.vector_store %arg8[%c0_16, %c0_17], %25 {strides = array<i32>} : memref<16x16xbf16, #tpu.memory_space<vmem>>, vector<16x16xbf16>,
    return
  }
  func.func @transform_0(%arg0: i32) -> (i32, i32) {
    %c0_i32 = arith.constant 0 : i32
    %c0_i32_0 = arith.constant 0 : i32
    return %arg0, %c0_i32 : i32, i32
  }
  func.func @transform_1(%arg0: i32) -> (i32, i32) {
    %c0_i32 = arith.constant 0 : i32
    %c0_i32_0 = arith.constant 0 : i32
    %c0_i32_1 = arith.constant 0 : i32
    return %c0_i32, %c0_i32_0 : i32, i32
  }
  func.func @transform_2(%arg0: i32) -> (i32, i32) {
    %c0_i32 = arith.constant 0 : i32
    %c0_i32_0 = arith.constant 0 : i32
    %c0_i32_1 = arith.constant 0 : i32
    return %c0_i32, %c0_i32_0 : i32, i32
  }
  func.func @transform_3(%arg0: i32) -> (i32, i32) {
    %c0_i32 = arith.constant 0 : i32
    %c0_i32_0 = arith.constant 0 : i32
    %c0_i32_1 = arith.constant 0 : i32
    return %c0_i32, %c0_i32_0 : i32, i32
  }
  func.func @transform_4(%arg0: i32) -> (i32, i32) {
    %c0_i32 = arith.constant 0 : i32
    %c0_i32_0 = arith.constant 0 : i32
    %c0_i32_1 = arith.constant 0 : i32
    return %c0_i32, %c0_i32_0 : i32, i32
  }
  func.func @transform_5(%arg0: i32) -> (i32, i32) {
    %c0_i32 = arith.constant 0 : i32
    %c0_i32_0 = arith.constant 0 : i32
    %c0_i32_1 = arith.constant 0 : i32
    return %c0_i32, %c0_i32_0 : i32, i32
  }
  func.func @transform_6(%arg0: i32) -> (i32, i32) {
    %c0_i32 = arith.constant 0 : i32
    %c0_i32_0 = arith.constant 0 : i32
    %c0_i32_1 = arith.constant 0 : i32
    return %c0_i32, %c0_i32_0 : i32, i32
  }
  func.func @transform_7(%arg0: i32) -> (i32, i32) {
    %c0_i32 = arith.constant 0 : i32
    %c0_i32_0 = arith.constant 0 : i32
    return %arg0, %c0_i32 : i32, i32
  }
}

module attributes {stable_mosaic.version = 11 : i64} {
  func.func @_resblock_kernel(%arg0: i32, %arg1: memref<16x144xbf16, #tpu.memory_space<vmem>>, %arg2: memref<144x4xbf16, #tpu.memory_space<vmem>>, %arg3: memref<1x4xf32, #tpu.memory_space<vmem>>, %arg4: memref<1x4xf32, #tpu.memory_space<vmem>>, %arg5: memref<4x16xbf16, #tpu.memory_space<vmem>>, %arg6: memref<1x16xf32, #tpu.memory_space<vmem>>, %arg7: memref<1x16xf32, #tpu.memory_space<vmem>>, %arg8: memref<16x16xbf16, #tpu.memory_space<vmem>>) attributes {dimension_semantics = [#tpu.dimension_semantics<parallel>], iteration_bounds = array<i64: 1>, scalar_prefetch = 0 : i64, scratch_operands = 0 : i64, tpu.core_type = #tpu.core_type<tc>, window_params = [{transform_indices = @transform_0, window_bounds = array<i64: 16, 144>}, {pipeline_mode = #tpu.pipeline_mode<synchronous>, transform_indices = @transform_1, window_bounds = array<i64: 144, 4>}, {pipeline_mode = #tpu.pipeline_mode<synchronous>, transform_indices = @transform_2, window_bounds = array<i64: 1, 4>}, {pipeline_mode = #tpu.pipeline_mode<synchronous>, transform_indices = @transform_3, window_bounds = array<i64: 1, 4>}, {pipeline_mode = #tpu.pipeline_mode<synchronous>, transform_indices = @transform_4, window_bounds = array<i64: 4, 16>}, {pipeline_mode = #tpu.pipeline_mode<synchronous>, transform_indices = @transform_5, window_bounds = array<i64: 1, 16>}, {pipeline_mode = #tpu.pipeline_mode<synchronous>, transform_indices = @transform_6, window_bounds = array<i64: 1, 16>}, {transform_indices = @transform_7, window_bounds = array<i64: 16, 16>}]} {
    %c0 = arith.constant 0 : index
    %c0_0 = arith.constant 0 : index
    %0 = vector.load %arg1[%c0, %c0_0] : memref<16x144xbf16, #tpu.memory_space<vmem>>, vector<16x144xbf16>
    %1 = vector.extract_strided_slice %0 {offsets = [0, 64], sizes = [16, 16], strides = [1, 1]} : vector<16x144xbf16> to vector<16x16xbf16>
    %2 = arith.extf %1 : vector<16x16xbf16> to vector<16x16xf32>
    %cst = arith.constant 0.000000e+00 : bf16
    %3 = vector.broadcast %cst : bf16 to vector<16x144xbf16>
    %4 = arith.maximumf %0, %3 : vector<16x144xbf16>
    %c0_1 = arith.constant 0 : index
    %c0_2 = arith.constant 0 : index
    %5 = vector.load %arg2[%c0_1, %c0_2] : memref<144x4xbf16, #tpu.memory_space<vmem>>, vector<144x4xbf16>
    %cst_3 = arith.constant dense<0.000000e+00> : vector<16x4xf32>
    %6 = tpu.matmul %4, %5, %cst_3 {dimension_numbers = #tpu.dot_dimension_numbers<[1], [0], [0], [1], [0, 0, 1, 1], [], []>} : vector<16x144xbf16>, vector<144x4xbf16>, vector<16x4xf32> -> vector<16x4xf32>
    %c0_4 = arith.constant 0 : index
    %c0_5 = arith.constant 0 : index
    %7 = vector.load %arg3[%c0_4, %c0_5] : memref<1x4xf32, #tpu.memory_space<vmem>>, vector<1x4xf32>
    %8 = vector.broadcast %7 : vector<1x4xf32> to vector<16x4xf32>
    %9 = arith.mulf %6, %8 : vector<16x4xf32>
    %c0_6 = arith.constant 0 : index
    %c0_7 = arith.constant 0 : index
    %10 = vector.load %arg4[%c0_6, %c0_7] : memref<1x4xf32, #tpu.memory_space<vmem>>, vector<1x4xf32>
    %11 = vector.broadcast %10 : vector<1x4xf32> to vector<16x4xf32>
    %12 = arith.addf %9, %11 : vector<16x4xf32>
    %cst_8 = arith.constant 0.000000e+00 : f32
    %13 = vector.broadcast %cst_8 : f32 to vector<16x4xf32>
    %14 = arith.maximumf %12, %13 : vector<16x4xf32>
    %15 = arith.truncf %14 : vector<16x4xf32> to vector<16x4xbf16>
    %c0_9 = arith.constant 0 : index
    %c0_10 = arith.constant 0 : index
    %16 = vector.load %arg5[%c0_9, %c0_10] : memref<4x16xbf16, #tpu.memory_space<vmem>>, vector<4x16xbf16>
    %cst_11 = arith.constant dense<0.000000e+00> : vector<16x16xf32>
    %17 = tpu.matmul %15, %16, %cst_11 {dimension_numbers = #tpu.dot_dimension_numbers<[1], [0], [0], [1], [0, 0, 1, 1], [], []>} : vector<16x4xbf16>, vector<4x16xbf16>, vector<16x16xf32> -> vector<16x16xf32>
    %c0_12 = arith.constant 0 : index
    %c0_13 = arith.constant 0 : index
    %18 = vector.load %arg6[%c0_12, %c0_13] : memref<1x16xf32, #tpu.memory_space<vmem>>, vector<1x16xf32>
    %19 = vector.broadcast %18 : vector<1x16xf32> to vector<16x16xf32>
    %20 = arith.mulf %17, %19 : vector<16x16xf32>
    %c0_14 = arith.constant 0 : index
    %c0_15 = arith.constant 0 : index
    %21 = vector.load %arg7[%c0_14, %c0_15] : memref<1x16xf32, #tpu.memory_space<vmem>>, vector<1x16xf32>
    %22 = vector.broadcast %21 : vector<1x16xf32> to vector<16x16xf32>
    %23 = arith.addf %20, %22 : vector<16x16xf32>
    %24 = arith.addf %23, %2 : vector<16x16xf32>
    %cst_16 = arith.constant 0.000000e+00 : f32
    %25 = vector.broadcast %cst_16 : f32 to vector<16x16xf32>
    %26 = arith.maximumf %24, %25 : vector<16x16xf32>
    %27 = arith.truncf %26 : vector<16x16xf32> to vector<16x16xbf16>
    %c0_17 = arith.constant 0 : index
    %c0_18 = arith.constant 0 : index
    %28 = vector.load %arg8[%c0_17, %c0_18] : memref<16x16xbf16, #tpu.memory_space<vmem>>, vector<16x16xbf16>
    tpu.vector_store %arg8[%c0_17, %c0_18], %27 {strides = array<i32>} : memref<16x16xbf16, #tpu.memory_space<vmem>>, vector<16x16xbf16>,
    return
  }
  func.func @transform_0(%arg0: i32) -> (i32, i32) {
    %c0_i32 = arith.constant 0 : i32
    %c0_i32_0 = arith.constant 0 : i32
    return %arg0, %c0_i32 : i32, i32
  }
  func.func @transform_1(%arg0: i32) -> (i32, i32) {
    %c0_i32 = arith.constant 0 : i32
    %c0_i32_0 = arith.constant 0 : i32
    %c0_i32_1 = arith.constant 0 : i32
    return %c0_i32, %c0_i32_0 : i32, i32
  }
  func.func @transform_2(%arg0: i32) -> (i32, i32) {
    %c0_i32 = arith.constant 0 : i32
    %c0_i32_0 = arith.constant 0 : i32
    %c0_i32_1 = arith.constant 0 : i32
    return %c0_i32, %c0_i32_0 : i32, i32
  }
  func.func @transform_3(%arg0: i32) -> (i32, i32) {
    %c0_i32 = arith.constant 0 : i32
    %c0_i32_0 = arith.constant 0 : i32
    %c0_i32_1 = arith.constant 0 : i32
    return %c0_i32, %c0_i32_0 : i32, i32
  }
  func.func @transform_4(%arg0: i32) -> (i32, i32) {
    %c0_i32 = arith.constant 0 : i32
    %c0_i32_0 = arith.constant 0 : i32
    %c0_i32_1 = arith.constant 0 : i32
    return %c0_i32, %c0_i32_0 : i32, i32
  }
  func.func @transform_5(%arg0: i32) -> (i32, i32) {
    %c0_i32 = arith.constant 0 : i32
    %c0_i32_0 = arith.constant 0 : i32
    %c0_i32_1 = arith.constant 0 : i32
    return %c0_i32, %c0_i32_0 : i32, i32
  }
  func.func @transform_6(%arg0: i32) -> (i32, i32) {
    %c0_i32 = arith.constant 0 : i32
    %c0_i32_0 = arith.constant 0 : i32
    %c0_i32_1 = arith.constant 0 : i32
    return %c0_i32, %c0_i32_0 : i32, i32
  }
  func.func @transform_7(%arg0: i32) -> (i32, i32) {
    %c0_i32 = arith.constant 0 : i32
    %c0_i32_0 = arith.constant 0 : i32
    return %arg0, %c0_i32 : i32, i32
  }
}

module attributes {stable_mosaic.version = 11 : i64} {
  func.func @_matmul_kernel(%arg0: i32, %arg1: memref<4x256xbf16, #tpu.memory_space<vmem>>, %arg2: memref<256x8xbf16, #tpu.memory_space<vmem>>, %arg3: memref<1x8xf32, #tpu.memory_space<vmem>>, %arg4: memref<1x8xf32, #tpu.memory_space<vmem>>, %arg5: memref<4x8xbf16, #tpu.memory_space<vmem>>) attributes {dimension_semantics = [#tpu.dimension_semantics<parallel>], iteration_bounds = array<i64: 1>, scalar_prefetch = 0 : i64, scratch_operands = 0 : i64, tpu.core_type = #tpu.core_type<tc>, window_params = [{transform_indices = @transform_0, window_bounds = array<i64: 4, 256>}, {pipeline_mode = #tpu.pipeline_mode<synchronous>, transform_indices = @transform_1, window_bounds = array<i64: 256, 8>}, {pipeline_mode = #tpu.pipeline_mode<synchronous>, transform_indices = @transform_2, window_bounds = array<i64: 1, 8>}, {pipeline_mode = #tpu.pipeline_mode<synchronous>, transform_indices = @transform_3, window_bounds = array<i64: 1, 8>}, {transform_indices = @transform_4, window_bounds = array<i64: 4, 8>}]} {
    %c0 = arith.constant 0 : index
    %c0_0 = arith.constant 0 : index
    %0 = vector.load %arg1[%c0, %c0_0] : memref<4x256xbf16, #tpu.memory_space<vmem>>, vector<4x256xbf16>
    %c0_1 = arith.constant 0 : index
    %c0_2 = arith.constant 0 : index
    %1 = vector.load %arg2[%c0_1, %c0_2] : memref<256x8xbf16, #tpu.memory_space<vmem>>, vector<256x8xbf16>
    %cst = arith.constant dense<0.000000e+00> : vector<4x8xf32>
    %2 = tpu.matmul %0, %1, %cst {dimension_numbers = #tpu.dot_dimension_numbers<[1], [0], [0], [1], [0, 0, 1, 1], [], []>} : vector<4x256xbf16>, vector<256x8xbf16>, vector<4x8xf32> -> vector<4x8xf32>
    %c0_3 = arith.constant 0 : index
    %c0_4 = arith.constant 0 : index
    %3 = vector.load %arg3[%c0_3, %c0_4] : memref<1x8xf32, #tpu.memory_space<vmem>>, vector<1x8xf32>
    %4 = vector.broadcast %3 : vector<1x8xf32> to vector<4x8xf32>
    %5 = arith.mulf %2, %4 : vector<4x8xf32>
    %c0_5 = arith.constant 0 : index
    %c0_6 = arith.constant 0 : index
    %6 = vector.load %arg4[%c0_5, %c0_6] : memref<1x8xf32, #tpu.memory_space<vmem>>, vector<1x8xf32>
    %7 = vector.broadcast %6 : vector<1x8xf32> to vector<4x8xf32>
    %8 = arith.addf %5, %7 : vector<4x8xf32>
    %cst_7 = arith.constant 0.000000e+00 : f32
    %9 = vector.broadcast %cst_7 : f32 to vector<4x8xf32>
    %10 = arith.maximumf %8, %9 : vector<4x8xf32>
    %11 = arith.truncf %10 : vector<4x8xf32> to vector<4x8xbf16>
    %c0_8 = arith.constant 0 : index
    %c0_9 = arith.constant 0 : index
    %12 = vector.load %arg5[%c0_8, %c0_9] : memref<4x8xbf16, #tpu.memory_space<vmem>>, vector<4x8xbf16>
    tpu.vector_store %arg5[%c0_8, %c0_9], %11 {strides = array<i32>} : memref<4x8xbf16, #tpu.memory_space<vmem>>, vector<4x8xbf16>,
    return
  }
  func.func @transform_0(%arg0: i32) -> (i32, i32) {
    %c0_i32 = arith.constant 0 : i32
    %c0_i32_0 = arith.constant 0 : i32
    return %arg0, %c0_i32 : i32, i32
  }
  func.func @transform_1(%arg0: i32) -> (i32, i32) {
    %c0_i32 = arith.constant 0 : i32
    %c0_i32_0 = arith.constant 0 : i32
    %c0_i32_1 = arith.constant 0 : i32
    return %c0_i32, %c0_i32_0 : i32, i32
  }
  func.func @transform_2(%arg0: i32) -> (i32, i32) {
    %c0_i32 = arith.constant 0 : i32
    %c0_i32_0 = arith.constant 0 : i32
    %c0_i32_1 = arith.constant 0 : i32
    return %c0_i32, %c0_i32_0 : i32, i32
  }
  func.func @transform_3(%arg0: i32) -> (i32, i32) {
    %c0_i32 = arith.constant 0 : i32
    %c0_i32_0 = arith.constant 0 : i32
    %c0_i32_1 = arith.constant 0 : i32
    return %c0_i32, %c0_i32_0 : i32, i32
  }
  func.func @transform_4(%arg0: i32) -> (i32, i32) {
    %c0_i32 = arith.constant 0 : i32
    %c0_i32_0 = arith.constant 0 : i32
    return %arg0, %c0_i32 : i32, i32
  }
}

module attributes {stable_mosaic.version = 11 : i64} {
  func.func @_matmul_kernel(%arg0: i32, %arg1: memref<4x72xbf16, #tpu.memory_space<vmem>>, %arg2: memref<72x16xbf16, #tpu.memory_space<vmem>>, %arg3: memref<1x16xf32, #tpu.memory_space<vmem>>, %arg4: memref<1x16xf32, #tpu.memory_space<vmem>>, %arg5: memref<4x16xbf16, #tpu.memory_space<vmem>>) attributes {dimension_semantics = [#tpu.dimension_semantics<parallel>], iteration_bounds = array<i64: 1>, scalar_prefetch = 0 : i64, scratch_operands = 0 : i64, tpu.core_type = #tpu.core_type<tc>, window_params = [{transform_indices = @transform_0, window_bounds = array<i64: 4, 72>}, {pipeline_mode = #tpu.pipeline_mode<synchronous>, transform_indices = @transform_1, window_bounds = array<i64: 72, 16>}, {pipeline_mode = #tpu.pipeline_mode<synchronous>, transform_indices = @transform_2, window_bounds = array<i64: 1, 16>}, {pipeline_mode = #tpu.pipeline_mode<synchronous>, transform_indices = @transform_3, window_bounds = array<i64: 1, 16>}, {transform_indices = @transform_4, window_bounds = array<i64: 4, 16>}]} {
    %c0 = arith.constant 0 : index
    %c0_0 = arith.constant 0 : index
    %0 = vector.load %arg1[%c0, %c0_0] : memref<4x72xbf16, #tpu.memory_space<vmem>>, vector<4x72xbf16>
    %c0_1 = arith.constant 0 : index
    %c0_2 = arith.constant 0 : index
    %1 = vector.load %arg2[%c0_1, %c0_2] : memref<72x16xbf16, #tpu.memory_space<vmem>>, vector<72x16xbf16>
    %cst = arith.constant dense<0.000000e+00> : vector<4x16xf32>
    %2 = tpu.matmul %0, %1, %cst {dimension_numbers = #tpu.dot_dimension_numbers<[1], [0], [0], [1], [0, 0, 1, 1], [], []>} : vector<4x72xbf16>, vector<72x16xbf16>, vector<4x16xf32> -> vector<4x16xf32>
    %c0_3 = arith.constant 0 : index
    %c0_4 = arith.constant 0 : index
    %3 = vector.load %arg3[%c0_3, %c0_4] : memref<1x16xf32, #tpu.memory_space<vmem>>, vector<1x16xf32>
    %4 = vector.broadcast %3 : vector<1x16xf32> to vector<4x16xf32>
    %5 = arith.mulf %2, %4 : vector<4x16xf32>
    %c0_5 = arith.constant 0 : index
    %c0_6 = arith.constant 0 : index
    %6 = vector.load %arg4[%c0_5, %c0_6] : memref<1x16xf32, #tpu.memory_space<vmem>>, vector<1x16xf32>
    %7 = vector.broadcast %6 : vector<1x16xf32> to vector<4x16xf32>
    %8 = arith.addf %5, %7 : vector<4x16xf32>
    %9 = arith.truncf %8 : vector<4x16xf32> to vector<4x16xbf16>
    %c0_7 = arith.constant 0 : index
    %c0_8 = arith.constant 0 : index
    %10 = vector.load %arg5[%c0_7, %c0_8] : memref<4x16xbf16, #tpu.memory_space<vmem>>, vector<4x16xbf16>
    tpu.vector_store %arg5[%c0_7, %c0_8], %9 {strides = array<i32>} : memref<4x16xbf16, #tpu.memory_space<vmem>>, vector<4x16xbf16>,
    return
  }
  func.func @transform_0(%arg0: i32) -> (i32, i32) {
    %c0_i32 = arith.constant 0 : i32
    %c0_i32_0 = arith.constant 0 : i32
    return %arg0, %c0_i32 : i32, i32
  }
  func.func @transform_1(%arg0: i32) -> (i32, i32) {
    %c0_i32 = arith.constant 0 : i32
    %c0_i32_0 = arith.constant 0 : i32
    %c0_i32_1 = arith.constant 0 : i32
    return %c0_i32, %c0_i32_0 : i32, i32
  }
  func.func @transform_2(%arg0: i32) -> (i32, i32) {
    %c0_i32 = arith.constant 0 : i32
    %c0_i32_0 = arith.constant 0 : i32
    %c0_i32_1 = arith.constant 0 : i32
    return %c0_i32, %c0_i32_0 : i32, i32
  }
  func.func @transform_3(%arg0: i32) -> (i32, i32) {
    %c0_i32 = arith.constant 0 : i32
    %c0_i32_0 = arith.constant 0 : i32
    %c0_i32_1 = arith.constant 0 : i32
    return %c0_i32, %c0_i32_0 : i32, i32
  }
  func.func @transform_4(%arg0: i32) -> (i32, i32) {
    %c0_i32 = arith.constant 0 : i32
    %c0_i32_0 = arith.constant 0 : i32
    return %arg0, %c0_i32 : i32, i32
  }
}

module attributes {stable_mosaic.version = 11 : i64} {
  func.func @_resblock_kernel(%arg0: i32, %arg1: memref<4x144xbf16, #tpu.memory_space<vmem>>, %arg2: memref<144x4xbf16, #tpu.memory_space<vmem>>, %arg3: memref<1x4xf32, #tpu.memory_space<vmem>>, %arg4: memref<1x4xf32, #tpu.memory_space<vmem>>, %arg5: memref<4x16xbf16, #tpu.memory_space<vmem>>, %arg6: memref<1x16xf32, #tpu.memory_space<vmem>>, %arg7: memref<1x16xf32, #tpu.memory_space<vmem>>, %arg8: memref<4x16xbf16, #tpu.memory_space<vmem>>) attributes {dimension_semantics = [#tpu.dimension_semantics<parallel>], iteration_bounds = array<i64: 1>, scalar_prefetch = 0 : i64, scratch_operands = 0 : i64, tpu.core_type = #tpu.core_type<tc>, window_params = [{transform_indices = @transform_0, window_bounds = array<i64: 4, 144>}, {pipeline_mode = #tpu.pipeline_mode<synchronous>, transform_indices = @transform_1, window_bounds = array<i64: 144, 4>}, {pipeline_mode = #tpu.pipeline_mode<synchronous>, transform_indices = @transform_2, window_bounds = array<i64: 1, 4>}, {pipeline_mode = #tpu.pipeline_mode<synchronous>, transform_indices = @transform_3, window_bounds = array<i64: 1, 4>}, {pipeline_mode = #tpu.pipeline_mode<synchronous>, transform_indices = @transform_4, window_bounds = array<i64: 4, 16>}, {pipeline_mode = #tpu.pipeline_mode<synchronous>, transform_indices = @transform_5, window_bounds = array<i64: 1, 16>}, {pipeline_mode = #tpu.pipeline_mode<synchronous>, transform_indices = @transform_6, window_bounds = array<i64: 1, 16>}, {transform_indices = @transform_7, window_bounds = array<i64: 4, 16>}]} {
    %c0 = arith.constant 0 : index
    %c0_0 = arith.constant 0 : index
    %0 = vector.load %arg1[%c0, %c0_0] : memref<4x144xbf16, #tpu.memory_space<vmem>>, vector<4x144xbf16>
    %1 = vector.extract_strided_slice %0 {offsets = [0, 64], sizes = [4, 16], strides = [1, 1]} : vector<4x144xbf16> to vector<4x16xbf16>
    %2 = arith.extf %1 : vector<4x16xbf16> to vector<4x16xf32>
    %cst = arith.constant 0.000000e+00 : bf16
    %3 = vector.broadcast %cst : bf16 to vector<4x144xbf16>
    %4 = arith.maximumf %0, %3 : vector<4x144xbf16>
    %c0_1 = arith.constant 0 : index
    %c0_2 = arith.constant 0 : index
    %5 = vector.load %arg2[%c0_1, %c0_2] : memref<144x4xbf16, #tpu.memory_space<vmem>>, vector<144x4xbf16>
    %cst_3 = arith.constant dense<0.000000e+00> : vector<4x4xf32>
    %6 = tpu.matmul %4, %5, %cst_3 {dimension_numbers = #tpu.dot_dimension_numbers<[1], [0], [0], [1], [0, 0, 1, 1], [], []>} : vector<4x144xbf16>, vector<144x4xbf16>, vector<4x4xf32> -> vector<4x4xf32>
    %c0_4 = arith.constant 0 : index
    %c0_5 = arith.constant 0 : index
    %7 = vector.load %arg3[%c0_4, %c0_5] : memref<1x4xf32, #tpu.memory_space<vmem>>, vector<1x4xf32>
    %8 = vector.broadcast %7 : vector<1x4xf32> to vector<4x4xf32>
    %9 = arith.mulf %6, %8 : vector<4x4xf32>
    %c0_6 = arith.constant 0 : index
    %c0_7 = arith.constant 0 : index
    %10 = vector.load %arg4[%c0_6, %c0_7] : memref<1x4xf32, #tpu.memory_space<vmem>>, vector<1x4xf32>
    %11 = vector.broadcast %10 : vector<1x4xf32> to vector<4x4xf32>
    %12 = arith.addf %9, %11 : vector<4x4xf32>
    %cst_8 = arith.constant 0.000000e+00 : f32
    %13 = vector.broadcast %cst_8 : f32 to vector<4x4xf32>
    %14 = arith.maximumf %12, %13 : vector<4x4xf32>
    %15 = arith.truncf %14 : vector<4x4xf32> to vector<4x4xbf16>
    %c0_9 = arith.constant 0 : index
    %c0_10 = arith.constant 0 : index
    %16 = vector.load %arg5[%c0_9, %c0_10] : memref<4x16xbf16, #tpu.memory_space<vmem>>, vector<4x16xbf16>
    %cst_11 = arith.constant dense<0.000000e+00> : vector<4x16xf32>
    %17 = tpu.matmul %15, %16, %cst_11 {dimension_numbers = #tpu.dot_dimension_numbers<[1], [0], [0], [1], [0, 0, 1, 1], [], []>} : vector<4x4xbf16>, vector<4x16xbf16>, vector<4x16xf32> -> vector<4x16xf32>
    %c0_12 = arith.constant 0 : index
    %c0_13 = arith.constant 0 : index
    %18 = vector.load %arg6[%c0_12, %c0_13] : memref<1x16xf32, #tpu.memory_space<vmem>>, vector<1x16xf32>
    %19 = vector.broadcast %18 : vector<1x16xf32> to vector<4x16xf32>
    %20 = arith.mulf %17, %19 : vector<4x16xf32>
    %c0_14 = arith.constant 0 : index
    %c0_15 = arith.constant 0 : index
    %21 = vector.load %arg7[%c0_14, %c0_15] : memref<1x16xf32, #tpu.memory_space<vmem>>, vector<1x16xf32>
    %22 = vector.broadcast %21 : vector<1x16xf32> to vector<4x16xf32>
    %23 = arith.addf %20, %22 : vector<4x16xf32>
    %24 = arith.addf %23, %2 : vector<4x16xf32>
    %cst_16 = arith.constant 0.000000e+00 : f32
    %25 = vector.broadcast %cst_16 : f32 to vector<4x16xf32>
    %26 = arith.maximumf %24, %25 : vector<4x16xf32>
    %27 = arith.truncf %26 : vector<4x16xf32> to vector<4x16xbf16>
    %c0_17 = arith.constant 0 : index
    %c0_18 = arith.constant 0 : index
    %28 = vector.load %arg8[%c0_17, %c0_18] : memref<4x16xbf16, #tpu.memory_space<vmem>>, vector<4x16xbf16>
    tpu.vector_store %arg8[%c0_17, %c0_18], %27 {strides = array<i32>} : memref<4x16xbf16, #tpu.memory_space<vmem>>, vector<4x16xbf16>,
    return
  }
  func.func @transform_0(%arg0: i32) -> (i32, i32) {
    %c0_i32 = arith.constant 0 : i32
    %c0_i32_0 = arith.constant 0 : i32
    return %arg0, %c0_i32 : i32, i32
  }
  func.func @transform_1(%arg0: i32) -> (i32, i32) {
    %c0_i32 = arith.constant 0 : i32
    %c0_i32_0 = arith.constant 0 : i32
    %c0_i32_1 = arith.constant 0 : i32
    return %c0_i32, %c0_i32_0 : i32, i32
  }
  func.func @transform_2(%arg0: i32) -> (i32, i32) {
    %c0_i32 = arith.constant 0 : i32
    %c0_i32_0 = arith.constant 0 : i32
    %c0_i32_1 = arith.constant 0 : i32
    return %c0_i32, %c0_i32_0 : i32, i32
  }
  func.func @transform_3(%arg0: i32) -> (i32, i32) {
    %c0_i32 = arith.constant 0 : i32
    %c0_i32_0 = arith.constant 0 : i32
    %c0_i32_1 = arith.constant 0 : i32
    return %c0_i32, %c0_i32_0 : i32, i32
  }
  func.func @transform_4(%arg0: i32) -> (i32, i32) {
    %c0_i32 = arith.constant 0 : i32
    %c0_i32_0 = arith.constant 0 : i32
    %c0_i32_1 = arith.constant 0 : i32
    return %c0_i32, %c0_i32_0 : i32, i32
  }
  func.func @transform_5(%arg0: i32) -> (i32, i32) {
    %c0_i32 = arith.constant 0 : i32
    %c0_i32_0 = arith.constant 0 : i32
    %c0_i32_1 = arith.constant 0 : i32
    return %c0_i32, %c0_i32_0 : i32, i32
  }
  func.func @transform_6(%arg0: i32) -> (i32, i32) {
    %c0_i32 = arith.constant 0 : i32
    %c0_i32_0 = arith.constant 0 : i32
    %c0_i32_1 = arith.constant 0 : i32
    return %c0_i32, %c0_i32_0 : i32, i32
  }
  func.func @transform_7(%arg0: i32) -> (i32, i32) {
    %c0_i32 = arith.constant 0 : i32
    %c0_i32_0 = arith.constant 0 : i32
    return %arg0, %c0_i32 : i32, i32
  }
}

module attributes {stable_mosaic.version = 11 : i64} {
  func.func @_resblock_kernel(%arg0: i32, %arg1: memref<4x144xbf16, #tpu.memory_space<vmem>>, %arg2: memref<144x4xbf16, #tpu.memory_space<vmem>>, %arg3: memref<1x4xf32, #tpu.memory_space<vmem>>, %arg4: memref<1x4xf32, #tpu.memory_space<vmem>>, %arg5: memref<4x16xbf16, #tpu.memory_space<vmem>>, %arg6: memref<1x16xf32, #tpu.memory_space<vmem>>, %arg7: memref<1x16xf32, #tpu.memory_space<vmem>>, %arg8: memref<4x16xbf16, #tpu.memory_space<vmem>>) attributes {dimension_semantics = [#tpu.dimension_semantics<parallel>], iteration_bounds = array<i64: 1>, scalar_prefetch = 0 : i64, scratch_operands = 0 : i64, tpu.core_type = #tpu.core_type<tc>, window_params = [{transform_indices = @transform_0, window_bounds = array<i64: 4, 144>}, {pipeline_mode = #tpu.pipeline_mode<synchronous>, transform_indices = @transform_1, window_bounds = array<i64: 144, 4>}, {pipeline_mode = #tpu.pipeline_mode<synchronous>, transform_indices = @transform_2, window_bounds = array<i64: 1, 4>}, {pipeline_mode = #tpu.pipeline_mode<synchronous>, transform_indices = @transform_3, window_bounds = array<i64: 1, 4>}, {pipeline_mode = #tpu.pipeline_mode<synchronous>, transform_indices = @transform_4, window_bounds = array<i64: 4, 16>}, {pipeline_mode = #tpu.pipeline_mode<synchronous>, transform_indices = @transform_5, window_bounds = array<i64: 1, 16>}, {pipeline_mode = #tpu.pipeline_mode<synchronous>, transform_indices = @transform_6, window_bounds = array<i64: 1, 16>}, {transform_indices = @transform_7, window_bounds = array<i64: 4, 16>}]} {
    %c0 = arith.constant 0 : index
    %c0_0 = arith.constant 0 : index
    %0 = vector.load %arg1[%c0, %c0_0] : memref<4x144xbf16, #tpu.memory_space<vmem>>, vector<4x144xbf16>
    %1 = vector.extract_strided_slice %0 {offsets = [0, 64], sizes = [4, 16], strides = [1, 1]} : vector<4x144xbf16> to vector<4x16xbf16>
    %2 = arith.extf %1 : vector<4x16xbf16> to vector<4x16xf32>
    %cst = arith.constant 0.000000e+00 : bf16
    %3 = vector.broadcast %cst : bf16 to vector<4x144xbf16>
    %4 = arith.maximumf %0, %3 : vector<4x144xbf16>
    %c0_1 = arith.constant 0 : index
    %c0_2 = arith.constant 0 : index
    %5 = vector.load %arg2[%c0_1, %c0_2] : memref<144x4xbf16, #tpu.memory_space<vmem>>, vector<144x4xbf16>
    %cst_3 = arith.constant dense<0.000000e+00> : vector<4x4xf32>
    %6 = tpu.matmul %4, %5, %cst_3 {dimension_numbers = #tpu.dot_dimension_numbers<[1], [0], [0], [1], [0, 0, 1, 1], [], []>} : vector<4x144xbf16>, vector<144x4xbf16>, vector<4x4xf32> -> vector<4x4xf32>
    %c0_4 = arith.constant 0 : index
    %c0_5 = arith.constant 0 : index
    %7 = vector.load %arg3[%c0_4, %c0_5] : memref<1x4xf32, #tpu.memory_space<vmem>>, vector<1x4xf32>
    %8 = vector.broadcast %7 : vector<1x4xf32> to vector<4x4xf32>
    %9 = arith.mulf %6, %8 : vector<4x4xf32>
    %c0_6 = arith.constant 0 : index
    %c0_7 = arith.constant 0 : index
    %10 = vector.load %arg4[%c0_6, %c0_7] : memref<1x4xf32, #tpu.memory_space<vmem>>, vector<1x4xf32>
    %11 = vector.broadcast %10 : vector<1x4xf32> to vector<4x4xf32>
    %12 = arith.addf %9, %11 : vector<4x4xf32>
    %cst_8 = arith.constant 0.000000e+00 : f32
    %13 = vector.broadcast %cst_8 : f32 to vector<4x4xf32>
    %14 = arith.maximumf %12, %13 : vector<4x4xf32>
    %15 = arith.truncf %14 : vector<4x4xf32> to vector<4x4xbf16>
    %c0_9 = arith.constant 0 : index
    %c0_10 = arith.constant 0 : index
    %16 = vector.load %arg5[%c0_9, %c0_10] : memref<4x16xbf16, #tpu.memory_space<vmem>>, vector<4x16xbf16>
    %cst_11 = arith.constant dense<0.000000e+00> : vector<4x16xf32>
    %17 = tpu.matmul %15, %16, %cst_11 {dimension_numbers = #tpu.dot_dimension_numbers<[1], [0], [0], [1], [0, 0, 1, 1], [], []>} : vector<4x4xbf16>, vector<4x16xbf16>, vector<4x16xf32> -> vector<4x16xf32>
    %c0_12 = arith.constant 0 : index
    %c0_13 = arith.constant 0 : index
    %18 = vector.load %arg6[%c0_12, %c0_13] : memref<1x16xf32, #tpu.memory_space<vmem>>, vector<1x16xf32>
    %19 = vector.broadcast %18 : vector<1x16xf32> to vector<4x16xf32>
    %20 = arith.mulf %17, %19 : vector<4x16xf32>
    %c0_14 = arith.constant 0 : index
    %c0_15 = arith.constant 0 : index
    %21 = vector.load %arg7[%c0_14, %c0_15] : memref<1x16xf32, #tpu.memory_space<vmem>>, vector<1x16xf32>
    %22 = vector.broadcast %21 : vector<1x16xf32> to vector<4x16xf32>
    %23 = arith.addf %20, %22 : vector<4x16xf32>
    %24 = arith.addf %23, %2 : vector<4x16xf32>
    %25 = arith.truncf %24 : vector<4x16xf32> to vector<4x16xbf16>
    %c0_16 = arith.constant 0 : index
    %c0_17 = arith.constant 0 : index
    %26 = vector.load %arg8[%c0_16, %c0_17] : memref<4x16xbf16, #tpu.memory_space<vmem>>, vector<4x16xbf16>
    tpu.vector_store %arg8[%c0_16, %c0_17], %25 {strides = array<i32>} : memref<4x16xbf16, #tpu.memory_space<vmem>>, vector<4x16xbf16>,
    return
  }
  func.func @transform_0(%arg0: i32) -> (i32, i32) {
    %c0_i32 = arith.constant 0 : i32
    %c0_i32_0 = arith.constant 0 : i32
    return %arg0, %c0_i32 : i32, i32
  }
  func.func @transform_1(%arg0: i32) -> (i32, i32) {
    %c0_i32 = arith.constant 0 : i32
    %c0_i32_0 = arith.constant 0 : i32
    %c0_i32_1 = arith.constant 0 : i32
    return %c0_i32, %c0_i32_0 : i32, i32
  }
  func.func @transform_2(%arg0: i32) -> (i32, i32) {
    %c0_i32 = arith.constant 0 : i32
    %c0_i32_0 = arith.constant 0 : i32
    %c0_i32_1 = arith.constant 0 : i32
    return %c0_i32, %c0_i32_0 : i32, i32
  }
  func.func @transform_3(%arg0: i32) -> (i32, i32) {
    %c0_i32 = arith.constant 0 : i32
    %c0_i32_0 = arith.constant 0 : i32
    %c0_i32_1 = arith.constant 0 : i32
    return %c0_i32, %c0_i32_0 : i32, i32
  }
  func.func @transform_4(%arg0: i32) -> (i32, i32) {
    %c0_i32 = arith.constant 0 : i32
    %c0_i32_0 = arith.constant 0 : i32
    %c0_i32_1 = arith.constant 0 : i32
    return %c0_i32, %c0_i32_0 : i32, i32
  }
  func.func @transform_5(%arg0: i32) -> (i32, i32) {
    %c0_i32 = arith.constant 0 : i32
    %c0_i32_0 = arith.constant 0 : i32
    %c0_i32_1 = arith.constant 0 : i32
    return %c0_i32, %c0_i32_0 : i32, i32
  }
  func.func @transform_6(%arg0: i32) -> (i32, i32) {
    %c0_i32 = arith.constant 0 : i32
    %c0_i32_0 = arith.constant 0 : i32
    %c0_i32_1 = arith.constant 0 : i32
    return %c0_i32, %c0_i32_0 : i32, i32
  }
  func.func @transform_7(%arg0: i32) -> (i32, i32) {
    %c0_i32 = arith.constant 0 : i32
    %c0_i32_0 = arith.constant 0 : i32
    return %arg0, %c0_i32 : i32, i32
  }
}

module attributes {stable_mosaic.version = 11 : i64} {
  func.func @_preq_vq_kernel(%arg0: i32, %arg1: memref<4x16xbf16, #tpu.memory_space<vmem>>, %arg2: memref<16x8xbf16, #tpu.memory_space<vmem>>, %arg3: memref<1x8xf32, #tpu.memory_space<vmem>>, %arg4: memref<16x8xf32, #tpu.memory_space<vmem>>, %arg5: memref<4x8xbf16, #tpu.memory_space<vmem>>, %arg6: memref<1x1x1xf32, #tpu.memory_space<vmem>>) attributes {dimension_semantics = [#tpu.dimension_semantics<parallel>], iteration_bounds = array<i64: 1>, scalar_prefetch = 0 : i64, scratch_operands = 0 : i64, tpu.core_type = #tpu.core_type<tc>, window_params = [{transform_indices = @transform_0, window_bounds = array<i64: 4, 16>}, {pipeline_mode = #tpu.pipeline_mode<synchronous>, transform_indices = @transform_1, window_bounds = array<i64: 16, 8>}, {pipeline_mode = #tpu.pipeline_mode<synchronous>, transform_indices = @transform_2, window_bounds = array<i64: 1, 8>}, {pipeline_mode = #tpu.pipeline_mode<synchronous>, transform_indices = @transform_3, window_bounds = array<i64: 16, 8>}, {transform_indices = @transform_4, window_bounds = array<i64: 4, 8>}, {transform_indices = @transform_5, window_bounds = array<i64: 1, 1, 1>}]} {
    %c0 = arith.constant 0 : index
    %c0_0 = arith.constant 0 : index
    %0 = vector.load %arg1[%c0, %c0_0] : memref<4x16xbf16, #tpu.memory_space<vmem>>, vector<4x16xbf16>
    %c0_1 = arith.constant 0 : index
    %c0_2 = arith.constant 0 : index
    %1 = vector.load %arg2[%c0_1, %c0_2] : memref<16x8xbf16, #tpu.memory_space<vmem>>, vector<16x8xbf16>
    %cst = arith.constant dense<0.000000e+00> : vector<4x8xf32>
    %2 = tpu.matmul %0, %1, %cst {dimension_numbers = #tpu.dot_dimension_numbers<[1], [0], [0], [1], [0, 0, 1, 1], [], []>} : vector<4x16xbf16>, vector<16x8xbf16>, vector<4x8xf32> -> vector<4x8xf32>
    %c0_3 = arith.constant 0 : index
    %c0_4 = arith.constant 0 : index
    %3 = vector.load %arg3[%c0_3, %c0_4] : memref<1x8xf32, #tpu.memory_space<vmem>>, vector<1x8xf32>
    %4 = vector.broadcast %3 : vector<1x8xf32> to vector<4x8xf32>
    %5 = arith.addf %2, %4 : vector<4x8xf32>
    %c0_5 = arith.constant 0 : index
    %c0_6 = arith.constant 0 : index
    %6 = vector.load %arg4[%c0_5, %c0_6] : memref<16x8xf32, #tpu.memory_space<vmem>>, vector<16x8xf32>
    %7 = arith.truncf %5 : vector<4x8xf32> to vector<4x8xbf16>
    %8 = arith.truncf %6 : vector<16x8xf32> to vector<16x8xbf16>
    %cst_7 = arith.constant dense<0.000000e+00> : vector<4x16xf32>
    %9 = tpu.matmul %7, %8, %cst_7 {dimension_numbers = #tpu.dot_dimension_numbers<[1], [1], [0], [0], [0, 0, 1, 0], [], []>} : vector<4x8xbf16>, vector<16x8xbf16>, vector<4x16xf32> -> vector<4x16xf32>
    %10 = arith.mulf %5, %5 : vector<4x8xf32>
    %cst_8 = arith.constant dense<0.000000e+00> : vector<4xf32>
    %11 = vector.multi_reduction <add>, %10, %cst_8 [1] : vector<4x8xf32> to vector<4xf32>
    %12 = vector.shape_cast %11 : vector<4xf32> to vector<4x1xf32>
    %13 = arith.mulf %6, %6 : vector<16x8xf32>
    %cst_9 = arith.constant dense<0.000000e+00> : vector<16xf32>
    %14 = vector.multi_reduction <add>, %13, %cst_9 [1] : vector<16x8xf32> to vector<16xf32>
    %15 = vector.shape_cast %14 : vector<16xf32> to vector<1x16xf32>
    %16 = vector.broadcast %12 : vector<4x1xf32> to vector<4x16xf32>
    %17 = vector.broadcast %15 : vector<1x16xf32> to vector<4x16xf32>
    %18 = arith.addf %16, %17 : vector<4x16xf32>
    %cst_10 = arith.constant 2.000000e+00 : f32
    %19 = vector.broadcast %cst_10 : f32 to vector<4x16xf32>
    %20 = arith.mulf %19, %9 : vector<4x16xf32>
    %21 = arith.subf %18, %20 : vector<4x16xf32>
    %22 = tpu.iota {dimensions = array<i32: 1>} : vector<4x16xi32>
    %cst_11 = arith.constant dense<0x7F800000> : vector<4xf32>
    %23 = vector.multi_reduction <minimumf>, %21, %cst_11 [1] : vector<4x16xf32> to vector<4xf32>
    %24 = vector.shape_cast %23 : vector<4xf32> to vector<4x1xf32>
    %25 = vector.broadcast %24 : vector<4x1xf32> to vector<4x16xf32>
    %26 = arith.cmpf oeq, %21, %25 : vector<4x16xf32>
    %c16_i32 = arith.constant 16 : i32
    %27 = vector.broadcast %c16_i32 : i32 to vector<4x16xi32>
    %28 = arith.select %26, %22, %27 : vector<4x16xi1>, vector<4x16xi32>
    %cst_12 = arith.constant dense<2147483647> : vector<4xi32>
    %29 = vector.multi_reduction <minsi>, %28, %cst_12 [1] : vector<4x16xi32> to vector<4xi32>
    %30 = vector.shape_cast %29 : vector<4xi32> to vector<4x1xi32>
    %31 = vector.broadcast %30 : vector<4x1xi32> to vector<4x16xi32>
    %32 = arith.cmpi eq, %22, %31 : vector<4x16xi32>
    %33 = arith.extui %32 : vector<4x16xi1> to vector<4x16xi32>
    %34 = arith.sitofp %33 : vector<4x16xi32> to vector<4x16xf32>
    %cst_13 = arith.constant dense<0.000000e+00> : vector<4x8xf32>
    %35 = tpu.matmul %34, %6, %cst_13 {dimension_numbers = #tpu.dot_dimension_numbers<[1], [0], [0], [1], [0, 0, 1, 1], [], []>} : vector<4x16xf32>, vector<16x8xf32>, vector<4x8xf32> -> vector<4x8xf32>
    %36 = arith.truncf %35 : vector<4x8xf32> to vector<4x8xbf16>
    %c0_14 = arith.constant 0 : index
    %c0_15 = arith.constant 0 : index
    %37 = vector.load %arg5[%c0_14, %c0_15] : memref<4x8xbf16, #tpu.memory_space<vmem>>, vector<4x8xbf16>
    tpu.vector_store %arg5[%c0_14, %c0_15], %36 {strides = array<i32>} : memref<4x8xbf16, #tpu.memory_space<vmem>>, vector<4x8xbf16>,
    %38 = tpu.iota {dimensions = array<i32: 0>} : vector<4x1xi32>
    %c4_i32 = arith.constant 4 : i32
    %39 = arith.muli %arg0, %c4_i32 : i32
    %40 = vector.broadcast %39 : i32 to vector<4x1xi32>
    %41 = arith.addi %38, %40 : vector<4x1xi32>
    %c4_i32_16 = arith.constant 4 : i32
    %42 = vector.broadcast %c4_i32_16 : i32 to vector<4x1xi32>
    %43 = arith.cmpi slt, %41, %42 : vector<4x1xi32>
    %44 = arith.subf %35, %5 : vector<4x8xf32>
    %cst_17 = arith.constant 0.000000e+00 : f32
    %45 = vector.shape_cast %43 : vector<4x1xi1> to vector<4x1xi1>
    %46 = vector.broadcast %45 : vector<4x1xi1> to vector<4x8xi1>
    %47 = vector.broadcast %cst_17 : f32 to vector<4x8xf32>
    %48 = arith.select %46, %44, %47 : vector<4x8xi1>, vector<4x8xf32>
    %49 = arith.mulf %48, %48 : vector<4x8xf32>
    %50 = vector.shape_cast %49 : vector<4x8xf32> to vector<1x4x8xf32>
    %cst_18 = arith.constant dense<0.000000e+00> : vector<1xf32>
    %51 = vector.multi_reduction <add>, %50, %cst_18 [1, 2] : vector<1x4x8xf32> to vector<1xf32>
    %52 = vector.shape_cast %51 : vector<1xf32> to vector<1x1x1xf32>
    %53 = vector.extract %52[0, 0, 0] : f32 from vector<1x1x1xf32>
    %54 = vector.broadcast %53 : f32 to vector<1x1x1xf32>
    %c0_19 = arith.constant 0 : index
    %c0_20 = arith.constant 0 : index
    %c0_21 = arith.constant 0 : index
    %55 = vector.load %arg6[%c0_19, %c0_20, %c0_21] : memref<1x1x1xf32, #tpu.memory_space<vmem>>, vector<1x1x1xf32>
    tpu.vector_store %arg6[%c0_19, %c0_20, %c0_21], %54 {strides = array<i32>} : memref<1x1x1xf32, #tpu.memory_space<vmem>>, vector<1x1x1xf32>,
    return
  }
  func.func @transform_0(%arg0: i32) -> (i32, i32) {
    %c0_i32 = arith.constant 0 : i32
    %c0_i32_0 = arith.constant 0 : i32
    return %arg0, %c0_i32 : i32, i32
  }
  func.func @transform_1(%arg0: i32) -> (i32, i32) {
    %c0_i32 = arith.constant 0 : i32
    %c0_i32_0 = arith.constant 0 : i32
    %c0_i32_1 = arith.constant 0 : i32
    return %c0_i32, %c0_i32_0 : i32, i32
  }
  func.func @transform_2(%arg0: i32) -> (i32, i32) {
    %c0_i32 = arith.constant 0 : i32
    %c0_i32_0 = arith.constant 0 : i32
    %c0_i32_1 = arith.constant 0 : i32
    return %c0_i32, %c0_i32_0 : i32, i32
  }
  func.func @transform_3(%arg0: i32) -> (i32, i32) {
    %c0_i32 = arith.constant 0 : i32
    %c0_i32_0 = arith.constant 0 : i32
    %c0_i32_1 = arith.constant 0 : i32
    return %c0_i32, %c0_i32_0 : i32, i32
  }
  func.func @transform_4(%arg0: i32) -> (i32, i32) {
    %c0_i32 = arith.constant 0 : i32
    %c0_i32_0 = arith.constant 0 : i32
    return %arg0, %c0_i32 : i32, i32
  }
  func.func @transform_5(%arg0: i32) -> (i32, i32, i32) {
    %c0_i32 = arith.constant 0 : i32
    %c0_i32_0 = arith.constant 0 : i32
    %c0_i32_1 = arith.constant 0 : i32
    return %arg0, %c0_i32, %c0_i32_0 : i32, i32, i32
  }
}

module attributes {stable_mosaic.version = 11 : i64} {
  func.func @_matmul_kernel(%arg0: i32, %arg1: memref<4x144xbf16, #tpu.memory_space<vmem>>, %arg2: memref<144x32xbf16, #tpu.memory_space<vmem>>, %arg3: memref<1x32xf32, #tpu.memory_space<vmem>>, %arg4: memref<1x32xf32, #tpu.memory_space<vmem>>, %arg5: memref<4x32xbf16, #tpu.memory_space<vmem>>) attributes {dimension_semantics = [#tpu.dimension_semantics<parallel>], iteration_bounds = array<i64: 1>, scalar_prefetch = 0 : i64, scratch_operands = 0 : i64, tpu.core_type = #tpu.core_type<tc>, window_params = [{transform_indices = @transform_0, window_bounds = array<i64: 4, 144>}, {pipeline_mode = #tpu.pipeline_mode<synchronous>, transform_indices = @transform_1, window_bounds = array<i64: 144, 32>}, {pipeline_mode = #tpu.pipeline_mode<synchronous>, transform_indices = @transform_2, window_bounds = array<i64: 1, 32>}, {pipeline_mode = #tpu.pipeline_mode<synchronous>, transform_indices = @transform_3, window_bounds = array<i64: 1, 32>}, {transform_indices = @transform_4, window_bounds = array<i64: 4, 32>}]} {
    %c0 = arith.constant 0 : index
    %c0_0 = arith.constant 0 : index
    %0 = vector.load %arg1[%c0, %c0_0] : memref<4x144xbf16, #tpu.memory_space<vmem>>, vector<4x144xbf16>
    %c0_1 = arith.constant 0 : index
    %c0_2 = arith.constant 0 : index
    %1 = vector.load %arg2[%c0_1, %c0_2] : memref<144x32xbf16, #tpu.memory_space<vmem>>, vector<144x32xbf16>
    %cst = arith.constant dense<0.000000e+00> : vector<4x32xf32>
    %2 = tpu.matmul %0, %1, %cst {dimension_numbers = #tpu.dot_dimension_numbers<[1], [0], [0], [1], [0, 0, 1, 1], [], []>} : vector<4x144xbf16>, vector<144x32xbf16>, vector<4x32xf32> -> vector<4x32xf32>
    %c0_3 = arith.constant 0 : index
    %c0_4 = arith.constant 0 : index
    %3 = vector.load %arg3[%c0_3, %c0_4] : memref<1x32xf32, #tpu.memory_space<vmem>>, vector<1x32xf32>
    %4 = vector.broadcast %3 : vector<1x32xf32> to vector<4x32xf32>
    %5 = arith.mulf %2, %4 : vector<4x32xf32>
    %c0_5 = arith.constant 0 : index
    %c0_6 = arith.constant 0 : index
    %6 = vector.load %arg4[%c0_5, %c0_6] : memref<1x32xf32, #tpu.memory_space<vmem>>, vector<1x32xf32>
    %7 = vector.broadcast %6 : vector<1x32xf32> to vector<4x32xf32>
    %8 = arith.addf %5, %7 : vector<4x32xf32>
    %9 = arith.truncf %8 : vector<4x32xf32> to vector<4x32xbf16>
    %c0_7 = arith.constant 0 : index
    %c0_8 = arith.constant 0 : index
    %10 = vector.load %arg5[%c0_7, %c0_8] : memref<4x32xbf16, #tpu.memory_space<vmem>>, vector<4x32xbf16>
    tpu.vector_store %arg5[%c0_7, %c0_8], %9 {strides = array<i32>} : memref<4x32xbf16, #tpu.memory_space<vmem>>, vector<4x32xbf16>,
    return
  }
  func.func @transform_0(%arg0: i32) -> (i32, i32) {
    %c0_i32 = arith.constant 0 : i32
    %c0_i32_0 = arith.constant 0 : i32
    return %arg0, %c0_i32 : i32, i32
  }
  func.func @transform_1(%arg0: i32) -> (i32, i32) {
    %c0_i32 = arith.constant 0 : i32
    %c0_i32_0 = arith.constant 0 : i32
    %c0_i32_1 = arith.constant 0 : i32
    return %c0_i32, %c0_i32_0 : i32, i32
  }
  func.func @transform_2(%arg0: i32) -> (i32, i32) {
    %c0_i32 = arith.constant 0 : i32
    %c0_i32_0 = arith.constant 0 : i32
    %c0_i32_1 = arith.constant 0 : i32
    return %c0_i32, %c0_i32_0 : i32, i32
  }
  func.func @transform_3(%arg0: i32) -> (i32, i32) {
    %c0_i32 = arith.constant 0 : i32
    %c0_i32_0 = arith.constant 0 : i32
    %c0_i32_1 = arith.constant 0 : i32
    return %c0_i32, %c0_i32_0 : i32, i32
  }
  func.func @transform_4(%arg0: i32) -> (i32, i32) {
    %c0_i32 = arith.constant 0 : i32
    %c0_i32_0 = arith.constant 0 : i32
    return %arg0, %c0_i32 : i32, i32
  }
}

module attributes {stable_mosaic.version = 11 : i64} {
  func.func @_matmul_kernel(%arg0: i32, %arg1: memref<4x72xbf16, #tpu.memory_space<vmem>>, %arg2: memref<72x32xbf16, #tpu.memory_space<vmem>>, %arg3: memref<1x32xf32, #tpu.memory_space<vmem>>, %arg4: memref<1x32xf32, #tpu.memory_space<vmem>>, %arg5: memref<4x32xbf16, #tpu.memory_space<vmem>>) attributes {dimension_semantics = [#tpu.dimension_semantics<parallel>], iteration_bounds = array<i64: 1>, scalar_prefetch = 0 : i64, scratch_operands = 0 : i64, tpu.core_type = #tpu.core_type<tc>, window_params = [{transform_indices = @transform_0, window_bounds = array<i64: 4, 72>}, {pipeline_mode = #tpu.pipeline_mode<synchronous>, transform_indices = @transform_1, window_bounds = array<i64: 72, 32>}, {pipeline_mode = #tpu.pipeline_mode<synchronous>, transform_indices = @transform_2, window_bounds = array<i64: 1, 32>}, {pipeline_mode = #tpu.pipeline_mode<synchronous>, transform_indices = @transform_3, window_bounds = array<i64: 1, 32>}, {transform_indices = @transform_4, window_bounds = array<i64: 4, 32>}]} {
    %c0 = arith.constant 0 : index
    %c0_0 = arith.constant 0 : index
    %0 = vector.load %arg1[%c0, %c0_0] : memref<4x72xbf16, #tpu.memory_space<vmem>>, vector<4x72xbf16>
    %c0_1 = arith.constant 0 : index
    %c0_2 = arith.constant 0 : index
    %1 = vector.load %arg2[%c0_1, %c0_2] : memref<72x32xbf16, #tpu.memory_space<vmem>>, vector<72x32xbf16>
    %cst = arith.constant dense<0.000000e+00> : vector<4x32xf32>
    %2 = tpu.matmul %0, %1, %cst {dimension_numbers = #tpu.dot_dimension_numbers<[1], [0], [0], [1], [0, 0, 1, 1], [], []>} : vector<4x72xbf16>, vector<72x32xbf16>, vector<4x32xf32> -> vector<4x32xf32>
    %c0_3 = arith.constant 0 : index
    %c0_4 = arith.constant 0 : index
    %3 = vector.load %arg3[%c0_3, %c0_4] : memref<1x32xf32, #tpu.memory_space<vmem>>, vector<1x32xf32>
    %4 = vector.broadcast %3 : vector<1x32xf32> to vector<4x32xf32>
    %5 = arith.mulf %2, %4 : vector<4x32xf32>
    %c0_5 = arith.constant 0 : index
    %c0_6 = arith.constant 0 : index
    %6 = vector.load %arg4[%c0_5, %c0_6] : memref<1x32xf32, #tpu.memory_space<vmem>>, vector<1x32xf32>
    %7 = vector.broadcast %6 : vector<1x32xf32> to vector<4x32xf32>
    %8 = arith.addf %5, %7 : vector<4x32xf32>
    %9 = arith.truncf %8 : vector<4x32xf32> to vector<4x32xbf16>
    %c0_7 = arith.constant 0 : index
    %c0_8 = arith.constant 0 : index
    %10 = vector.load %arg5[%c0_7, %c0_8] : memref<4x32xbf16, #tpu.memory_space<vmem>>, vector<4x32xbf16>
    tpu.vector_store %arg5[%c0_7, %c0_8], %9 {strides = array<i32>} : memref<4x32xbf16, #tpu.memory_space<vmem>>, vector<4x32xbf16>,
    return
  }
  func.func @transform_0(%arg0: i32) -> (i32, i32) {
    %c0_i32 = arith.constant 0 : i32
    %c0_i32_0 = arith.constant 0 : i32
    return %arg0, %c0_i32 : i32, i32
  }
  func.func @transform_1(%arg0: i32) -> (i32, i32) {
    %c0_i32 = arith.constant 0 : i32
    %c0_i32_0 = arith.constant 0 : i32
    %c0_i32_1 = arith.constant 0 : i32
    return %c0_i32, %c0_i32_0 : i32, i32
  }
  func.func @transform_2(%arg0: i32) -> (i32, i32) {
    %c0_i32 = arith.constant 0 : i32
    %c0_i32_0 = arith.constant 0 : i32
    %c0_i32_1 = arith.constant 0 : i32
    return %c0_i32, %c0_i32_0 : i32, i32
  }
  func.func @transform_3(%arg0: i32) -> (i32, i32) {
    %c0_i32 = arith.constant 0 : i32
    %c0_i32_0 = arith.constant 0 : i32
    %c0_i32_1 = arith.constant 0 : i32
    return %c0_i32, %c0_i32_0 : i32, i32
  }
  func.func @transform_4(%arg0: i32) -> (i32, i32) {
    %c0_i32 = arith.constant 0 : i32
    %c0_i32_0 = arith.constant 0 : i32
    return %arg0, %c0_i32 : i32, i32
  }
}

module attributes {stable_mosaic.version = 11 : i64} {
  func.func @_matmul_kernel(%arg0: i32, %arg1: memref<16x144xbf16, #tpu.memory_space<vmem>>, %arg2: memref<144x32xbf16, #tpu.memory_space<vmem>>, %arg3: memref<1x32xf32, #tpu.memory_space<vmem>>, %arg4: memref<1x32xf32, #tpu.memory_space<vmem>>, %arg5: memref<16x32xbf16, #tpu.memory_space<vmem>>) attributes {dimension_semantics = [#tpu.dimension_semantics<parallel>], iteration_bounds = array<i64: 1>, scalar_prefetch = 0 : i64, scratch_operands = 0 : i64, tpu.core_type = #tpu.core_type<tc>, window_params = [{transform_indices = @transform_0, window_bounds = array<i64: 16, 144>}, {pipeline_mode = #tpu.pipeline_mode<synchronous>, transform_indices = @transform_1, window_bounds = array<i64: 144, 32>}, {pipeline_mode = #tpu.pipeline_mode<synchronous>, transform_indices = @transform_2, window_bounds = array<i64: 1, 32>}, {pipeline_mode = #tpu.pipeline_mode<synchronous>, transform_indices = @transform_3, window_bounds = array<i64: 1, 32>}, {transform_indices = @transform_4, window_bounds = array<i64: 16, 32>}]} {
    %c0 = arith.constant 0 : index
    %c0_0 = arith.constant 0 : index
    %0 = vector.load %arg1[%c0, %c0_0] : memref<16x144xbf16, #tpu.memory_space<vmem>>, vector<16x144xbf16>
    %c0_1 = arith.constant 0 : index
    %c0_2 = arith.constant 0 : index
    %1 = vector.load %arg2[%c0_1, %c0_2] : memref<144x32xbf16, #tpu.memory_space<vmem>>, vector<144x32xbf16>
    %cst = arith.constant dense<0.000000e+00> : vector<16x32xf32>
    %2 = tpu.matmul %0, %1, %cst {dimension_numbers = #tpu.dot_dimension_numbers<[1], [0], [0], [1], [0, 0, 1, 1], [], []>} : vector<16x144xbf16>, vector<144x32xbf16>, vector<16x32xf32> -> vector<16x32xf32>
    %c0_3 = arith.constant 0 : index
    %c0_4 = arith.constant 0 : index
    %3 = vector.load %arg3[%c0_3, %c0_4] : memref<1x32xf32, #tpu.memory_space<vmem>>, vector<1x32xf32>
    %4 = vector.broadcast %3 : vector<1x32xf32> to vector<16x32xf32>
    %5 = arith.mulf %2, %4 : vector<16x32xf32>
    %c0_5 = arith.constant 0 : index
    %c0_6 = arith.constant 0 : index
    %6 = vector.load %arg4[%c0_5, %c0_6] : memref<1x32xf32, #tpu.memory_space<vmem>>, vector<1x32xf32>
    %7 = vector.broadcast %6 : vector<1x32xf32> to vector<16x32xf32>
    %8 = arith.addf %5, %7 : vector<16x32xf32>
    %cst_7 = arith.constant 0.000000e+00 : f32
    %9 = vector.broadcast %cst_7 : f32 to vector<16x32xf32>
    %10 = arith.maximumf %8, %9 : vector<16x32xf32>
    %11 = arith.truncf %10 : vector<16x32xf32> to vector<16x32xbf16>
    %c0_8 = arith.constant 0 : index
    %c0_9 = arith.constant 0 : index
    %12 = vector.load %arg5[%c0_8, %c0_9] : memref<16x32xbf16, #tpu.memory_space<vmem>>, vector<16x32xbf16>
    tpu.vector_store %arg5[%c0_8, %c0_9], %11 {strides = array<i32>} : memref<16x32xbf16, #tpu.memory_space<vmem>>, vector<16x32xbf16>,
    return
  }
  func.func @transform_0(%arg0: i32) -> (i32, i32) {
    %c0_i32 = arith.constant 0 : i32
    %c0_i32_0 = arith.constant 0 : i32
    return %arg0, %c0_i32 : i32, i32
  }
  func.func @transform_1(%arg0: i32) -> (i32, i32) {
    %c0_i32 = arith.constant 0 : i32
    %c0_i32_0 = arith.constant 0 : i32
    %c0_i32_1 = arith.constant 0 : i32
    return %c0_i32, %c0_i32_0 : i32, i32
  }
  func.func @transform_2(%arg0: i32) -> (i32, i32) {
    %c0_i32 = arith.constant 0 : i32
    %c0_i32_0 = arith.constant 0 : i32
    %c0_i32_1 = arith.constant 0 : i32
    return %c0_i32, %c0_i32_0 : i32, i32
  }
  func.func @transform_3(%arg0: i32) -> (i32, i32) {
    %c0_i32 = arith.constant 0 : i32
    %c0_i32_0 = arith.constant 0 : i32
    %c0_i32_1 = arith.constant 0 : i32
    return %c0_i32, %c0_i32_0 : i32, i32
  }
  func.func @transform_4(%arg0: i32) -> (i32, i32) {
    %c0_i32 = arith.constant 0 : i32
    %c0_i32_0 = arith.constant 0 : i32
    return %arg0, %c0_i32 : i32, i32
  }
}

module attributes {stable_mosaic.version = 11 : i64} {
  func.func @_preq_vq_kernel(%arg0: i32, %arg1: memref<16x24xbf16, #tpu.memory_space<vmem>>, %arg2: memref<24x8xbf16, #tpu.memory_space<vmem>>, %arg3: memref<1x8xf32, #tpu.memory_space<vmem>>, %arg4: memref<16x8xf32, #tpu.memory_space<vmem>>, %arg5: memref<16x8xbf16, #tpu.memory_space<vmem>>, %arg6: memref<1x1x1xf32, #tpu.memory_space<vmem>>) attributes {dimension_semantics = [#tpu.dimension_semantics<parallel>], iteration_bounds = array<i64: 1>, scalar_prefetch = 0 : i64, scratch_operands = 0 : i64, tpu.core_type = #tpu.core_type<tc>, window_params = [{transform_indices = @transform_0, window_bounds = array<i64: 16, 24>}, {pipeline_mode = #tpu.pipeline_mode<synchronous>, transform_indices = @transform_1, window_bounds = array<i64: 24, 8>}, {pipeline_mode = #tpu.pipeline_mode<synchronous>, transform_indices = @transform_2, window_bounds = array<i64: 1, 8>}, {pipeline_mode = #tpu.pipeline_mode<synchronous>, transform_indices = @transform_3, window_bounds = array<i64: 16, 8>}, {transform_indices = @transform_4, window_bounds = array<i64: 16, 8>}, {transform_indices = @transform_5, window_bounds = array<i64: 1, 1, 1>}]} {
    %c0 = arith.constant 0 : index
    %c0_0 = arith.constant 0 : index
    %0 = vector.load %arg1[%c0, %c0_0] : memref<16x24xbf16, #tpu.memory_space<vmem>>, vector<16x24xbf16>
    %c0_1 = arith.constant 0 : index
    %c0_2 = arith.constant 0 : index
    %1 = vector.load %arg2[%c0_1, %c0_2] : memref<24x8xbf16, #tpu.memory_space<vmem>>, vector<24x8xbf16>
    %cst = arith.constant dense<0.000000e+00> : vector<16x8xf32>
    %2 = tpu.matmul %0, %1, %cst {dimension_numbers = #tpu.dot_dimension_numbers<[1], [0], [0], [1], [0, 0, 1, 1], [], []>} : vector<16x24xbf16>, vector<24x8xbf16>, vector<16x8xf32> -> vector<16x8xf32>
    %c0_3 = arith.constant 0 : index
    %c0_4 = arith.constant 0 : index
    %3 = vector.load %arg3[%c0_3, %c0_4] : memref<1x8xf32, #tpu.memory_space<vmem>>, vector<1x8xf32>
    %4 = vector.broadcast %3 : vector<1x8xf32> to vector<16x8xf32>
    %5 = arith.addf %2, %4 : vector<16x8xf32>
    %c0_5 = arith.constant 0 : index
    %c0_6 = arith.constant 0 : index
    %6 = vector.load %arg4[%c0_5, %c0_6] : memref<16x8xf32, #tpu.memory_space<vmem>>, vector<16x8xf32>
    %7 = arith.truncf %5 : vector<16x8xf32> to vector<16x8xbf16>
    %8 = arith.truncf %6 : vector<16x8xf32> to vector<16x8xbf16>
    %cst_7 = arith.constant dense<0.000000e+00> : vector<16x16xf32>
    %9 = tpu.matmul %7, %8, %cst_7 {dimension_numbers = #tpu.dot_dimension_numbers<[1], [1], [0], [0], [0, 0, 1, 0], [], []>} : vector<16x8xbf16>, vector<16x8xbf16>, vector<16x16xf32> -> vector<16x16xf32>
    %10 = arith.mulf %5, %5 : vector<16x8xf32>
    %cst_8 = arith.constant dense<0.000000e+00> : vector<16xf32>
    %11 = vector.multi_reduction <add>, %10, %cst_8 [1] : vector<16x8xf32> to vector<16xf32>
    %12 = vector.shape_cast %11 : vector<16xf32> to vector<16x1xf32>
    %13 = arith.mulf %6, %6 : vector<16x8xf32>
    %cst_9 = arith.constant dense<0.000000e+00> : vector<16xf32>
    %14 = vector.multi_reduction <add>, %13, %cst_9 [1] : vector<16x8xf32> to vector<16xf32>
    %15 = vector.shape_cast %14 : vector<16xf32> to vector<1x16xf32>
    %16 = vector.broadcast %12 : vector<16x1xf32> to vector<16x16xf32>
    %17 = vector.broadcast %15 : vector<1x16xf32> to vector<16x16xf32>
    %18 = arith.addf %16, %17 : vector<16x16xf32>
    %cst_10 = arith.constant 2.000000e+00 : f32
    %19 = vector.broadcast %cst_10 : f32 to vector<16x16xf32>
    %20 = arith.mulf %19, %9 : vector<16x16xf32>
    %21 = arith.subf %18, %20 : vector<16x16xf32>
    %22 = tpu.iota {dimensions = array<i32: 1>} : vector<16x16xi32>
    %cst_11 = arith.constant dense<0x7F800000> : vector<16xf32>
    %23 = vector.multi_reduction <minimumf>, %21, %cst_11 [1] : vector<16x16xf32> to vector<16xf32>
    %24 = vector.shape_cast %23 : vector<16xf32> to vector<16x1xf32>
    %25 = vector.broadcast %24 : vector<16x1xf32> to vector<16x16xf32>
    %26 = arith.cmpf oeq, %21, %25 : vector<16x16xf32>
    %c16_i32 = arith.constant 16 : i32
    %27 = vector.broadcast %c16_i32 : i32 to vector<16x16xi32>
    %28 = arith.select %26, %22, %27 : vector<16x16xi1>, vector<16x16xi32>
    %cst_12 = arith.constant dense<2147483647> : vector<16xi32>
    %29 = vector.multi_reduction <minsi>, %28, %cst_12 [1] : vector<16x16xi32> to vector<16xi32>
    %30 = vector.shape_cast %29 : vector<16xi32> to vector<16x1xi32>
    %31 = vector.broadcast %30 : vector<16x1xi32> to vector<16x16xi32>
    %32 = arith.cmpi eq, %22, %31 : vector<16x16xi32>
    %33 = arith.extui %32 : vector<16x16xi1> to vector<16x16xi32>
    %34 = arith.sitofp %33 : vector<16x16xi32> to vector<16x16xf32>
    %cst_13 = arith.constant dense<0.000000e+00> : vector<16x8xf32>
    %35 = tpu.matmul %34, %6, %cst_13 {dimension_numbers = #tpu.dot_dimension_numbers<[1], [0], [0], [1], [0, 0, 1, 1], [], []>} : vector<16x16xf32>, vector<16x8xf32>, vector<16x8xf32> -> vector<16x8xf32>
    %36 = arith.truncf %35 : vector<16x8xf32> to vector<16x8xbf16>
    %c0_14 = arith.constant 0 : index
    %c0_15 = arith.constant 0 : index
    %37 = vector.load %arg5[%c0_14, %c0_15] : memref<16x8xbf16, #tpu.memory_space<vmem>>, vector<16x8xbf16>
    tpu.vector_store %arg5[%c0_14, %c0_15], %36 {strides = array<i32>} : memref<16x8xbf16, #tpu.memory_space<vmem>>, vector<16x8xbf16>,
    %38 = tpu.iota {dimensions = array<i32: 0>} : vector<16x1xi32>
    %c16_i32_16 = arith.constant 16 : i32
    %39 = arith.muli %arg0, %c16_i32_16 : i32
    %40 = vector.broadcast %39 : i32 to vector<16x1xi32>
    %41 = arith.addi %38, %40 : vector<16x1xi32>
    %c16_i32_17 = arith.constant 16 : i32
    %42 = vector.broadcast %c16_i32_17 : i32 to vector<16x1xi32>
    %43 = arith.cmpi slt, %41, %42 : vector<16x1xi32>
    %44 = arith.subf %35, %5 : vector<16x8xf32>
    %cst_18 = arith.constant 0.000000e+00 : f32
    %45 = vector.shape_cast %43 : vector<16x1xi1> to vector<16x1xi1>
    %46 = vector.broadcast %45 : vector<16x1xi1> to vector<16x8xi1>
    %47 = vector.broadcast %cst_18 : f32 to vector<16x8xf32>
    %48 = arith.select %46, %44, %47 : vector<16x8xi1>, vector<16x8xf32>
    %49 = arith.mulf %48, %48 : vector<16x8xf32>
    %50 = vector.shape_cast %49 : vector<16x8xf32> to vector<1x16x8xf32>
    %cst_19 = arith.constant dense<0.000000e+00> : vector<1xf32>
    %51 = vector.multi_reduction <add>, %50, %cst_19 [1, 2] : vector<1x16x8xf32> to vector<1xf32>
    %52 = vector.shape_cast %51 : vector<1xf32> to vector<1x1x1xf32>
    %53 = vector.extract %52[0, 0, 0] : f32 from vector<1x1x1xf32>
    %54 = vector.broadcast %53 : f32 to vector<1x1x1xf32>
    %c0_20 = arith.constant 0 : index
    %c0_21 = arith.constant 0 : index
    %c0_22 = arith.constant 0 : index
    %55 = vector.load %arg6[%c0_20, %c0_21, %c0_22] : memref<1x1x1xf32, #tpu.memory_space<vmem>>, vector<1x1x1xf32>
    tpu.vector_store %arg6[%c0_20, %c0_21, %c0_22], %54 {strides = array<i32>} : memref<1x1x1xf32, #tpu.memory_space<vmem>>, vector<1x1x1xf32>,
    return
  }
  func.func @transform_0(%arg0: i32) -> (i32, i32) {
    %c0_i32 = arith.constant 0 : i32
    %c0_i32_0 = arith.constant 0 : i32
    return %arg0, %c0_i32 : i32, i32
  }
  func.func @transform_1(%arg0: i32) -> (i32, i32) {
    %c0_i32 = arith.constant 0 : i32
    %c0_i32_0 = arith.constant 0 : i32
    %c0_i32_1 = arith.constant 0 : i32
    return %c0_i32, %c0_i32_0 : i32, i32
  }
  func.func @transform_2(%arg0: i32) -> (i32, i32) {
    %c0_i32 = arith.constant 0 : i32
    %c0_i32_0 = arith.constant 0 : i32
    %c0_i32_1 = arith.constant 0 : i32
    return %c0_i32, %c0_i32_0 : i32, i32
  }
  func.func @transform_3(%arg0: i32) -> (i32, i32) {
    %c0_i32 = arith.constant 0 : i32
    %c0_i32_0 = arith.constant 0 : i32
    %c0_i32_1 = arith.constant 0 : i32
    return %c0_i32, %c0_i32_0 : i32, i32
  }
  func.func @transform_4(%arg0: i32) -> (i32, i32) {
    %c0_i32 = arith.constant 0 : i32
    %c0_i32_0 = arith.constant 0 : i32
    return %arg0, %c0_i32 : i32, i32
  }
  func.func @transform_5(%arg0: i32) -> (i32, i32, i32) {
    %c0_i32 = arith.constant 0 : i32
    %c0_i32_0 = arith.constant 0 : i32
    %c0_i32_1 = arith.constant 0 : i32
    return %arg0, %c0_i32, %c0_i32_0 : i32, i32, i32
  }
}

module attributes {stable_mosaic.version = 11 : i64} {
  func.func @_matmul_kernel(%arg0: i32, %arg1: memref<64x72xbf16, #tpu.memory_space<vmem>>, %arg2: memref<72x4xbf16, #tpu.memory_space<vmem>>, %arg3: memref<1x4xf32, #tpu.memory_space<vmem>>, %arg4: memref<1x4xf32, #tpu.memory_space<vmem>>, %arg5: memref<64x4xbf16, #tpu.memory_space<vmem>>) attributes {dimension_semantics = [#tpu.dimension_semantics<parallel>], iteration_bounds = array<i64: 1>, scalar_prefetch = 0 : i64, scratch_operands = 0 : i64, tpu.core_type = #tpu.core_type<tc>, window_params = [{transform_indices = @transform_0, window_bounds = array<i64: 64, 72>}, {pipeline_mode = #tpu.pipeline_mode<synchronous>, transform_indices = @transform_1, window_bounds = array<i64: 72, 4>}, {pipeline_mode = #tpu.pipeline_mode<synchronous>, transform_indices = @transform_2, window_bounds = array<i64: 1, 4>}, {pipeline_mode = #tpu.pipeline_mode<synchronous>, transform_indices = @transform_3, window_bounds = array<i64: 1, 4>}, {transform_indices = @transform_4, window_bounds = array<i64: 64, 4>}]} {
    %c0 = arith.constant 0 : index
    %c0_0 = arith.constant 0 : index
    %0 = vector.load %arg1[%c0, %c0_0] : memref<64x72xbf16, #tpu.memory_space<vmem>>, vector<64x72xbf16>
    %c0_1 = arith.constant 0 : index
    %c0_2 = arith.constant 0 : index
    %1 = vector.load %arg2[%c0_1, %c0_2] : memref<72x4xbf16, #tpu.memory_space<vmem>>, vector<72x4xbf16>
    %cst = arith.constant dense<0.000000e+00> : vector<64x4xf32>
    %2 = tpu.matmul %0, %1, %cst {dimension_numbers = #tpu.dot_dimension_numbers<[1], [0], [0], [1], [0, 0, 1, 1], [], []>} : vector<64x72xbf16>, vector<72x4xbf16>, vector<64x4xf32> -> vector<64x4xf32>
    %c0_3 = arith.constant 0 : index
    %c0_4 = arith.constant 0 : index
    %3 = vector.load %arg3[%c0_3, %c0_4] : memref<1x4xf32, #tpu.memory_space<vmem>>, vector<1x4xf32>
    %4 = vector.broadcast %3 : vector<1x4xf32> to vector<64x4xf32>
    %5 = arith.mulf %2, %4 : vector<64x4xf32>
    %c0_5 = arith.constant 0 : index
    %c0_6 = arith.constant 0 : index
    %6 = vector.load %arg4[%c0_5, %c0_6] : memref<1x4xf32, #tpu.memory_space<vmem>>, vector<1x4xf32>
    %7 = vector.broadcast %6 : vector<1x4xf32> to vector<64x4xf32>
    %8 = arith.addf %5, %7 : vector<64x4xf32>
    %cst_7 = arith.constant 0.000000e+00 : f32
    %9 = vector.broadcast %cst_7 : f32 to vector<64x4xf32>
    %10 = arith.maximumf %8, %9 : vector<64x4xf32>
    %11 = arith.truncf %10 : vector<64x4xf32> to vector<64x4xbf16>
    %c0_8 = arith.constant 0 : index
    %c0_9 = arith.constant 0 : index
    %12 = vector.load %arg5[%c0_8, %c0_9] : memref<64x4xbf16, #tpu.memory_space<vmem>>, vector<64x4xbf16>
    tpu.vector_store %arg5[%c0_8, %c0_9], %11 {strides = array<i32>} : memref<64x4xbf16, #tpu.memory_space<vmem>>, vector<64x4xbf16>,
    return
  }
  func.func @transform_0(%arg0: i32) -> (i32, i32) {
    %c0_i32 = arith.constant 0 : i32
    %c0_i32_0 = arith.constant 0 : i32
    return %arg0, %c0_i32 : i32, i32
  }
  func.func @transform_1(%arg0: i32) -> (i32, i32) {
    %c0_i32 = arith.constant 0 : i32
    %c0_i32_0 = arith.constant 0 : i32
    %c0_i32_1 = arith.constant 0 : i32
    return %c0_i32, %c0_i32_0 : i32, i32
  }
  func.func @transform_2(%arg0: i32) -> (i32, i32) {
    %c0_i32 = arith.constant 0 : i32
    %c0_i32_0 = arith.constant 0 : i32
    %c0_i32_1 = arith.constant 0 : i32
    return %c0_i32, %c0_i32_0 : i32, i32
  }
  func.func @transform_3(%arg0: i32) -> (i32, i32) {
    %c0_i32 = arith.constant 0 : i32
    %c0_i32_0 = arith.constant 0 : i32
    %c0_i32_1 = arith.constant 0 : i32
    return %c0_i32, %c0_i32_0 : i32, i32
  }
  func.func @transform_4(%arg0: i32) -> (i32, i32) {
    %c0_i32 = arith.constant 0 : i32
    %c0_i32_0 = arith.constant 0 : i32
    return %arg0, %c0_i32 : i32, i32
  }
}

module attributes {stable_mosaic.version = 11 : i64} {
  func.func @_matmul_kernel(%arg0: i32, %arg1: memref<256x128xbf16, #tpu.memory_space<vmem>>, %arg2: memref<128x8xbf16, #tpu.memory_space<vmem>>, %arg3: memref<1x8xf32, #tpu.memory_space<vmem>>, %arg4: memref<1x8xf32, #tpu.memory_space<vmem>>, %arg5: memref<256x8xf32, #tpu.memory_space<vmem>>) attributes {dimension_semantics = [#tpu.dimension_semantics<parallel>], iteration_bounds = array<i64: 1>, scalar_prefetch = 0 : i64, scratch_operands = 0 : i64, tpu.core_type = #tpu.core_type<tc>, window_params = [{transform_indices = @transform_0, window_bounds = array<i64: 256, 128>}, {pipeline_mode = #tpu.pipeline_mode<synchronous>, transform_indices = @transform_1, window_bounds = array<i64: 128, 8>}, {pipeline_mode = #tpu.pipeline_mode<synchronous>, transform_indices = @transform_2, window_bounds = array<i64: 1, 8>}, {pipeline_mode = #tpu.pipeline_mode<synchronous>, transform_indices = @transform_3, window_bounds = array<i64: 1, 8>}, {transform_indices = @transform_4, window_bounds = array<i64: 256, 8>}]} {
    %c0 = arith.constant 0 : index
    %c0_0 = arith.constant 0 : index
    %0 = vector.load %arg1[%c0, %c0_0] : memref<256x128xbf16, #tpu.memory_space<vmem>>, vector<256x128xbf16>
    %c0_1 = arith.constant 0 : index
    %c0_2 = arith.constant 0 : index
    %1 = vector.load %arg2[%c0_1, %c0_2] : memref<128x8xbf16, #tpu.memory_space<vmem>>, vector<128x8xbf16>
    %cst = arith.constant dense<0.000000e+00> : vector<256x8xf32>
    %2 = tpu.matmul %0, %1, %cst {dimension_numbers = #tpu.dot_dimension_numbers<[1], [0], [0], [1], [0, 0, 1, 1], [], []>} : vector<256x128xbf16>, vector<128x8xbf16>, vector<256x8xf32> -> vector<256x8xf32>
    %c0_3 = arith.constant 0 : index
    %c0_4 = arith.constant 0 : index
    %3 = vector.load %arg3[%c0_3, %c0_4] : memref<1x8xf32, #tpu.memory_space<vmem>>, vector<1x8xf32>
    %4 = vector.broadcast %3 : vector<1x8xf32> to vector<256x8xf32>
    %5 = arith.mulf %2, %4 : vector<256x8xf32>
    %c0_5 = arith.constant 0 : index
    %c0_6 = arith.constant 0 : index
    %6 = vector.load %arg4[%c0_5, %c0_6] : memref<1x8xf32, #tpu.memory_space<vmem>>, vector<1x8xf32>
    %7 = vector.broadcast %6 : vector<1x8xf32> to vector<256x8xf32>
    %8 = arith.addf %5, %7 : vector<256x8xf32>
    %c0_7 = arith.constant 0 : index
    %c0_8 = arith.constant 0 : index
    %9 = vector.load %arg5[%c0_7, %c0_8] : memref<256x8xf32, #tpu.memory_space<vmem>>, vector<256x8xf32>
    tpu.vector_store %arg5[%c0_7, %c0_8], %8 {strides = array<i32>} : memref<256x8xf32, #tpu.memory_space<vmem>>, vector<256x8xf32>,
    return
  }
  func.func @transform_0(%arg0: i32) -> (i32, i32) {
    %c0_i32 = arith.constant 0 : i32
    %c0_i32_0 = arith.constant 0 : i32
    return %arg0, %c0_i32 : i32, i32
  }
  func.func @transform_1(%arg0: i32) -> (i32, i32) {
    %c0_i32 = arith.constant 0 : i32
    %c0_i32_0 = arith.constant 0 : i32
    %c0_i32_1 = arith.constant 0 : i32
    return %c0_i32, %c0_i32_0 : i32, i32
  }
  func.func @transform_2(%arg0: i32) -> (i32, i32) {
    %c0_i32 = arith.constant 0 : i32
    %c0_i32_0 = arith.constant 0 : i32
    %c0_i32_1 = arith.constant 0 : i32
    return %c0_i32, %c0_i32_0 : i32, i32
  }
  func.func @transform_3(%arg0: i32) -> (i32, i32) {
    %c0_i32 = arith.constant 0 : i32
    %c0_i32_0 = arith.constant 0 : i32
    %c0_i32_1 = arith.constant 0 : i32
    return %c0_i32, %c0_i32_0 : i32, i32
  }
  func.func @transform_4(%arg0: i32) -> (i32, i32) {
    %c0_i32 = arith.constant 0 : i32
    %c0_i32_0 = arith.constant 0 : i32
    return %arg0, %c0_i32 : i32, i32
  }
}

</mosaic_0001>

<llo_original>
// kernel: vqvae2_forward.23
$region0: #{vqvae2_forward.23}
  #allocation0 [shape = 'u32[]', space=smem, size = 0x4, offset = 0x4, fixed_abs, tag = 'smem constant byte address 0x4 - core index']
  #allocation1 [shape = 'u32[144,128]{1,0:T(1,128)}', space=vmem, size = 0x12000, scoped, tag = 'internal scratch']
  %s0 = inlined_call_operand.vmem [shape: bf16[32,8], index: 0, kind: input, shape index: {}]
  %s1 = inlined_call_operand.vmem [shape: bf16[8,8], index: 1, kind: input, shape index: {}]
  %s2 = inlined_call_operand.vmem [shape: f32[1,8], index: 2, kind: input, shape index: {}]
  %s3 = inlined_call_operand.vmem [shape: f32[1,8], index: 3, kind: input, shape index: {}]
  %s4 = inlined_call_operand.vmem [shape: bf16[32,8], index: 4, kind: output, shape index: {}]
  %s5 = sld [smem:[#allocation0]]
  $region26: #{vqvae2_forward.23} parent=0
    _
  %s7 = ssub.s32 1, %s5
  %s8 = scalar_select 0, %s7, %s5
  // Predicated region
  $region2: #{vqvae2_forward.23} parent=0 // pred_check
    _
  $region3: #{vqvae2_forward.23} parent=0 // pred_check_branch
    %10 = sbr.rel (0) target = $region5
  $region4: #{vqvae2_forward.23} parent=0 // pred_region
    _
  $region5: #{vqvae2_forward.23} parent=0 // pred_fallthru
    _
  // Predicated region
  $region6: #{vqvae2_forward.23} parent=0 // pred_check
    _
  $region7: #{vqvae2_forward.23} parent=0 // pred_check_branch
    %12 = sbr.rel (0) target = $region9
  $region8: #{vqvae2_forward.23} parent=0 // pred_region
    _
  $region9: #{vqvae2_forward.23} parent=0 // pred_fallthru
    _
  // Predicated region
  $region10: #{vqvae2_forward.23} parent=0 // pred_check
    _
  $region11: #{vqvae2_forward.23} parent=0 // pred_check_branch
    %14 = sbr.rel (0) target = $region13
  $region12: #{vqvae2_forward.23} parent=0 // pred_region
    _
  $region13: #{vqvae2_forward.23} parent=0 // pred_fallthru
    _
  // Predicated region
  $region14: #{vqvae2_forward.23} parent=0 // pred_check
    _
  $region15: #{vqvae2_forward.23} parent=0 // pred_check_branch
    %16 = sbr.rel (0) target = $region17
  $region16: #{vqvae2_forward.23} parent=0 // pred_region
    _
  $region17: #{vqvae2_forward.23} parent=0 // pred_fallthru
    _
  %v18 = vld [vmem:[%s0] sm:$0xf]
  %v19 = vld [vmem:[%s0 + $0x4] sm:$0xf]
  %v20 = vld [vmem:[%s0 + $0x8] sm:$0xf]
  %v21 = vld [vmem:[%s0 + $0xc] sm:$0xf]
  %v22 = vld [vmem:[%s1] sm:$0xf]
  %v27 = vunpack.c.l.b16 %v18
  %v28 = vunpack.c.l.b16 %v19
  %v29 = vunpack.c.l.b16 %v20
  %v30 = vunpack.c.l.b16 %v21
  %v31 = vpack.c.b16 %v28, %v27
  %v32 = vpack.c.b16 %v30, %v29
  %vm33 = vcmask 64512
  %v35 = vsel %vm33, %v31, 0
  %v38 = vsel %vm33, %v32, 0
  %vm40 = vcmask 1043456
  %v42 = vsel %vm40, %v22, 0
  %44 = vmatprep.subr.bf16.mxu0 0
  %45 = vmatpush1.bf16.msra.mxu0 %v42
  %46 = vmatprep.subr.bf16.mxu0 0
  %47 = vmatpush1.bf16.msra.mxu0 0
  %48 = vmatprep.subr.bf16.mxu0 0
  %49 = vmatpush1.bf16.msra.mxu0 0
  %50 = vmatprep.subr.bf16.mxu0 0
  %51 = vmatpush1.bf16.msra.mxu0 0
  %52 = vmatprep.subr.bf16.mxu0 0
  %53 = vmatpush1.bf16.msra.mxu0 0
  %54 = vmatprep.subr.bf16.mxu0 0
  %55 = vmatpush1.bf16.msra.mxu0 0
  %56 = vmatprep.subr.bf16.mxu0 0
  %57 = vmatpush1.bf16.msra.mxu0 0
  %58 = vmatprep.subr.bf16.mxu0 0
  %59 = vmatpush1.bf16.msra.mxu0 0
  %60 = vmatprep.subr.bf16.mxu0 0
  %61 = vmatpush1.bf16.msra.mxu0 0
  %62 = vmatprep.subr.bf16.mxu0 0
  %63 = vmatpush1.bf16.msra.mxu0 0
  %64 = vmatprep.subr.bf16.mxu0 0
  %65 = vmatpush1.bf16.msra.mxu0 0
  %66 = vmatprep.subr.bf16.mxu0 0
  %67 = vmatpush1.bf16.msra.mxu0 0
  %68 = vmatprep.subr.bf16.mxu0 0
  %69 = vmatpush1.bf16.msra.mxu0 0
  %70 = vmatprep.subr.bf16.mxu0 0
  %71 = vmatpush1.bf16.msra.mxu0 0
  %72 = vmatprep.subr.bf16.mxu0 0
  %73 = vmatpush1.bf16.msra.mxu0 0
  %74 = vmatprep.subr.bf16.mxu0 0
  %75 = vmatpush1.bf16.msra.mxu0 0
  %76 = vmatprep.mubr.bf16.mxu0 0
  %77 = vmatmul.mubr.bf16.gmra.mrb[0].mxu0 %v35
  %v78 = vpop.f32.mrb[0].mxu0
  %v79 = vadd.f32 0.0, %v78
  %v80 = vpop.f32.mrb[0].mxu0
  %v81 = vpop.f32.mrb[0].mxu0
  %v82 = vadd.f32 0.0, %v81
  %v83 = vpop.f32.mrb[0].mxu0
  %84 = vmatprep.mubr.bf16.mxu0 0
  %85 = vmatmul.mubr.bf16.gmra.mrb[0].mxu0 %v38
  %v86 = vpop.f32.mrb[0].mxu0
  %v87 = vadd.f32 0.0, %v86
  %v88 = vpop.f32.mrb[0].mxu0
  %v89 = vpop.f32.mrb[0].mxu0
  %v90 = vadd.f32 0.0, %v89
  %v91 = vpop.f32.mrb[0].mxu0
  %92 = vdwg.mxu0
  %v93 = vld [vmem:[%s2] sm:$0x1]
  %v95 = vlaneseq
  %v96 = vshrl.u32 %v95, 7
  %v97 = vsub.s32 0, %v96
  %v98 = vrot.slane %v93, %v97
  %v100 = vmul.f32 %v79, %v98
  %v101 = vmul.f32 %v82, %v98
  %v102 = vmul.f32 %v87, %v98
  %v103 = vmul.f32 %v90, %v98
  %v104 = vld [vmem:[%s3] sm:$0x1]
  %v106 = vlaneseq
  %v107 = vshrl.u32 %v106, 7
  %v108 = vsub.s32 0, %v107
  %v109 = vrot.slane %v104, %v108
  %v111 = vadd.f32 %v100, %v109
  %v112 = vadd.f32 %v101, %v109
  %v113 = vadd.f32 %v102, %v109
  %v114 = vadd.f32 %v103, %v109
  %v115 = vmax.f32 %v111, 0.0
  %v116 = vmax.f32 %v112, 0.0
  %v117 = vmax.f32 %v113, 0.0
  %v118 = vmax.f32 %v114, 0.0
  %v119 = vpack.c.bf16 %v116, %v115
  %v120 = vpack.c.bf16 %v118, %v117
  %v123 = vunpack.c.l.b16 %v119
  %v124 = vunpack.c.h.b16 %v119
  %v125 = vunpack.c.l.b16 %v120
  %v126 = vunpack.c.h.b16 %v120
  %v127 = vpack.c.b16 %v123, %v123
  %v128 = vpack.c.b16 %v124, %v124
  %v129 = vpack.c.b16 %v125, %v125
  %v130 = vpack.c.b16 %v126, %v126
  %vm135 = vcmask 60416
  %136 = vst.msk [vmem:[%s4] sm:$0xf] %vm135, %v127
  %137 = vst.msk [vmem:[%s4 + $0x4] sm:$0xf] %vm135, %v128
  %138 = vst.msk [vmem:[%s4 + $0x8] sm:$0xf] %vm135, %v129
  %139 = vst.msk [vmem:[%s4 + $0xc] sm:$0xf] %vm135, %v130
  // Predicated region
  $region18: #{vqvae2_forward.23} parent=0 // pred_check
    _
  $region19: #{vqvae2_forward.23} parent=0 // pred_check_branch
    %141 = sbr.rel (0) target = $region21
  $region20: #{vqvae2_forward.23} parent=0 // pred_region
    _
  $region21: #{vqvae2_forward.23} parent=0 // pred_fallthru
    _
  // Predicated region
  $region22: #{vqvae2_forward.23} parent=0 // pred_check
    _
  $region23: #{vqvae2_forward.23} parent=0 // pred_check_branch
    %143 = sbr.rel (0) target = $region25
  $region24: #{vqvae2_forward.23} parent=0 // pred_region
    _
  $region25: #{vqvae2_forward.23} parent=0 // pred_fallthru
    _

// kernel: vqvae2_forward.24
$region0: #{vqvae2_forward.24}
  #allocation0 [shape = 'u32[]', space=smem, size = 0x4, offset = 0x4, fixed_abs, tag = 'smem constant byte address 0x4 - core index']
  #allocation1 [shape = 'u32[144,128]{1,0:T(1,128)}', space=vmem, size = 0x12000, scoped, tag = 'internal scratch']
  %s0 = inlined_call_operand.vmem [shape: bf16[64,16], index: 0, kind: input, shape index: {}]
  %s1 = inlined_call_operand.vmem [shape: bf16[16,8], index: 1, kind: input, shape index: {}]
  %s2 = inlined_call_operand.vmem [shape: f32[1,8], index: 2, kind: input, shape index: {}]
  %s3 = inlined_call_operand.vmem [shape: f32[1,8], index: 3, kind: input, shape index: {}]
  %s4 = inlined_call_operand.vmem [shape: bf16[64,8], index: 4, kind: output, shape index: {}]
  %s5 = sld [smem:[#allocation0]]
  $region26: #{vqvae2_forward.24} parent=0
    _
  %s7 = ssub.s32 1, %s5
  %s8 = scalar_select 0, %s7, %s5
  // Predicated region
  $region2: #{vqvae2_forward.24} parent=0 // pred_check
    _
  $region3: #{vqvae2_forward.24} parent=0 // pred_check_branch
    %10 = sbr.rel (0) target = $region5
  $region4: #{vqvae2_forward.24} parent=0 // pred_region
    _
  $region5: #{vqvae2_forward.24} parent=0 // pred_fallthru
    _
  // Predicated region
  $region6: #{vqvae2_forward.24} parent=0 // pred_check
    _
  $region7: #{vqvae2_forward.24} parent=0 // pred_check_branch
    %12 = sbr.rel (0) target = $region9
  $region8: #{vqvae2_forward.24} parent=0 // pred_region
    _
  $region9: #{vqvae2_forward.24} parent=0 // pred_fallthru
    _
  // Predicated region
  $region10: #{vqvae2_forward.24} parent=0 // pred_check
    _
  $region11: #{vqvae2_forward.24} parent=0 // pred_check_branch
    %14 = sbr.rel (0) target = $region13
  $region12: #{vqvae2_forward.24} parent=0 // pred_region
    _
  $region13: #{vqvae2_forward.24} parent=0 // pred_fallthru
    _
  // Predicated region
  $region14: #{vqvae2_forward.24} parent=0 // pred_check
    _
  $region15: #{vqvae2_forward.24} parent=0 // pred_check_branch
    %16 = sbr.rel (0) target = $region17
  $region16: #{vqvae2_forward.24} parent=0 // pred_region
    _
  $region17: #{vqvae2_forward.24} parent=0 // pred_fallthru
    _
  %v18 = vld [vmem:[%s0] sm:$0xf]
  %v19 = vld [vmem:[%s0 + $0x4] sm:$0xf]
  %v20 = vld [vmem:[%s0 + $0x8] sm:$0xf]
  %v21 = vld [vmem:[%s0 + $0xc] sm:$0xf]
  %v22 = vld [vmem:[%s0 + $0x10] sm:$0xf]
  %v23 = vld [vmem:[%s0 + $0x14] sm:$0xf]
  %v24 = vld [vmem:[%s0 + $0x18] sm:$0xf]
  %v25 = vld [vmem:[%s0 + $0x1c] sm:$0xf]
  %v26 = vld [vmem:[%s1] sm:$0xf]
  %v27 = vld [vmem:[%s1 + $0x4] sm:$0xf]
  %v36 = vunpack.c.l.b16 %v18
  %v37 = vunpack.c.l.b16 %v19
  %v38 = vunpack.c.l.b16 %v20
  %v39 = vunpack.c.l.b16 %v21
  %v40 = vunpack.c.l.b16 %v22
  %v41 = vunpack.c.l.b16 %v23
  %v42 = vunpack.c.l.b16 %v24
  %v43 = vunpack.c.l.b16 %v25
  %v44 = vpack.c.b16 %v37, %v36
  %v45 = vpack.c.b16 %v39, %v38
  %v46 = vpack.c.b16 %v41, %v40
  %v47 = vpack.c.b16 %v43, %v42
  %v50 = vunpack.c.l.b16 %v26
  %v51 = vunpack.c.l.b16 %v27
  %v52 = vpack.c.b16 %v51, %v50
  %vm54 = vcmask 130048
  %v56 = vsel %vm54, %v44, 0
  %v59 = vsel %vm54, %v45, 0
  %v62 = vsel %vm54, %v46, 0
  %v65 = vsel %vm54, %v47, 0
  %67 = vmatprep.subr.bf16.mxu0 0
  %68 = vmatpush1.bf16.msra.mxu0 %v52
  %69 = vmatprep.subr.bf16.mxu0 0
  %70 = vmatpush1.bf16.msra.mxu0 0
  %71 = vmatprep.subr.bf16.mxu0 0
  %72 = vmatpush1.bf16.msra.mxu0 0
  %73 = vmatprep.subr.bf16.mxu0 0
  %74 = vmatpush1.bf16.msra.mxu0 0
  %75 = vmatprep.subr.bf16.mxu0 0
  %76 = vmatpush1.bf16.msra.mxu0 0
  %77 = vmatprep.subr.bf16.mxu0 0
  %78 = vmatpush1.bf16.msra.mxu0 0
  %79 = vmatprep.subr.bf16.mxu0 0
  %80 = vmatpush1.bf16.msra.mxu0 0
  %81 = vmatprep.subr.bf16.mxu0 0
  %82 = vmatpush1.bf16.msra.mxu0 0
  %83 = vmatprep.subr.bf16.mxu0 0
  %84 = vmatpush1.bf16.msra.mxu0 0
  %85 = vmatprep.subr.bf16.mxu0 0
  %86 = vmatpush1.bf16.msra.mxu0 0
  %87 = vmatprep.subr.bf16.mxu0 0
  %88 = vmatpush1.bf16.msra.mxu0 0
  %89 = vmatprep.subr.bf16.mxu0 0
  %90 = vmatpush1.bf16.msra.mxu0 0
  %91 = vmatprep.subr.bf16.mxu0 0
  %92 = vmatpush1.bf16.msra.mxu0 0
  %93 = vmatprep.subr.bf16.mxu0 0
  %94 = vmatpush1.bf16.msra.mxu0 0
  %95 = vmatprep.subr.bf16.mxu0 0
  %96 = vmatpush1.bf16.msra.mxu0 0
  %97 = vmatprep.subr.bf16.mxu0 0
  %98 = vmatpush1.bf16.msra.mxu0 0
  %99 = vmatprep.mubr.bf16.mxu0 0
  %100 = vmatmul.mubr.bf16.gmra.mrb[0].mxu0 %v56
  %v101 = vpop.f32.mrb[0].mxu0
  %v102 = vadd.f32 0.0, %v101
  %v103 = vpop.f32.mrb[0].mxu0
  %v104 = vpop.f32.mrb[0].mxu0
  %v105 = vadd.f32 0.0, %v104
  %v106 = vpop.f32.mrb[0].mxu0
  %107 = vmatprep.mubr.bf16.mxu0 0
  %108 = vmatmul.mubr.bf16.gmra.mrb[0].mxu0 %v59
  %v109 = vpop.f32.mrb[0].mxu0
  %v110 = vadd.f32 0.0, %v109
  %v111 = vpop.f32.mrb[0].mxu0
  %v112 = vpop.f32.mrb[0].mxu0
  %v113 = vadd.f32 0.0, %v112
  %v114 = vpop.f32.mrb[0].mxu0
  %115 = vmatprep.mubr.bf16.mxu0 0
  %116 = vmatmul.mubr.bf16.gmra.mrb[0].mxu0 %v62
  %v117 = vpop.f32.mrb[0].mxu0
  %v118 = vadd.f32 0.0, %v117
  %v119 = vpop.f32.mrb[0].mxu0
  %v120 = vpop.f32.mrb[0].mxu0
  %v121 = vadd.f32 0.0, %v120
  %v122 = vpop.f32.mrb[0].mxu0
  %123 = vmatprep.mubr.bf16.mxu0 0
  %124 = vmatmul.mubr.bf16.gmra.mrb[0].mxu0 %v65
  %v125 = vpop.f32.mrb[0].mxu0
  %v126 = vadd.f32 0.0, %v125
  %v127 = vpop.f32.mrb[0].mxu0
  %v128 = vpop.f32.mrb[0].mxu0
  %v129 = vadd.f32 0.0, %v128
  %v130 = vpop.f32.mrb[0].mxu0
  %131 = vdwg.mxu0
  %v132 = vld [vmem:[%s2] sm:$0x1]
  %v134 = vlaneseq
  %v135 = vshrl.u32 %v134, 7
  %v136 = vsub.s32 0, %v135
  %v137 = vrot.slane %v132, %v136
  %v139 = vmul.f32 %v102, %v137
  %v140 = vmul.f32 %v105, %v137
  %v141 = vmul.f32 %v110, %v137
  %v142 = vmul.f32 %v113, %v137
  %v143 = vmul.f32 %v118, %v137
  %v144 = vmul.f32 %v121, %v137
  %v145 = vmul.f32 %v126, %v137
  %v146 = vmul.f32 %v129, %v137
  %v147 = vld [vmem:[%s3] sm:$0x1]
  %v149 = vlaneseq
  %v150 = vshrl.u32 %v149, 7
  %v151 = vsub.s32 0, %v150
  %v152 = vrot.slane %v147, %v151
  %v154 = vadd.f32 %v139, %v152
  %v155 = vadd.f32 %v140, %v152
  %v156 = vadd.f32 %v141, %v152
  %v157 = vadd.f32 %v142, %v152
  %v158 = vadd.f32 %v143, %v152
  %v159 = vadd.f32 %v144, %v152
  %v160 = vadd.f32 %v145, %v152
  %v161 = vadd.f32 %v146, %v152
  %v162 = vmax.f32 %v154, 0.0
  %v163 = vmax.f32 %v155, 0.0
  %v164 = vmax.f32 %v156, 0.0
  %v165 = vmax.f32 %v157, 0.0
  %v166 = vmax.f32 %v158, 0.0
  %v167 = vmax.f32 %v159, 0.0
  %v168 = vmax.f32 %v160, 0.0
  %v169 = vmax.f32 %v161, 0.0
  %v170 = vpack.c.bf16 %v163, %v162
  %v171 = vpack.c.bf16 %v165, %v164
  %v172 = vpack.c.bf16 %v167, %v166
  %v173 = vpack.c.bf16 %v169, %v168
  %v178 = vunpack.c.l.b16 %v170
  %v179 = vunpack.c.h.b16 %v170
  %v180 = vunpack.c.l.b16 %v171
  %v181 = vunpack.c.h.b16 %v171
  %v182 = vunpack.c.l.b16 %v172
  %v183 = vunpack.c.h.b16 %v172
  %v184 = vunpack.c.l.b16 %v173
  %v185 = vunpack.c.h.b16 %v173
  %v186 = vpack.c.b16 %v178, %v178
  %v187 = vpack.c.b16 %v179, %v179
  %v188 = vpack.c.b16 %v180, %v180
  %v189 = vpack.c.b16 %v181, %v181
  %v190 = vpack.c.b16 %v182, %v182
  %v191 = vpack.c.b16 %v183, %v183
  %v192 = vpack.c.b16 %v184, %v184
  %v193 = vpack.c.b16 %v185, %v185
  %vm202 = vcmask 60416
  %203 = vst.msk [vmem:[%s4] sm:$0xf] %vm202, %v186
  %204 = vst.msk [vmem:[%s4 + $0x4] sm:$0xf] %vm202, %v187
  %205 = vst.msk [vmem:[%s4 + $0x8] sm:$0xf] %vm202, %v188
  %206 = vst.msk [vmem:[%s4 + $0xc] sm:$0xf] %vm202, %v189
  %207 = vst.msk [vmem:[%s4 + $0x10] sm:$0xf] %vm202, %v190
  %208 = vst.msk [vmem:[%s4 + $0x14] sm:$0xf] %vm202, %v191
  %209 = vst.msk [vmem:[%s4 + $0x18] sm:$0xf] %vm202, %v192
  %210 = vst.msk [vmem:[%s4 + $0x1c] sm:$0xf] %vm202, %v193
  // Predicated region
  $region18: #{vqvae2_forward.24} parent=0 // pred_check
    _
  $region19: #{vqvae2_forward.24} parent=0 // pred_check_branch
    %212 = sbr.rel (0) target = $region21
  $region20: #{vqvae2_forward.24} parent=0 // pred_region
    _
  $region21: #{vqvae2_forward.24} parent=0 // pred_fallthru
    _
  // Predicated region
  $region22: #{vqvae2_forward.24} parent=0 // pred_check
    _
  $region23: #{vqvae2_forward.24} parent=0 // pred_check_branch
    %214 = sbr.rel (0) target = $region25
  $region24: #{vqvae2_forward.24} parent=0 // pred_region
    _
  $region25: #{vqvae2_forward.24} parent=0 // pred_fallthru
    _

// kernel: vqvae2_forward.25
$region0: #{vqvae2_forward.25}
  #allocation0 [shape = 'u32[]', space=smem, size = 0x4, offset = 0x4, fixed_abs, tag = 'smem constant byte address 0x4 - core index']
  #allocation1 [shape = 'u32[144,128]{1,0:T(1,128)}', space=vmem, size = 0x12000, scoped, tag = 'internal scratch']
  %s0 = inlined_call_operand.vmem [shape: bf16[16,128], index: 0, kind: input, shape index: {}]
  %s1 = inlined_call_operand.vmem [shape: bf16[128,16], index: 1, kind: input, shape index: {}]
  %s2 = inlined_call_operand.vmem [shape: f32[1,16], index: 2, kind: input, shape index: {}]
  %s3 = inlined_call_operand.vmem [shape: f32[1,16], index: 3, kind: input, shape index: {}]
  %s4 = inlined_call_operand.vmem [shape: bf16[16,16], index: 4, kind: output, shape index: {}]
  %s5 = sld [smem:[#allocation0]]
  $region26: #{vqvae2_forward.25} parent=0
    _
  %s7 = ssub.s32 1, %s5
  %s8 = scalar_select 0, %s7, %s5
  // Predicated region
  $region2: #{vqvae2_forward.25} parent=0 // pred_check
    _
  $region3: #{vqvae2_forward.25} parent=0 // pred_check_branch
    %10 = sbr.rel (0) target = $region5
  $region4: #{vqvae2_forward.25} parent=0 // pred_region
    _
  $region5: #{vqvae2_forward.25} parent=0 // pred_fallthru
    _
  // Predicated region
  $region6: #{vqvae2_forward.25} parent=0 // pred_check
    _
  $region7: #{vqvae2_forward.25} parent=0 // pred_check_branch
    %12 = sbr.rel (0) target = $region9
  $region8: #{vqvae2_forward.25} parent=0 // pred_region
    _
  $region9: #{vqvae2_forward.25} parent=0 // pred_fallthru
    _
  // Predicated region
  $region10: #{vqvae2_forward.25} parent=0 // pred_check
    _
  $region11: #{vqvae2_forward.25} parent=0 // pred_check_branch
    %14 = sbr.rel (0) target = $region13
  $region12: #{vqvae2_forward.25} parent=0 // pred_region
    _
  $region13: #{vqvae2_forward.25} parent=0 // pred_fallthru
    _
  // Predicated region
  $region14: #{vqvae2_forward.25} parent=0 // pred_check
    _
  $region15: #{vqvae2_forward.25} parent=0 // pred_check_branch
    %16 = sbr.rel (0) target = $region17
  $region16: #{vqvae2_forward.25} parent=0 // pred_region
    _
  $region17: #{vqvae2_forward.25} parent=0 // pred_fallthru
    _
  %v18 = vld [vmem:[%s0] sm:$0xf]
  %v19 = vld [vmem:[%s0 + $0x4] sm:$0xf]
  %v20 = vld [vmem:[%s1] sm:$0xf]
  %v21 = vld [vmem:[%s1 + $0x4] sm:$0xf]
  %v22 = vld [vmem:[%s1 + $0x8] sm:$0xf]
  %v23 = vld [vmem:[%s1 + $0xc] sm:$0xf]
  %v24 = vld [vmem:[%s1 + $0x10] sm:$0xf]
  %v25 = vld [vmem:[%s1 + $0x14] sm:$0xf]
  %v26 = vld [vmem:[%s1 + $0x18] sm:$0xf]
  %v27 = vld [vmem:[%s1 + $0x1c] sm:$0xf]
  %v28 = vld [vmem:[%s1 + $0x20] sm:$0xf]
  %v29 = vld [vmem:[%s1 + $0x24] sm:$0xf]
  %v30 = vld [vmem:[%s1 + $0x28] sm:$0xf]
  %v31 = vld [vmem:[%s1 + $0x2c] sm:$0xf]
  %v32 = vld [vmem:[%s1 + $0x30] sm:$0xf]
  %v33 = vld [vmem:[%s1 + $0x34] sm:$0xf]
  %v34 = vld [vmem:[%s1 + $0x38] sm:$0xf]
  %v35 = vld [vmem:[%s1 + $0x3c] sm:$0xf]
  %v38 = vunpack.c.l.b16 %v18
  %v39 = vunpack.c.l.b16 %v19
  %v40 = vpack.c.b16 %v39, %v38
  %v58 = vunpack.c.l.b16 %v20
  %v59 = vunpack.c.l.b16 %v21
  %v60 = vunpack.c.l.b16 %v22
  %v61 = vunpack.c.l.b16 %v23
  %v62 = vunpack.c.l.b16 %v24
  %v63 = vunpack.c.l.b16 %v25
  %v64 = vunpack.c.l.b16 %v26
  %v65 = vunpack.c.l.b16 %v27
  %v66 = vunpack.c.l.b16 %v28
  %v67 = vunpack.c.l.b16 %v29
  %v68 = vunpack.c.l.b16 %v30
  %v69 = vunpack.c.l.b16 %v31
  %v70 = vunpack.c.l.b16 %v32
  %v71 = vunpack.c.l.b16 %v33
  %v72 = vunpack.c.l.b16 %v34
  %v73 = vunpack.c.l.b16 %v35
  %v74 = vpack.c.b16 %v59, %v58
  %v75 = vpack.c.b16 %v61, %v60
  %v76 = vpack.c.b16 %v63, %v62
  %v77 = vpack.c.b16 %v65, %v64
  %v78 = vpack.c.b16 %v67, %v66
  %v79 = vpack.c.b16 %v69, %v68
  %v80 = vpack.c.b16 %v71, %v70
  %v81 = vpack.c.b16 %v73, %v72
  %90 = vmatprep.subr.bf16.mxu0 0
  %91 = vmatpush1.bf16.msra.mxu0 %v74
  %92 = vmatprep.subr.bf16.mxu0 0
  %93 = vmatpush1.bf16.msra.mxu0 %v75
  %94 = vmatprep.subr.bf16.mxu0 0
  %95 = vmatpush1.bf16.msra.mxu0 %v76
  %96 = vmatprep.subr.bf16.mxu0 0
  %97 = vmatpush1.bf16.msra.mxu0 %v77
  %98 = vmatprep.subr.bf16.mxu0 0
  %99 = vmatpush1.bf16.msra.mxu0 %v78
  %100 = vmatprep.subr.bf16.mxu0 0
  %101 = vmatpush1.bf16.msra.mxu0 %v79
  %102 = vmatprep.subr.bf16.mxu0 0
  %103 = vmatpush1.bf16.msra.mxu0 %v80
  %104 = vmatprep.subr.bf16.mxu0 0
  %105 = vmatpush1.bf16.msra.mxu0 %v81
  %106 = vmatprep.subr.bf16.mxu0 0
  %107 = vmatpush1.bf16.msra.mxu0 0
  %108 = vmatprep.subr.bf16.mxu0 0
  %109 = vmatpush1.bf16.msra.mxu0 0
  %110 = vmatprep.subr.bf16.mxu0 0
  %111 = vmatpush1.bf16.msra.mxu0 0
  %112 = vmatprep.subr.bf16.mxu0 0
  %113 = vmatpush1.bf16.msra.mxu0 0
  %114 = vmatprep.subr.bf16.mxu0 0
  %115 = vmatpush1.bf16.msra.mxu0 0
  %116 = vmatprep.subr.bf16.mxu0 0
  %117 = vmatpush1.bf16.msra.mxu0 0
  %118 = vmatprep.subr.bf16.mxu0 0
  %119 = vmatpush1.bf16.msra.mxu0 0
  %120 = vmatprep.subr.bf16.mxu0 0
  %121 = vmatpush1.bf16.msra.mxu0 0
  %122 = vmatprep.mubr.bf16.mxu0 0
  %123 = vmatmul.mubr.bf16.gmra.mrb[0].mxu0 %v40
  %v124 = vpop.f32.mrb[0].mxu0
  %v125 = vadd.f32 0.0, %v124
  %v126 = vpop.f32.mrb[0].mxu0
  %v127 = vpop.f32.mrb[0].mxu0
  %v128 = vadd.f32 0.0, %v127
  %v129 = vpop.f32.mrb[0].mxu0
  %130 = vdwg.mxu0
  %v131 = vld [vmem:[%s2] sm:$0x1]
  %v133 = vlaneseq
  %v134 = vshrl.u32 %v133, 7
  %v135 = vsub.s32 0, %v134
  %v136 = vrot.slane %v131, %v135
  %v138 = vmul.f32 %v125, %v136
  %v139 = vmul.f32 %v128, %v136
  %v140 = vld [vmem:[%s3] sm:$0x1]
  %v142 = vlaneseq
  %v143 = vshrl.u32 %v142, 7
  %v144 = vsub.s32 0, %v143
  %v145 = vrot.slane %v140, %v144
  %v147 = vadd.f32 %v138, %v145
  %v148 = vadd.f32 %v139, %v145
  %v149 = vmax.f32 %v147, 0.0
  %v150 = vmax.f32 %v148, 0.0
  %v151 = vpack.c.bf16 %v150, %v149
  %v153 = vunpack.c.l.b16 %v151
  %v154 = vunpack.c.h.b16 %v151
  %v155 = vpack.c.b16 %v153, %v153
  %v156 = vpack.c.b16 %v154, %v154
  %vm159 = vcmask 125952
  %160 = vst.msk [vmem:[%s4] sm:$0xf] %vm159, %v155
  %161 = vst.msk [vmem:[%s4 + $0x4] sm:$0xf] %vm159, %v156
  // Predicated region
  $region18: #{vqvae2_forward.25} parent=0 // pred_check
    _
  $region19: #{vqvae2_forward.25} parent=0 // pred_check_branch
    %163 = sbr.rel (0) target = $region21
  $region20: #{vqvae2_forward.25} parent=0 // pred_region
    _
  $region21: #{vqvae2_forward.25} parent=0 // pred_fallthru
    _
  // Predicated region
  $region22: #{vqvae2_forward.25} parent=0 // pred_check
    _
  $region23: #{vqvae2_forward.25} parent=0 // pred_check_branch
    %165 = sbr.rel (0) target = $region25
  $region24: #{vqvae2_forward.25} parent=0 // pred_region
    _
  $region25: #{vqvae2_forward.25} parent=0 // pred_fallthru
    _

// kernel: vqvae2_forward.26
$region0: #{vqvae2_forward.26}
  #allocation0 [shape = 'u32[]', space=smem, size = 0x4, offset = 0x4, fixed_abs, tag = 'smem constant byte address 0x4 - core index']
  #allocation1 [shape = 'u32[144,128]{1,0:T(1,128)}', space=vmem, size = 0x12000, scoped, tag = 'internal scratch']
  %s0 = inlined_call_operand.vmem [shape: bf16[16,144], index: 0, kind: input, shape index: {}]
  %s1 = inlined_call_operand.vmem [shape: bf16[144,16], index: 1, kind: input, shape index: {}]
  %s2 = inlined_call_operand.vmem [shape: f32[1,16], index: 2, kind: input, shape index: {}]
  %s3 = inlined_call_operand.vmem [shape: f32[1,16], index: 3, kind: input, shape index: {}]
  %s4 = inlined_call_operand.vmem [shape: bf16[16,16], index: 4, kind: output, shape index: {}]
  %s5 = sld [smem:[#allocation0]]
  $region26: #{vqvae2_forward.26} parent=0
    _
  %s7 = ssub.s32 1, %s5
  %s8 = scalar_select 0, %s7, %s5
  // Predicated region
  $region2: #{vqvae2_forward.26} parent=0 // pred_check
    _
  $region3: #{vqvae2_forward.26} parent=0 // pred_check_branch
    %10 = sbr.rel (0) target = $region5
  $region4: #{vqvae2_forward.26} parent=0 // pred_region
    _
  $region5: #{vqvae2_forward.26} parent=0 // pred_fallthru
    _
  // Predicated region
  $region6: #{vqvae2_forward.26} parent=0 // pred_check
    _
  $region7: #{vqvae2_forward.26} parent=0 // pred_check_branch
    %12 = sbr.rel (0) target = $region9
  $region8: #{vqvae2_forward.26} parent=0 // pred_region
    _
  $region9: #{vqvae2_forward.26} parent=0 // pred_fallthru
    _
  // Predicated region
  $region10: #{vqvae2_forward.26} parent=0 // pred_check
    _
  $region11: #{vqvae2_forward.26} parent=0 // pred_check_branch
    %14 = sbr.rel (0) target = $region13
  $region12: #{vqvae2_forward.26} parent=0 // pred_region
    _
  $region13: #{vqvae2_forward.26} parent=0 // pred_fallthru
    _
  // Predicated region
  $region14: #{vqvae2_forward.26} parent=0 // pred_check
    _
  $region15: #{vqvae2_forward.26} parent=0 // pred_check_branch
    %16 = sbr.rel (0) target = $region17
  $region16: #{vqvae2_forward.26} parent=0 // pred_region
    _
  $region17: #{vqvae2_forward.26} parent=0 // pred_fallthru
    _
  %v18 = vld [vmem:[%s0] sm:$0xff]
  %v19 = vld [vmem:[%s0 + $0x8] sm:$0xff]
  %v20 = vld [vmem:[%s1] sm:$0xf]
  %v21 = vld [vmem:[%s1 + $0x4] sm:$0xf]
  %v22 = vld [vmem:[%s1 + $0x8] sm:$0xf]
  %v23 = vld [vmem:[%s1 + $0xc] sm:$0xf]
  %v24 = vld [vmem:[%s1 + $0x10] sm:$0xf]
  %v25 = vld [vmem:[%s1 + $0x14] sm:$0xf]
  %v26 = vld [vmem:[%s1 + $0x18] sm:$0xf]
  %v27 = vld [vmem:[%s1 + $0x1c] sm:$0xf]
  %v28 = vld [vmem:[%s1 + $0x20] sm:$0xf]
  %v29 = vld [vmem:[%s1 + $0x24] sm:$0xf]
  %v30 = vld [vmem:[%s1 + $0x28] sm:$0xf]
  %v31 = vld [vmem:[%s1 + $0x2c] sm:$0xf]
  %v32 = vld [vmem:[%s1 + $0x30] sm:$0xf]
  %v33 = vld [vmem:[%s1 + $0x34] sm:$0xf]
  %v34 = vld [vmem:[%s1 + $0x38] sm:$0xf]
  %v35 = vld [vmem:[%s1 + $0x3c] sm:$0xf]
  %v36 = vld [vmem:[%s1 + $0x40] sm:$0xf]
  %v37 = vld [vmem:[%s1 + $0x44] sm:$0xf]
  %v40 = vunpack.c.l.b16 %v18
  %v41 = vunpack.c.h.b16 %v18
  %v42 = vunpack.c.l.b16 %v19
  %v43 = vunpack.c.h.b16 %v19
  %v44 = vpack.c.b16 %v42, %v40
  %v45 = vpack.c.b16 %v43, %v41
  %v65 = vunpack.c.l.b16 %v20
  %v66 = vunpack.c.l.b16 %v21
  %v67 = vunpack.c.l.b16 %v22
  %v68 = vunpack.c.l.b16 %v23
  %v69 = vunpack.c.l.b16 %v24
  %v70 = vunpack.c.l.b16 %v25
  %v71 = vunpack.c.l.b16 %v26
  %v72 = vunpack.c.l.b16 %v27
  %v73 = vunpack.c.l.b16 %v28
  %v74 = vunpack.c.l.b16 %v29
  %v75 = vunpack.c.l.b16 %v30
  %v76 = vunpack.c.l.b16 %v31
  %v77 = vunpack.c.l.b16 %v32
  %v78 = vunpack.c.l.b16 %v33
  %v79 = vunpack.c.l.b16 %v34
  %v80 = vunpack.c.l.b16 %v35
  %v81 = vunpack.c.l.b16 %v36
  %v82 = vunpack.c.l.b16 %v37
  %v83 = vpack.c.b16 %v66, %v65
  %v84 = vpack.c.b16 %v68, %v67
  %v85 = vpack.c.b16 %v70, %v69
  %v86 = vpack.c.b16 %v72, %v71
  %v87 = vpack.c.b16 %v74, %v73
  %v88 = vpack.c.b16 %v76, %v75
  %v89 = vpack.c.b16 %v78, %v77
  %v90 = vpack.c.b16 %v80, %v79
  %v91 = vpack.c.b16 %v82, %v81
  %vm101 = vcmask 130048
  %v103 = vsel %vm101, %v45, 0
  %105 = vmatprep.subr.bf16.mxu0 0
  %106 = vmatpush1.bf16.msra.mxu0 %v83
  %107 = vmatprep.subr.bf16.mxu0 0
  %108 = vmatpush1.bf16.msra.mxu0 %v84
  %109 = vmatprep.subr.bf16.mxu0 0
  %110 = vmatpush1.bf16.msra.mxu0 %v85
  %111 = vmatprep.subr.bf16.mxu0 0
  %112 = vmatpush1.bf16.msra.mxu0 %v86
  %113 = vmatprep.subr.bf16.mxu0 0
  %114 = vmatpush1.bf16.msra.mxu0 %v87
  %115 = vmatprep.subr.bf16.mxu0 0
  %116 = vmatpush1.bf16.msra.mxu0 %v88
  %117 = vmatprep.subr.bf16.mxu0 0
  %118 = vmatpush1.bf16.msra.mxu0 %v89
  %119 = vmatprep.subr.bf16.mxu0 0
  %120 = vmatpush1.bf16.msra.mxu0 %v90
  %121 = vmatprep.subr.bf16.mxu0 0
  %122 = vmatpush1.bf16.msra.mxu0 %v91
  %123 = vmatprep.subr.bf16.mxu0 0
  %124 = vmatpush1.bf16.msra.mxu0 0
  %125 = vmatprep.subr.bf16.mxu0 0
  %126 = vmatpush1.bf16.msra.mxu0 0
  %127 = vmatprep.subr.bf16.mxu0 0
  %128 = vmatpush1.bf16.msra.mxu0 0
  %129 = vmatprep.subr.bf16.mxu0 0
  %130 = vmatpush1.bf16.msra.mxu0 0
  %131 = vmatprep.subr.bf16.mxu0 0
  %132 = vmatpush1.bf16.msra.mxu0 0
  %133 = vmatprep.subr.bf16.mxu0 0
  %134 = vmatpush1.bf16.msra.mxu0 0
  %135 = vmatprep.subr.bf16.mxu0 0
  %136 = vmatpush1.bf16.msra.mxu0 0
  %137 = vmatprep.mubr.bf16.mxu0 %v103
  %138 = vmatmul.mubr.bf16.gmra.mrb[0].mxu0 %v44
  %v139 = vpop.f32.mrb[0].mxu0
  %v140 = vadd.f32 0.0, %v139
  %v141 = vpop.f32.mrb[0].mxu0
  %v142 = vpop.f32.mrb[0].mxu0
  %v143 = vadd.f32 0.0, %v142
  %v144 = vpop.f32.mrb[0].mxu0
  %145 = vdwg.mxu0
  %v146 = vld [vmem:[%s2] sm:$0x1]
  %v148 = vlaneseq
  %v149 = vshrl.u32 %v148, 7
  %v150 = vsub.s32 0, %v149
  %v151 = vrot.slane %v146, %v150
  %v153 = vmul.f32 %v140, %v151
  %v154 = vmul.f32 %v143, %v151
  %v155 = vld [vmem:[%s3] sm:$0x1]
  %v157 = vlaneseq
  %v158 = vshrl.u32 %v157, 7
  %v159 = vsub.s32 0, %v158
  %v160 = vrot.slane %v155, %v159
  %v162 = vadd.f32 %v153, %v160
  %v163 = vadd.f32 %v154, %v160
  %v164 = vpack.c.bf16 %v163, %v162
  %v166 = vunpack.c.l.b16 %v164
  %v167 = vunpack.c.h.b16 %v164
  %v168 = vpack.c.b16 %v166, %v166
  %v169 = vpack.c.b16 %v167, %v167
  %vm172 = vcmask 125952
  %173 = vst.msk [vmem:[%s4] sm:$0xf] %vm172, %v168
  %174 = vst.msk [vmem:[%s4 + $0x4] sm:$0xf] %vm172, %v169
  // Predicated region
  $region18: #{vqvae2_forward.26} parent=0 // pred_check
    _
  $region19: #{vqvae2_forward.26} parent=0 // pred_check_branch
    %176 = sbr.rel (0) target = $region21
  $region20: #{vqvae2_forward.26} parent=0 // pred_region
    _
  $region21: #{vqvae2_forward.26} parent=0 // pred_fallthru
    _
  // Predicated region
  $region22: #{vqvae2_forward.26} parent=0 // pred_check
    _
  $region23: #{vqvae2_forward.26} parent=0 // pred_check_branch
    %178 = sbr.rel (0) target = $region25
  $region24: #{vqvae2_forward.26} parent=0 // pred_region
    _
  $region25: #{vqvae2_forward.26} parent=0 // pred_fallthru
    _

// kernel: vqvae2_forward.27
$region0: #{vqvae2_forward.27}
  #allocation0 [shape = 'u32[]', space=smem, size = 0x4, offset = 0x4, fixed_abs, tag = 'smem constant byte address 0x4 - core index']
  #allocation1 [shape = 'u32[144,128]{1,0:T(1,128)}', space=vmem, size = 0x12000, scoped, tag = 'internal scratch']
  %s0 = inlined_call_operand.vmem [shape: bf16[16,144], index: 0, kind: input, shape index: {}]
  %s1 = inlined_call_operand.vmem [shape: bf16[144,4], index: 1, kind: input, shape index: {}]
  %s2 = inlined_call_operand.vmem [shape: f32[1,4], index: 2, kind: input, shape index: {}]
  %s3 = inlined_call_operand.vmem [shape: f32[1,4], index: 3, kind: input, shape index: {}]
  %s4 = inlined_call_operand.vmem [shape: bf16[4,16], index: 4, kind: input, shape index: {}]
  %s5 = inlined_call_operand.vmem [shape: f32[1,16], index: 5, kind: input, shape index: {}]
  %s6 = inlined_call_operand.vmem [shape: f32[1,16], index: 6, kind: input, shape index: {}]
  %s7 = inlined_call_operand.vmem [shape: bf16[16,16], index: 7, kind: output, shape index: {}]
  %s8 = sld [smem:[#allocation0]]
  $region38: #{vqvae2_forward.27} parent=0
    _
  %s10 = ssub.s32 1, %s8
  %s11 = scalar_select 0, %s10, %s8
  // Predicated region
  $region2: #{vqvae2_forward.27} parent=0 // pred_check
    _
  $region3: #{vqvae2_forward.27} parent=0 // pred_check_branch
    %13 = sbr.rel (0) target = $region5
  $region4: #{vqvae2_forward.27} parent=0 // pred_region
    _
  $region5: #{vqvae2_forward.27} parent=0 // pred_fallthru
    _
  // Predicated region
  $region6: #{vqvae2_forward.27} parent=0 // pred_check
    _
  $region7: #{vqvae2_forward.27} parent=0 // pred_check_branch
    %15 = sbr.rel (0) target = $region9
  $region8: #{vqvae2_forward.27} parent=0 // pred_region
    _
  $region9: #{vqvae2_forward.27} parent=0 // pred_fallthru
    _
  // Predicated region
  $region10: #{vqvae2_forward.27} parent=0 // pred_check
    _
  $region11: #{vqvae2_forward.27} parent=0 // pred_check_branch
    %17 = sbr.rel (0) target = $region13
  $region12: #{vqvae2_forward.27} parent=0 // pred_region
    _
  $region13: #{vqvae2_forward.27} parent=0 // pred_fallthru
    _
  // Predicated region
  $region14: #{vqvae2_forward.27} parent=0 // pred_check
    _
  $region15: #{vqvae2_forward.27} parent=0 // pred_check_branch
    %19 = sbr.rel (0) target = $region17
  $region16: #{vqvae2_forward.27} parent=0 // pred_region
    _
  $region17: #{vqvae2_forward.27} parent=0 // pred_fallthru
    _
  // Predicated region
  $region18: #{vqvae2_forward.27} parent=0 // pred_check
    _
  $region19: #{vqvae2_forward.27} parent=0 // pred_check_branch
    %21 = sbr.rel (0) target = $region21
  $region20: #{vqvae2_forward.27} parent=0 // pred_region
    _
  $region21: #{vqvae2_forward.27} parent=0 // pred_fallthru
    _
  // Predicated region
  $region22: #{vqvae2_forward.27} parent=0 // pred_check
    _
  $region23: #{vqvae2_forward.27} parent=0 // pred_check_branch
    %23 = sbr.rel (0) target = $region25
  $region24: #{vqvae2_forward.27} parent=0 // pred_region
    _
  $region25: #{vqvae2_forward.27} parent=0 // pred_fallthru
    _
  // Predicated region
  $region26: #{vqvae2_forward.27} parent=0 // pred_check
    _
  $region27: #{vqvae2_forward.27} parent=0 // pred_check_branch
    %25 = sbr.rel (0) target = $region29
  $region28: #{vqvae2_forward.27} parent=0 // pred_region
    _
  $region29: #{vqvae2_forward.27} parent=0 // pred_fallthru
    _
  %v27 = vld [vmem:[%s0] sm:$0xff]
  %v28 = vld [vmem:[%s0 + $0x8] sm:$0xff]
  %v29 = vunpack.c.l.bf16 %v27
  %v30 = vunpack.c.l.bf16 %v28
  %v31 = vmax.bf16 %v27, 0
  %v32 = vmax.bf16 %v28, 0
  %v33 = vld [vmem:[%s1] sm:$0xf]
  %v34 = vld [vmem:[%s1 + $0x4] sm:$0xf]
  %v35 = vld [vmem:[%s1 + $0x8] sm:$0xf]
  %v36 = vld [vmem:[%s1 + $0xc] sm:$0xf]
  %v37 = vld [vmem:[%s1 + $0x10] sm:$0xf]
  %v38 = vld [vmem:[%s1 + $0x14] sm:$0xf]
  %v39 = vld [vmem:[%s1 + $0x18] sm:$0xf]
  %v40 = vld [vmem:[%s1 + $0x1c] sm:$0xf]
  %v41 = vld [vmem:[%s1 + $0x20] sm:$0xf]
  %v42 = vld [vmem:[%s1 + $0x24] sm:$0xf]
  %v43 = vld [vmem:[%s1 + $0x28] sm:$0xf]
  %v44 = vld [vmem:[%s1 + $0x2c] sm:$0xf]
  %v45 = vld [vmem:[%s1 + $0x30] sm:$0xf]
  %v46 = vld [vmem:[%s1 + $0x34] sm:$0xf]
  %v47 = vld [vmem:[%s1 + $0x38] sm:$0xf]
  %v48 = vld [vmem:[%s1 + $0x3c] sm:$0xf]
  %v49 = vld [vmem:[%s1 + $0x40] sm:$0xf]
  %v50 = vld [vmem:[%s1 + $0x44] sm:$0xf]
  %v53 = vunpack.c.l.b16 %v31
  %v54 = vunpack.c.h.b16 %v31
  %v55 = vunpack.c.l.b16 %v32
  %v56 = vunpack.c.h.b16 %v32
  %v57 = vpack.c.b16 %v55, %v53
  %v58 = vpack.c.b16 %v56, %v54
  %v78 = vunpack.c.l.b16 %v33
  %v79 = vunpack.c.l.b16 %v34
  %v80 = vunpack.c.l.b16 %v35
  %v81 = vunpack.c.l.b16 %v36
  %v82 = vunpack.c.l.b16 %v37
  %v83 = vunpack.c.l.b16 %v38
  %v84 = vunpack.c.l.b16 %v39
  %v85 = vunpack.c.l.b16 %v40
  %v86 = vunpack.c.l.b16 %v41
  %v87 = vunpack.c.l.b16 %v42
  %v88 = vunpack.c.l.b16 %v43
  %v89 = vunpack.c.l.b16 %v44
  %v90 = vunpack.c.l.b16 %v45
  %v91 = vunpack.c.l.b16 %v46
  %v92 = vunpack.c.l.b16 %v47
  %v93 = vunpack.c.l.b16 %v48
  %v94 = vunpack.c.l.b16 %v49
  %v95 = vunpack.c.l.b16 %v50
  %v96 = vpack.c.b16 %v79, %v78
  %v97 = vpack.c.b16 %v81, %v80
  %v98 = vpack.c.b16 %v83, %v82
  %v99 = vpack.c.b16 %v85, %v84
  %v100 = vpack.c.b16 %v87, %v86
  %v101 = vpack.c.b16 %v89, %v88
  %v102 = vpack.c.b16 %v91, %v90
  %v103 = vpack.c.b16 %v93, %v92
  %v104 = vpack.c.b16 %v95, %v94
  %vm114 = vcmask 130048
  %v116 = vsel %vm114, %v58, 0
  %118 = vmatprep.subr.bf16.mxu0 0
  %119 = vmatpush1.bf16.msra.mxu0 %v96
  %120 = vmatprep.subr.bf16.mxu0 0
  %121 = vmatpush1.bf16.msra.mxu0 %v97
  %122 = vmatprep.subr.bf16.mxu0 0
  %123 = vmatpush1.bf16.msra.mxu0 %v98
  %124 = vmatprep.subr.bf16.mxu0 0
  %125 = vmatpush1.bf16.msra.mxu0 %v99
  %126 = vmatprep.subr.bf16.mxu0 0
  %127 = vmatpush1.bf16.msra.mxu0 %v100
  %128 = vmatprep.subr.bf16.mxu0 0
  %129 = vmatpush1.bf16.msra.mxu0 %v101
  %130 = vmatprep.subr.bf16.mxu0 0
  %131 = vmatpush1.bf16.msra.mxu0 %v102
  %132 = vmatprep.subr.bf16.mxu0 0
  %133 = vmatpush1.bf16.msra.mxu0 %v103
  %134 = vmatprep.subr.bf16.mxu0 0
  %135 = vmatpush1.bf16.msra.mxu0 %v104
  %136 = vmatprep.subr.bf16.mxu0 0
  %137 = vmatpush1.bf16.msra.mxu0 0
  %138 = vmatprep.subr.bf16.mxu0 0
  %139 = vmatpush1.bf16.msra.mxu0 0
  %140 = vmatprep.subr.bf16.mxu0 0
  %141 = vmatpush1.bf16.msra.mxu0 0
  %142 = vmatprep.subr.bf16.mxu0 0
  %143 = vmatpush1.bf16.msra.mxu0 0
  %144 = vmatprep.subr.bf16.mxu0 0
  %145 = vmatpush1.bf16.msra.mxu0 0
  %146 = vmatprep.subr.bf16.mxu0 0
  %147 = vmatpush1.bf16.msra.mxu0 0
  %148 = vmatprep.subr.bf16.mxu0 0
  %149 = vmatpush1.bf16.msra.mxu0 0
  %150 = vmatprep.mubr.bf16.mxu0 %v116
  %151 = vmatmul.mubr.bf16.gmra.mrb[0].mxu0 %v57
  %v152 = vpop.f32.mrb[0].mxu0
  %v153 = vadd.f32 0.0, %v152
  %v154 = vpop.f32.mrb[0].mxu0
  %v155 = vpop.f32.mrb[0].mxu0
  %v156 = vadd.f32 0.0, %v155
  %v157 = vpop.f32.mrb[0].mxu0
  %158 = vdwg.mxu0
  %v159 = vld [vmem:[%s2] sm:$0x1]
  %v161 = vlaneseq
  %v162 = vshrl.u32 %v161, 7
  %v163 = vsub.s32 0, %v162
  %v164 = vrot.slane %v159, %v163
  %v166 = vmul.f32 %v153, %v164
  %v167 = vmul.f32 %v156, %v164
  %v168 = vld [vmem:[%s3] sm:$0x1]
  %v170 = vlaneseq
  %v171 = vshrl.u32 %v170, 7
  %v172 = vsub.s32 0, %v171
  %v173 = vrot.slane %v168, %v172
  %v175 = vadd.f32 %v166, %v173
  %v176 = vadd.f32 %v167, %v173
  %v177 = vmax.f32 %v175, 0.0
  %v178 = vmax.f32 %v176, 0.0
  %v179 = vpack.c.bf16 %v178, %v177
  %v180 = vld [vmem:[%s4] sm:$0x3]
  %vm181 = vcmask 31744
  %v183 = vsel %vm181, %v179, 0
  %vm185 = vcmask 1041408
  %v187 = vsel %vm185, %v180, 0
  %189 = vmatprep.subr.bf16.mxu0 0
  %190 = vmatpush1.bf16.msra.mxu0 %v187
  %191 = vmatprep.subr.bf16.mxu0 0
  %192 = vmatpush1.bf16.msra.mxu0 0
  %193 = vmatprep.subr.bf16.mxu0 0
  %194 = vmatpush1.bf16.msra.mxu0 0
  %195 = vmatprep.subr.bf16.mxu0 0
  %196 = vmatpush1.bf16.msra.mxu0 0
  %197 = vmatprep.subr.bf16.mxu0 0
  %198 = vmatpush1.bf16.msra.mxu0 0
  %199 = vmatprep.subr.bf16.mxu0 0
  %200 = vmatpush1.bf16.msra.mxu0 0
  %201 = vmatprep.subr.bf16.mxu0 0
  %202 = vmatpush1.bf16.msra.mxu0 0
  %203 = vmatprep.subr.bf16.mxu0 0
  %204 = vmatpush1.bf16.msra.mxu0 0
  %205 = vmatprep.subr.bf16.mxu0 0
  %206 = vmatpush1.bf16.msra.mxu0 0
  %207 = vmatprep.subr.bf16.mxu0 0
  %208 = vmatpush1.bf16.msra.mxu0 0
  %209 = vmatprep.subr.bf16.mxu0 0
  %210 = vmatpush1.bf16.msra.mxu0 0
  %211 = vmatprep.subr.bf16.mxu0 0
  %212 = vmatpush1.bf16.msra.mxu0 0
  %213 = vmatprep.subr.bf16.mxu0 0
  %214 = vmatpush1.bf16.msra.mxu0 0
  %215 = vmatprep.subr.bf16.mxu0 0
  %216 = vmatpush1.bf16.msra.mxu0 0
  %217 = vmatprep.subr.bf16.mxu0 0
  %218 = vmatpush1.bf16.msra.mxu0 0
  %219 = vmatprep.subr.bf16.mxu0 0
  %220 = vmatpush1.bf16.msra.mxu0 0
  %221 = vmatprep.mubr.bf16.mxu0 0
  %222 = vmatmul.mubr.bf16.gmra.mrb[0].mxu0 %v183
  %v223 = vpop.f32.mrb[0].mxu0
  %v224 = vadd.f32 0.0, %v223
  %v225 = vpop.f32.mrb[0].mxu0
  %v226 = vpop.f32.mrb[0].mxu0
  %v227 = vadd.f32 0.0, %v226
  %v228 = vpop.f32.mrb[0].mxu0
  %229 = vdwg.mxu0
  %v230 = vld [vmem:[%s5] sm:$0x1]
  %v232 = vlaneseq
  %v233 = vshrl.u32 %v232, 7
  %v234 = vsub.s32 0, %v233
  %v235 = vrot.slane %v230, %v234
  %v237 = vmul.f32 %v224, %v235
  %v238 = vmul.f32 %v227, %v235
  %v239 = vld [vmem:[%s6] sm:$0x1]
  %v241 = vlaneseq
  %v242 = vshrl.u32 %v241, 7
  %v243 = vsub.s32 0, %v242
  %v244 = vrot.slane %v239, %v243
  %v246 = vadd.f32 %v237, %v244
  %v247 = vadd.f32 %v238, %v244
  %250 = vrot.lane.b32.xlu0 %v29, 64
  %v251 = vpop.permute.xlu0 %250
  %252 = vrot.lane.b32.xlu0 %v30, 64
  %v253 = vpop.permute.xlu0 %252
  %v256 = vadd.f32 %v246, %v251
  %v257 = vadd.f32 %v247, %v253
  %v258 = vpack.c.bf16 %v257, %v256
  %v260 = vunpack.c.l.b16 %v258
  %v261 = vunpack.c.h.b16 %v258
  %v262 = vpack.c.b16 %v260, %v260
  %v263 = vpack.c.b16 %v261, %v261
  %vm266 = vcmask 125952
  %267 = vst.msk [vmem:[%s7] sm:$0xf] %vm266, %v262
  %268 = vst.msk [vmem:[%s7 + $0x4] sm:$0xf] %vm266, %v263
  // Predicated region
  $region30: #{vqvae2_forward.27} parent=0 // pred_check
    _
  $region31: #{vqvae2_forward.27} parent=0 // pred_check_branch
    %270 = sbr.rel (0) target = $region33
  $region32: #{vqvae2_forward.27} parent=0 // pred_region
    _
  $region33: #{vqvae2_forward.27} parent=0 // pred_fallthru
    _
  // Predicated region
  $region34: #{vqvae2_forward.27} parent=0 // pred_check
    _
  $region35: #{vqvae2_forward.27} parent=0 // pred_check_branch
    %272 = sbr.rel (0) target = $region37
  $region36: #{vqvae2_forward.27} parent=0 // pred_region
    _
  $region37: #{vqvae2_forward.27} parent=0 // pred_fallthru
    _

// kernel: vqvae2_forward.28
$region0: #{vqvae2_forward.28}
  #allocation0 [shape = 'u32[]', space=smem, size = 0x4, offset = 0x4, fixed_abs, tag = 'smem constant byte address 0x4 - core index']
  #allocation1 [shape = 'u32[144,128]{1,0:T(1,128)}', space=vmem, size = 0x12000, scoped, tag = 'internal scratch']
  %s0 = inlined_call_operand.vmem [shape: bf16[16,144], index: 0, kind: input, shape index: {}]
  %s1 = inlined_call_operand.vmem [shape: bf16[144,4], index: 1, kind: input, shape index: {}]
  %s2 = inlined_call_operand.vmem [shape: f32[1,4], index: 2, kind: input, shape index: {}]
  %s3 = inlined_call_operand.vmem [shape: f32[1,4], index: 3, kind: input, shape index: {}]
  %s4 = inlined_call_operand.vmem [shape: bf16[4,16], index: 4, kind: input, shape index: {}]
  %s5 = inlined_call_operand.vmem [shape: f32[1,16], index: 5, kind: input, shape index: {}]
  %s6 = inlined_call_operand.vmem [shape: f32[1,16], index: 6, kind: input, shape index: {}]
  %s7 = inlined_call_operand.vmem [shape: bf16[16,16], index: 7, kind: output, shape index: {}]
  %s8 = sld [smem:[#allocation0]]
  $region38: #{vqvae2_forward.28} parent=0
    _
  %s10 = ssub.s32 1, %s8
  %s11 = scalar_select 0, %s10, %s8
  // Predicated region
  $region2: #{vqvae2_forward.28} parent=0 // pred_check
    _
  $region3: #{vqvae2_forward.28} parent=0 // pred_check_branch
    %13 = sbr.rel (0) target = $region5
  $region4: #{vqvae2_forward.28} parent=0 // pred_region
    _
  $region5: #{vqvae2_forward.28} parent=0 // pred_fallthru
    _
  // Predicated region
  $region6: #{vqvae2_forward.28} parent=0 // pred_check
    _
  $region7: #{vqvae2_forward.28} parent=0 // pred_check_branch
    %15 = sbr.rel (0) target = $region9
  $region8: #{vqvae2_forward.28} parent=0 // pred_region
    _
  $region9: #{vqvae2_forward.28} parent=0 // pred_fallthru
    _
  // Predicated region
  $region10: #{vqvae2_forward.28} parent=0 // pred_check
    _
  $region11: #{vqvae2_forward.28} parent=0 // pred_check_branch
    %17 = sbr.rel (0) target = $region13
  $region12: #{vqvae2_forward.28} parent=0 // pred_region
    _
  $region13: #{vqvae2_forward.28} parent=0 // pred_fallthru
    _
  // Predicated region
  $region14: #{vqvae2_forward.28} parent=0 // pred_check
    _
  $region15: #{vqvae2_forward.28} parent=0 // pred_check_branch
    %19 = sbr.rel (0) target = $region17
  $region16: #{vqvae2_forward.28} parent=0 // pred_region
    _
  $region17: #{vqvae2_forward.28} parent=0 // pred_fallthru
    _
  // Predicated region
  $region18: #{vqvae2_forward.28} parent=0 // pred_check
    _
  $region19: #{vqvae2_forward.28} parent=0 // pred_check_branch
    %21 = sbr.rel (0) target = $region21
  $region20: #{vqvae2_forward.28} parent=0 // pred_region
    _
  $region21: #{vqvae2_forward.28} parent=0 // pred_fallthru
    _
  // Predicated region
  $region22: #{vqvae2_forward.28} parent=0 // pred_check
    _
  $region23: #{vqvae2_forward.28} parent=0 // pred_check_branch
    %23 = sbr.rel (0) target = $region25
  $region24: #{vqvae2_forward.28} parent=0 // pred_region
    _
  $region25: #{vqvae2_forward.28} parent=0 // pred_fallthru
    _
  // Predicated region
  $region26: #{vqvae2_forward.28} parent=0 // pred_check
    _
  $region27: #{vqvae2_forward.28} parent=0 // pred_check_branch
    %25 = sbr.rel (0) target = $region29
  $region28: #{vqvae2_forward.28} parent=0 // pred_region
    _
  $region29: #{vqvae2_forward.28} parent=0 // pred_fallthru
    _
  %v27 = vld [vmem:[%s0] sm:$0xff]
  %v28 = vld [vmem:[%s0 + $0x8] sm:$0xff]
  %v29 = vunpack.c.l.bf16 %v27
  %v30 = vunpack.c.l.bf16 %v28
  %v31 = vmax.bf16 %v27, 0
  %v32 = vmax.bf16 %v28, 0
  %v33 = vld [vmem:[%s1] sm:$0xf]
  %v34 = vld [vmem:[%s1 + $0x4] sm:$0xf]
  %v35 = vld [vmem:[%s1 + $0x8] sm:$0xf]
  %v36 = vld [vmem:[%s1 + $0xc] sm:$0xf]
  %v37 = vld [vmem:[%s1 + $0x10] sm:$0xf]
  %v38 = vld [vmem:[%s1 + $0x14] sm:$0xf]
  %v39 = vld [vmem:[%s1 + $0x18] sm:$0xf]
  %v40 = vld [vmem:[%s1 + $0x1c] sm:$0xf]
  %v41 = vld [vmem:[%s1 + $0x20] sm:$0xf]
  %v42 = vld [vmem:[%s1 + $0x24] sm:$0xf]
  %v43 = vld [vmem:[%s1 + $0x28] sm:$0xf]
  %v44 = vld [vmem:[%s1 + $0x2c] sm:$0xf]
  %v45 = vld [vmem:[%s1 + $0x30] sm:$0xf]
  %v46 = vld [vmem:[%s1 + $0x34] sm:$0xf]
  %v47 = vld [vmem:[%s1 + $0x38] sm:$0xf]
  %v48 = vld [vmem:[%s1 + $0x3c] sm:$0xf]
  %v49 = vld [vmem:[%s1 + $0x40] sm:$0xf]
  %v50 = vld [vmem:[%s1 + $0x44] sm:$0xf]
  %v53 = vunpack.c.l.b16 %v31
  %v54 = vunpack.c.h.b16 %v31
  %v55 = vunpack.c.l.b16 %v32
  %v56 = vunpack.c.h.b16 %v32
  %v57 = vpack.c.b16 %v55, %v53
  %v58 = vpack.c.b16 %v56, %v54
  %v78 = vunpack.c.l.b16 %v33
  %v79 = vunpack.c.l.b16 %v34
  %v80 = vunpack.c.l.b16 %v35
  %v81 = vunpack.c.l.b16 %v36
  %v82 = vunpack.c.l.b16 %v37
  %v83 = vunpack.c.l.b16 %v38
  %v84 = vunpack.c.l.b16 %v39
  %v85 = vunpack.c.l.b16 %v40
  %v86 = vunpack.c.l.b16 %v41
  %v87 = vunpack.c.l.b16 %v42
  %v88 = vunpack.c.l.b16 %v43
  %v89 = vunpack.c.l.b16 %v44
  %v90 = vunpack.c.l.b16 %v45
  %v91 = vunpack.c.l.b16 %v46
  %v92 = vunpack.c.l.b16 %v47
  %v93 = vunpack.c.l.b16 %v48
  %v94 = vunpack.c.l.b16 %v49
  %v95 = vunpack.c.l.b16 %v50
  %v96 = vpack.c.b16 %v79, %v78
  %v97 = vpack.c.b16 %v81, %v80
  %v98 = vpack.c.b16 %v83, %v82
  %v99 = vpack.c.b16 %v85, %v84
  %v100 = vpack.c.b16 %v87, %v86
  %v101 = vpack.c.b16 %v89, %v88
  %v102 = vpack.c.b16 %v91, %v90
  %v103 = vpack.c.b16 %v93, %v92
  %v104 = vpack.c.b16 %v95, %v94
  %vm114 = vcmask 130048
  %v116 = vsel %vm114, %v58, 0
  %118 = vmatprep.subr.bf16.mxu0 0
  %119 = vmatpush1.bf16.msra.mxu0 %v96
  %120 = vmatprep.subr.bf16.mxu0 0
  %121 = vmatpush1.bf16.msra.mxu0 %v97
  %122 = vmatprep.subr.bf16.mxu0 0
  %123 = vmatpush1.bf16.msra.mxu0 %v98
  %124 = vmatprep.subr.bf16.mxu0 0
  %125 = vmatpush1.bf16.msra.mxu0 %v99
  %126 = vmatprep.subr.bf16.mxu0 0
  %127 = vmatpush1.bf16.msra.mxu0 %v100
  %128 = vmatprep.subr.bf16.mxu0 0
  %129 = vmatpush1.bf16.msra.mxu0 %v101
  %130 = vmatprep.subr.bf16.mxu0 0
  %131 = vmatpush1.bf16.msra.mxu0 %v102
  %132 = vmatprep.subr.bf16.mxu0 0
  %133 = vmatpush1.bf16.msra.mxu0 %v103
  %134 = vmatprep.subr.bf16.mxu0 0
  %135 = vmatpush1.bf16.msra.mxu0 %v104
  %136 = vmatprep.subr.bf16.mxu0 0
  %137 = vmatpush1.bf16.msra.mxu0 0
  %138 = vmatprep.subr.bf16.mxu0 0
  %139 = vmatpush1.bf16.msra.mxu0 0
  %140 = vmatprep.subr.bf16.mxu0 0
  %141 = vmatpush1.bf16.msra.mxu0 0
  %142 = vmatprep.subr.bf16.mxu0 0
  %143 = vmatpush1.bf16.msra.mxu0 0
  %144 = vmatprep.subr.bf16.mxu0 0
  %145 = vmatpush1.bf16.msra.mxu0 0
  %146 = vmatprep.subr.bf16.mxu0 0
  %147 = vmatpush1.bf16.msra.mxu0 0
  %148 = vmatprep.subr.bf16.mxu0 0
  %149 = vmatpush1.bf16.msra.mxu0 0
  %150 = vmatprep.mubr.bf16.mxu0 %v116
  %151 = vmatmul.mubr.bf16.gmra.mrb[0].mxu0 %v57
  %v152 = vpop.f32.mrb[0].mxu0
  %v153 = vadd.f32 0.0, %v152
  %v154 = vpop.f32.mrb[0].mxu0
  %v155 = vpop.f32.mrb[0].mxu0
  %v156 = vadd.f32 0.0, %v155
  %v157 = vpop.f32.mrb[0].mxu0
  %158 = vdwg.mxu0
  %v159 = vld [vmem:[%s2] sm:$0x1]
  %v161 = vlaneseq
  %v162 = vshrl.u32 %v161, 7
  %v163 = vsub.s32 0, %v162
  %v164 = vrot.slane %v159, %v163
  %v166 = vmul.f32 %v153, %v164
  %v167 = vmul.f32 %v156, %v164
  %v168 = vld [vmem:[%s3] sm:$0x1]
  %v170 = vlaneseq
  %v171 = vshrl.u32 %v170, 7
  %v172 = vsub.s32 0, %v171
  %v173 = vrot.slane %v168, %v172
  %v175 = vadd.f32 %v166, %v173
  %v176 = vadd.f32 %v167, %v173
  %v177 = vmax.f32 %v175, 0.0
  %v178 = vmax.f32 %v176, 0.0
  %v179 = vpack.c.bf16 %v178, %v177
  %v180 = vld [vmem:[%s4] sm:$0x3]
  %vm181 = vcmask 31744
  %v183 = vsel %vm181, %v179, 0
  %vm185 = vcmask 1041408
  %v187 = vsel %vm185, %v180, 0
  %189 = vmatprep.subr.bf16.mxu0 0
  %190 = vmatpush1.bf16.msra.mxu0 %v187
  %191 = vmatprep.subr.bf16.mxu0 0
  %192 = vmatpush1.bf16.msra.mxu0 0
  %193 = vmatprep.subr.bf16.mxu0 0
  %194 = vmatpush1.bf16.msra.mxu0 0
  %195 = vmatprep.subr.bf16.mxu0 0
  %196 = vmatpush1.bf16.msra.mxu0 0
  %197 = vmatprep.subr.bf16.mxu0 0
  %198 = vmatpush1.bf16.msra.mxu0 0
  %199 = vmatprep.subr.bf16.mxu0 0
  %200 = vmatpush1.bf16.msra.mxu0 0
  %201 = vmatprep.subr.bf16.mxu0 0
  %202 = vmatpush1.bf16.msra.mxu0 0
  %203 = vmatprep.subr.bf16.mxu0 0
  %204 = vmatpush1.bf16.msra.mxu0 0
  %205 = vmatprep.subr.bf16.mxu0 0
  %206 = vmatpush1.bf16.msra.mxu0 0
  %207 = vmatprep.subr.bf16.mxu0 0
  %208 = vmatpush1.bf16.msra.mxu0 0
  %209 = vmatprep.subr.bf16.mxu0 0
  %210 = vmatpush1.bf16.msra.mxu0 0
  %211 = vmatprep.subr.bf16.mxu0 0
  %212 = vmatpush1.bf16.msra.mxu0 0
  %213 = vmatprep.subr.bf16.mxu0 0
  %214 = vmatpush1.bf16.msra.mxu0 0
  %215 = vmatprep.subr.bf16.mxu0 0
  %216 = vmatpush1.bf16.msra.mxu0 0
  %217 = vmatprep.subr.bf16.mxu0 0
  %218 = vmatpush1.bf16.msra.mxu0 0
  %219 = vmatprep.subr.bf16.mxu0 0
  %220 = vmatpush1.bf16.msra.mxu0 0
  %221 = vmatprep.mubr.bf16.mxu0 0
  %222 = vmatmul.mubr.bf16.gmra.mrb[0].mxu0 %v183
  %v223 = vpop.f32.mrb[0].mxu0
  %v224 = vadd.f32 0.0, %v223
  %v225 = vpop.f32.mrb[0].mxu0
  %v226 = vpop.f32.mrb[0].mxu0
  %v227 = vadd.f32 0.0, %v226
  %v228 = vpop.f32.mrb[0].mxu0
  %229 = vdwg.mxu0
  %v230 = vld [vmem:[%s5] sm:$0x1]
  %v232 = vlaneseq
  %v233 = vshrl.u32 %v232, 7
  %v234 = vsub.s32 0, %v233
  %v235 = vrot.slane %v230, %v234
  %v237 = vmul.f32 %v224, %v235
  %v238 = vmul.f32 %v227, %v235
  %v239 = vld [vmem:[%s6] sm:$0x1]
  %v241 = vlaneseq
  %v242 = vshrl.u32 %v241, 7
  %v243 = vsub.s32 0, %v242
  %v244 = vrot.slane %v239, %v243
  %v246 = vadd.f32 %v237, %v244
  %v247 = vadd.f32 %v238, %v244
  %250 = vrot.lane.b32.xlu0 %v29, 64
  %v251 = vpop.permute.xlu0 %250
  %252 = vrot.lane.b32.xlu0 %v30, 64
  %v253 = vpop.permute.xlu0 %252
  %v256 = vadd.f32 %v246, %v251
  %v257 = vadd.f32 %v247, %v253
  %v258 = vmax.f32 %v256, 0.0
  %v259 = vmax.f32 %v257, 0.0
  %v260 = vpack.c.bf16 %v259, %v258
  %v262 = vunpack.c.l.b16 %v260
  %v263 = vunpack.c.h.b16 %v260
  %v264 = vpack.c.b16 %v262, %v262
  %v265 = vpack.c.b16 %v263, %v263
  %vm268 = vcmask 125952
  %269 = vst.msk [vmem:[%s7] sm:$0xf] %vm268, %v264
  %270 = vst.msk [vmem:[%s7 + $0x4] sm:$0xf] %vm268, %v265
  // Predicated region
  $region30: #{vqvae2_forward.28} parent=0 // pred_check
    _
  $region31: #{vqvae2_forward.28} parent=0 // pred_check_branch
    %272 = sbr.rel (0) target = $region33
  $region32: #{vqvae2_forward.28} parent=0 // pred_region
    _
  $region33: #{vqvae2_forward.28} parent=0 // pred_fallthru
    _
  // Predicated region
  $region34: #{vqvae2_forward.28} parent=0 // pred_check
    _
  $region35: #{vqvae2_forward.28} parent=0 // pred_check_branch
    %274 = sbr.rel (0) target = $region37
  $region36: #{vqvae2_forward.28} parent=0 // pred_region
    _
  $region37: #{vqvae2_forward.28} parent=0 // pred_fallthru
    _

// kernel: vqvae2_forward.29
$region0: #{vqvae2_forward.29}
  #allocation0 [shape = 'u32[]', space=smem, size = 0x4, offset = 0x4, fixed_abs, tag = 'smem constant byte address 0x4 - core index']
  #allocation1 [shape = 'u32[144,128]{1,0:T(1,128)}', space=vmem, size = 0x12000, scoped, tag = 'internal scratch']
  %s0 = inlined_call_operand.vmem [shape: bf16[4,256], index: 0, kind: input, shape index: {}]
  %s1 = inlined_call_operand.vmem [shape: bf16[256,8], index: 1, kind: input, shape index: {}]
  %s2 = inlined_call_operand.vmem [shape: f32[1,8], index: 2, kind: input, shape index: {}]
  %s3 = inlined_call_operand.vmem [shape: f32[1,8], index: 3, kind: input, shape index: {}]
  %s4 = inlined_call_operand.vmem [shape: bf16[4,8], index: 4, kind: output, shape index: {}]
  %s5 = sld [smem:[#allocation0]]
  $region26: #{vqvae2_forward.29} parent=0
    _
  %s7 = ssub.s32 1, %s5
  %s8 = scalar_select 0, %s7, %s5
  // Predicated region
  $region2: #{vqvae2_forward.29} parent=0 // pred_check
    _
  $region3: #{vqvae2_forward.29} parent=0 // pred_check_branch
    %10 = sbr.rel (0) target = $region5
  $region4: #{vqvae2_forward.29} parent=0 // pred_region
    _
  $region5: #{vqvae2_forward.29} parent=0 // pred_fallthru
    _
  // Predicated region
  $region6: #{vqvae2_forward.29} parent=0 // pred_check
    _
  $region7: #{vqvae2_forward.29} parent=0 // pred_check_branch
    %12 = sbr.rel (0) target = $region9
  $region8: #{vqvae2_forward.29} parent=0 // pred_region
    _
  $region9: #{vqvae2_forward.29} parent=0 // pred_fallthru
    _
  // Predicated region
  $region10: #{vqvae2_forward.29} parent=0 // pred_check
    _
  $region11: #{vqvae2_forward.29} parent=0 // pred_check_branch
    %14 = sbr.rel (0) target = $region13
  $region12: #{vqvae2_forward.29} parent=0 // pred_region
    _
  $region13: #{vqvae2_forward.29} parent=0 // pred_fallthru
    _
  // Predicated region
  $region14: #{vqvae2_forward.29} parent=0 // pred_check
    _
  $region15: #{vqvae2_forward.29} parent=0 // pred_check_branch
    %16 = sbr.rel (0) target = $region17
  $region16: #{vqvae2_forward.29} parent=0 // pred_region
    _
  $region17: #{vqvae2_forward.29} parent=0 // pred_fallthru
    _
  %v18 = vld [vmem:[%s0] sm:$0xf]
  %v19 = vld [vmem:[%s1] sm:$0xf]
  %v20 = vld [vmem:[%s1 + $0x4] sm:$0xf]
  %v21 = vld [vmem:[%s1 + $0x8] sm:$0xf]
  %v22 = vld [vmem:[%s1 + $0xc] sm:$0xf]
  %v23 = vld [vmem:[%s1 + $0x10] sm:$0xf]
  %v24 = vld [vmem:[%s1 + $0x14] sm:$0xf]
  %v25 = vld [vmem:[%s1 + $0x18] sm:$0xf]
  %v26 = vld [vmem:[%s1 + $0x1c] sm:$0xf]
  %v27 = vld [vmem:[%s1 + $0x20] sm:$0xf]
  %v28 = vld [vmem:[%s1 + $0x24] sm:$0xf]
  %v29 = vld [vmem:[%s1 + $0x28] sm:$0xf]
  %v30 = vld [vmem:[%s1 + $0x2c] sm:$0xf]
  %v31 = vld [vmem:[%s1 + $0x30] sm:$0xf]
  %v32 = vld [vmem:[%s1 + $0x34] sm:$0xf]
  %v33 = vld [vmem:[%s1 + $0x38] sm:$0xf]
  %v34 = vld [vmem:[%s1 + $0x3c] sm:$0xf]
  %v35 = vld [vmem:[%s1 + $0x40] sm:$0xf]
  %v36 = vld [vmem:[%s1 + $0x44] sm:$0xf]
  %v37 = vld [vmem:[%s1 + $0x48] sm:$0xf]
  %v38 = vld [vmem:[%s1 + $0x4c] sm:$0xf]
  %v39 = vld [vmem:[%s1 + $0x50] sm:$0xf]
  %v40 = vld [vmem:[%s1 + $0x54] sm:$0xf]
  %v41 = vld [vmem:[%s1 + $0x58] sm:$0xf]
  %v42 = vld [vmem:[%s1 + $0x5c] sm:$0xf]
  %v43 = vld [vmem:[%s1 + $0x60] sm:$0xf]
  %v44 = vld [vmem:[%s1 + $0x64] sm:$0xf]
  %v45 = vld [vmem:[%s1 + $0x68] sm:$0xf]
  %v46 = vld [vmem:[%s1 + $0x6c] sm:$0xf]
  %v47 = vld [vmem:[%s1 + $0x70] sm:$0xf]
  %v48 = vld [vmem:[%s1 + $0x74] sm:$0xf]
  %v49 = vld [vmem:[%s1 + $0x78] sm:$0xf]
  %v50 = vld [vmem:[%s1 + $0x7c] sm:$0xf]
  %v53 = vunpack.c.l.s4 1983009808
  %v54 = vunpack.c.0.s8 %v53
  %v55 = vlaneseq
  %v56 = vshrl.u32 %v55, 7
  %v57 = vsub.s32 %v54, %v56
  %v58 = vrot.slane %v18, %v57
  %v59 = vcombine.high %v58, %v58
  %v94 = vunpack.c.l.b16 %v19
  %v95 = vunpack.c.l.b16 %v20
  %v96 = vunpack.c.l.b16 %v21
  %v97 = vunpack.c.l.b16 %v22
  %v98 = vunpack.c.l.b16 %v23
  %v99 = vunpack.c.l.b16 %v24
  %v100 = vunpack.c.l.b16 %v25
  %v101 = vunpack.c.l.b16 %v26
  %v102 = vunpack.c.l.b16 %v27
  %v103 = vunpack.c.l.b16 %v28
  %v104 = vunpack.c.l.b16 %v29
  %v105 = vunpack.c.l.b16 %v30
  %v106 = vunpack.c.l.b16 %v31
  %v107 = vunpack.c.l.b16 %v32
  %v108 = vunpack.c.l.b16 %v33
  %v109 = vunpack.c.l.b16 %v34
  %v110 = vunpack.c.l.b16 %v35
  %v111 = vunpack.c.l.b16 %v36
  %v112 = vunpack.c.l.b16 %v37
  %v113 = vunpack.c.l.b16 %v38
  %v114 = vunpack.c.l.b16 %v39
  %v115 = vunpack.c.l.b16 %v40
  %v116 = vunpack.c.l.b16 %v41
  %v117 = vunpack.c.l.b16 %v42
  %v118 = vunpack.c.l.b16 %v43
  %v119 = vunpack.c.l.b16 %v44
  %v120 = vunpack.c.l.b16 %v45
  %v121 = vunpack.c.l.b16 %v46
  %v122 = vunpack.c.l.b16 %v47
  %v123 = vunpack.c.l.b16 %v48
  %v124 = vunpack.c.l.b16 %v49
  %v125 = vunpack.c.l.b16 %v50
  %v126 = vpack.c.b16 %v95, %v94
  %v127 = vpack.c.b16 %v97, %v96
  %v128 = vpack.c.b16 %v99, %v98
  %v129 = vpack.c.b16 %v101, %v100
  %v130 = vpack.c.b16 %v103, %v102
  %v131 = vpack.c.b16 %v105, %v104
  %v132 = vpack.c.b16 %v107, %v106
  %v133 = vpack.c.b16 %v109, %v108
  %v134 = vpack.c.b16 %v111, %v110
  %v135 = vpack.c.b16 %v113, %v112
  %v136 = vpack.c.b16 %v115, %v114
  %v137 = vpack.c.b16 %v117, %v116
  %v138 = vpack.c.b16 %v119, %v118
  %v139 = vpack.c.b16 %v121, %v120
  %v140 = vpack.c.b16 %v123, %v122
  %v141 = vpack.c.b16 %v125, %v124
  %158 = vmatprep.subr.bf16.mxu0 0
  %159 = vmatpush1.bf16.msra.mxu0 %v126
  %160 = vmatprep.subr.bf16.mxu0 0
  %161 = vmatpush1.bf16.msra.mxu0 %v127
  %162 = vmatprep.subr.bf16.mxu0 0
  %163 = vmatpush1.bf16.msra.mxu0 %v128
  %164 = vmatprep.subr.bf16.mxu0 0
  %165 = vmatpush1.bf16.msra.mxu0 %v129
  %166 = vmatprep.subr.bf16.mxu0 0
  %167 = vmatpush1.bf16.msra.mxu0 %v130
  %168 = vmatprep.subr.bf16.mxu0 0
  %169 = vmatpush1.bf16.msra.mxu0 %v131
  %170 = vmatprep.subr.bf16.mxu0 0
  %171 = vmatpush1.bf16.msra.mxu0 %v132
  %172 = vmatprep.subr.bf16.mxu0 0
  %173 = vmatpush1.bf16.msra.mxu0 %v133
  %174 = vmatprep.subr.bf16.mxu0 0
  %175 = vmatpush1.bf16.msra.mxu0 %v134
  %176 = vmatprep.subr.bf16.mxu0 0
  %177 = vmatpush1.bf16.msra.mxu0 %v135
  %178 = vmatprep.subr.bf16.mxu0 0
  %179 = vmatpush1.bf16.msra.mxu0 %v136
  %180 = vmatprep.subr.bf16.mxu0 0
  %181 = vmatpush1.bf16.msra.mxu0 %v137
  %182 = vmatprep.subr.bf16.mxu0 0
  %183 = vmatpush1.bf16.msra.mxu0 %v138
  %184 = vmatprep.subr.bf16.mxu0 0
  %185 = vmatpush1.bf16.msra.mxu0 %v139
  %186 = vmatprep.subr.bf16.mxu0 0
  %187 = vmatpush1.bf16.msra.mxu0 %v140
  %188 = vmatprep.subr.bf16.mxu0 0
  %189 = vmatpush1.bf16.msra.mxu0 %v141
  %190 = vmatprep.mubr.bf16.mxu0 %v59
  %191 = vmatmul.mubr.bf16.gmra.mrb[0].mxu0 %v58
  %v192 = vpop.f32.mrb[0].mxu0
  %v193 = vadd.f32 0.0, %v192
  %v194 = vpop.f32.mrb[0].mxu0
  %v195 = vpop.f32.mrb[0].mxu0
  %v196 = vpop.f32.mrb[0].mxu0
  %197 = vdwg.mxu0
  %v198 = vld [vmem:[%s2] sm:$0x1]
  %v200 = vlaneseq
  %v201 = vshrl.u32 %v200, 7
  %v202 = vsub.s32 0, %v201
  %v203 = vrot.slane %v198, %v202
  %v205 = vmul.f32 %v193, %v203
  %v206 = vld [vmem:[%s3] sm:$0x1]
  %v208 = vlaneseq
  %v209 = vshrl.u32 %v208, 7
  %v210 = vsub.s32 0, %v209
  %v211 = vrot.slane %v206, %v210
  %v213 = vadd.f32 %v205, %v211
  %v214 = vmax.f32 %v213, 0.0
  %v215 = vpack.c.bf16 %v214, %v214
  %vm216 = vcmask 58368
  %217 = vst.msk [vmem:[%s4] sm:$0x3] %vm216, %v215
  // Predicated region
  $region18: #{vqvae2_forward.29} parent=0 // pred_check
    _
  $region19: #{vqvae2_forward.29} parent=0 // pred_check_branch
    %219 = sbr.rel (0) target = $region21
  $region20: #{vqvae2_forward.29} parent=0 // pred_region
    _
  $region21: #{vqvae2_forward.29} parent=0 // pred_fallthru
    _
  // Predicated region
  $region22: #{vqvae2_forward.29} parent=0 // pred_check
    _
  $region23: #{vqvae2_forward.29} parent=0 // pred_check_branch
    %221 = sbr.rel (0) target = $region25
  $region24: #{vqvae2_forward.29} parent=0 // pred_region
    _
  $region25: #{vqvae2_forward.29} parent=0 // pred_fallthru
    _

// kernel: vqvae2_forward.30
$region0: #{vqvae2_forward.30}
  #allocation0 [shape = 'u32[]', space=smem, size = 0x4, offset = 0x4, fixed_abs, tag = 'smem constant byte address 0x4 - core index']
  #allocation1 [shape = 'u32[144,128]{1,0:T(1,128)}', space=vmem, size = 0x12000, scoped, tag = 'internal scratch']
  %s0 = inlined_call_operand.vmem [shape: bf16[4,72], index: 0, kind: input, shape index: {}]
  %s1 = inlined_call_operand.vmem [shape: bf16[72,16], index: 1, kind: input, shape index: {}]
  %s2 = inlined_call_operand.vmem [shape: f32[1,16], index: 2, kind: input, shape index: {}]
  %s3 = inlined_call_operand.vmem [shape: f32[1,16], index: 3, kind: input, shape index: {}]
  %s4 = inlined_call_operand.vmem [shape: bf16[4,16], index: 4, kind: output, shape index: {}]
  %s5 = sld [smem:[#allocation0]]
  $region26: #{vqvae2_forward.30} parent=0
    _
  %s7 = ssub.s32 1, %s5
  %s8 = scalar_select 0, %s7, %s5
  // Predicated region
  $region2: #{vqvae2_forward.30} parent=0 // pred_check
    _
  $region3: #{vqvae2_forward.30} parent=0 // pred_check_branch
    %10 = sbr.rel (0) target = $region5
  $region4: #{vqvae2_forward.30} parent=0 // pred_region
    _
  $region5: #{vqvae2_forward.30} parent=0 // pred_fallthru
    _
  // Predicated region
  $region6: #{vqvae2_forward.30} parent=0 // pred_check
    _
  $region7: #{vqvae2_forward.30} parent=0 // pred_check_branch
    %12 = sbr.rel (0) target = $region9
  $region8: #{vqvae2_forward.30} parent=0 // pred_region
    _
  $region9: #{vqvae2_forward.30} parent=0 // pred_fallthru
    _
  // Predicated region
  $region10: #{vqvae2_forward.30} parent=0 // pred_check
    _
  $region11: #{vqvae2_forward.30} parent=0 // pred_check_branch
    %14 = sbr.rel (0) target = $region13
  $region12: #{vqvae2_forward.30} parent=0 // pred_region
    _
  $region13: #{vqvae2_forward.30} parent=0 // pred_fallthru
    _
  // Predicated region
  $region14: #{vqvae2_forward.30} parent=0 // pred_check
    _
  $region15: #{vqvae2_forward.30} parent=0 // pred_check_branch
    %16 = sbr.rel (0) target = $region17
  $region16: #{vqvae2_forward.30} parent=0 // pred_region
    _
  $region17: #{vqvae2_forward.30} parent=0 // pred_fallthru
    _
  %v18 = vld [vmem:[%s0] sm:$0x3]
  %v19 = vld [vmem:[%s1] sm:$0xf]
  %v20 = vld [vmem:[%s1 + $0x4] sm:$0xf]
  %v21 = vld [vmem:[%s1 + $0x8] sm:$0xf]
  %v22 = vld [vmem:[%s1 + $0xc] sm:$0xf]
  %v23 = vld [vmem:[%s1 + $0x10] sm:$0xf]
  %v24 = vld [vmem:[%s1 + $0x14] sm:$0xf]
  %v25 = vld [vmem:[%s1 + $0x18] sm:$0xf]
  %v26 = vld [vmem:[%s1 + $0x1c] sm:$0xf]
  %v27 = vld [vmem:[%s1 + $0x20] sm:$0xf]
  %v37 = vunpack.c.l.b16 %v19
  %v38 = vunpack.c.l.b16 %v20
  %v39 = vunpack.c.l.b16 %v21
  %v40 = vunpack.c.l.b16 %v22
  %v41 = vunpack.c.l.b16 %v23
  %v42 = vunpack.c.l.b16 %v24
  %v43 = vunpack.c.l.b16 %v25
  %v44 = vunpack.c.l.b16 %v26
  %v45 = vunpack.c.l.b16 %v27
  %v46 = vpack.c.b16 %v38, %v37
  %v47 = vpack.c.b16 %v40, %v39
  %v48 = vpack.c.b16 %v42, %v41
  %v49 = vpack.c.b16 %v44, %v43
  %v50 = vpack.c.b16 %v45, %v45
  %vm55 = vcmask 588800
  %v57 = vsel %vm55, %v18, 0
  %vm59 = vcmask 1043456
  %v61 = vsel %vm59, %v50, 0
  %63 = vmatprep.subr.bf16.mxu0 0
  %64 = vmatpush1.bf16.msra.mxu0 %v46
  %65 = vmatprep.subr.bf16.mxu0 0
  %66 = vmatpush1.bf16.msra.mxu0 %v47
  %67 = vmatprep.subr.bf16.mxu0 0
  %68 = vmatpush1.bf16.msra.mxu0 %v48
  %69 = vmatprep.subr.bf16.mxu0 0
  %70 = vmatpush1.bf16.msra.mxu0 %v49
  %71 = vmatprep.subr.bf16.mxu0 0
  %72 = vmatpush1.bf16.msra.mxu0 %v61
  %73 = vmatprep.subr.bf16.mxu0 0
  %74 = vmatpush1.bf16.msra.mxu0 0
  %75 = vmatprep.subr.bf16.mxu0 0
  %76 = vmatpush1.bf16.msra.mxu0 0
  %77 = vmatprep.subr.bf16.mxu0 0
  %78 = vmatpush1.bf16.msra.mxu0 0
  %79 = vmatprep.subr.bf16.mxu0 0
  %80 = vmatpush1.bf16.msra.mxu0 0
  %81 = vmatprep.subr.bf16.mxu0 0
  %82 = vmatpush1.bf16.msra.mxu0 0
  %83 = vmatprep.subr.bf16.mxu0 0
  %84 = vmatpush1.bf16.msra.mxu0 0
  %85 = vmatprep.subr.bf16.mxu0 0
  %86 = vmatpush1.bf16.msra.mxu0 0
  %87 = vmatprep.subr.bf16.mxu0 0
  %88 = vmatpush1.bf16.msra.mxu0 0
  %89 = vmatprep.subr.bf16.mxu0 0
  %90 = vmatpush1.bf16.msra.mxu0 0
  %91 = vmatprep.subr.bf16.mxu0 0
  %92 = vmatpush1.bf16.msra.mxu0 0
  %93 = vmatprep.subr.bf16.mxu0 0
  %94 = vmatpush1.bf16.msra.mxu0 0
  %95 = vmatprep.mubr.bf16.mxu0 0
  %96 = vmatmul.mubr.bf16.gmra.mrb[0].mxu0 %v57
  %v97 = vpop.f32.mrb[0].mxu0
  %v98 = vadd.f32 0.0, %v97
  %v99 = vpop.f32.mrb[0].mxu0
  %v100 = vpop.f32.mrb[0].mxu0
  %v101 = vpop.f32.mrb[0].mxu0
  %102 = vdwg.mxu0
  %v103 = vld [vmem:[%s2] sm:$0x1]
  %v105 = vlaneseq
  %v106 = vshrl.u32 %v105, 7
  %v107 = vsub.s32 0, %v106
  %v108 = vrot.slane %v103, %v107
  %v110 = vmul.f32 %v98, %v108
  %v111 = vld [vmem:[%s3] sm:$0x1]
  %v113 = vlaneseq
  %v114 = vshrl.u32 %v113, 7
  %v115 = vsub.s32 0, %v114
  %v116 = vrot.slane %v111, %v115
  %v118 = vadd.f32 %v110, %v116
  %v119 = vpack.c.bf16 %v118, %v118
  %vm120 = vcmask 123904
  %121 = vst.msk [vmem:[%s4] sm:$0x3] %vm120, %v119
  // Predicated region
  $region18: #{vqvae2_forward.30} parent=0 // pred_check
    _
  $region19: #{vqvae2_forward.30} parent=0 // pred_check_branch
    %123 = sbr.rel (0) target = $region21
  $region20: #{vqvae2_forward.30} parent=0 // pred_region
    _
  $region21: #{vqvae2_forward.30} parent=0 // pred_fallthru
    _
  // Predicated region
  $region22: #{vqvae2_forward.30} parent=0 // pred_check
    _
  $region23: #{vqvae2_forward.30} parent=0 // pred_check_branch
    %125 = sbr.rel (0) target = $region25
  $region24: #{vqvae2_forward.30} parent=0 // pred_region
    _
  $region25: #{vqvae2_forward.30} parent=0 // pred_fallthru
    _

// kernel: vqvae2_forward.32
$region0: #{vqvae2_forward.32}
  #allocation0 [shape = 'u32[]', space=smem, size = 0x4, offset = 0x4, fixed_abs, tag = 'smem constant byte address 0x4 - core index']
  #allocation1 [shape = 'u32[144,128]{1,0:T(1,128)}', space=vmem, size = 0x12000, scoped, tag = 'internal scratch']
  %s0 = inlined_call_operand.vmem [shape: bf16[4,144], index: 0, kind: input, shape index: {}]
  %s1 = inlined_call_operand.vmem [shape: bf16[144,4], index: 1, kind: input, shape index: {}]
  %s2 = inlined_call_operand.vmem [shape: f32[1,4], index: 2, kind: input, shape index: {}]
  %s3 = inlined_call_operand.vmem [shape: f32[1,4], index: 3, kind: input, shape index: {}]
  %s4 = inlined_call_operand.vmem [shape: bf16[4,16], index: 4, kind: input, shape index: {}]
  %s5 = inlined_call_operand.vmem [shape: f32[1,16], index: 5, kind: input, shape index: {}]
  %s6 = inlined_call_operand.vmem [shape: f32[1,16], index: 6, kind: input, shape index: {}]
  %s7 = inlined_call_operand.vmem [shape: bf16[4,16], index: 7, kind: output, shape index: {}]
  %s8 = sld [smem:[#allocation0]]
  $region38: #{vqvae2_forward.32} parent=0
    _
  %s10 = ssub.s32 1, %s8
  %s11 = scalar_select 0, %s10, %s8
  // Predicated region
  $region2: #{vqvae2_forward.32} parent=0 // pred_check
    _
  $region3: #{vqvae2_forward.32} parent=0 // pred_check_branch
    %13 = sbr.rel (0) target = $region5
  $region4: #{vqvae2_forward.32} parent=0 // pred_region
    _
  $region5: #{vqvae2_forward.32} parent=0 // pred_fallthru
    _
  // Predicated region
  $region6: #{vqvae2_forward.32} parent=0 // pred_check
    _
  $region7: #{vqvae2_forward.32} parent=0 // pred_check_branch
    %15 = sbr.rel (0) target = $region9
  $region8: #{vqvae2_forward.32} parent=0 // pred_region
    _
  $region9: #{vqvae2_forward.32} parent=0 // pred_fallthru
    _
  // Predicated region
  $region10: #{vqvae2_forward.32} parent=0 // pred_check
    _
  $region11: #{vqvae2_forward.32} parent=0 // pred_check_branch
    %17 = sbr.rel (0) target = $region13
  $region12: #{vqvae2_forward.32} parent=0 // pred_region
    _
  $region13: #{vqvae2_forward.32} parent=0 // pred_fallthru
    _
  // Predicated region
  $region14: #{vqvae2_forward.32} parent=0 // pred_check
    _
  $region15: #{vqvae2_forward.32} parent=0 // pred_check_branch
    %19 = sbr.rel (0) target = $region17
  $region16: #{vqvae2_forward.32} parent=0 // pred_region
    _
  $region17: #{vqvae2_forward.32} parent=0 // pred_fallthru
    _
  // Predicated region
  $region18: #{vqvae2_forward.32} parent=0 // pred_check
    _
  $region19: #{vqvae2_forward.32} parent=0 // pred_check_branch
    %21 = sbr.rel (0) target = $region21
  $region20: #{vqvae2_forward.32} parent=0 // pred_region
    _
  $region21: #{vqvae2_forward.32} parent=0 // pred_fallthru
    _
  // Predicated region
  $region22: #{vqvae2_forward.32} parent=0 // pred_check
    _
  $region23: #{vqvae2_forward.32} parent=0 // pred_check_branch
    %23 = sbr.rel (0) target = $region25
  $region24: #{vqvae2_forward.32} parent=0 // pred_region
    _
  $region25: #{vqvae2_forward.32} parent=0 // pred_fallthru
    _
  // Predicated region
  $region26: #{vqvae2_forward.32} parent=0 // pred_check
    _
  $region27: #{vqvae2_forward.32} parent=0 // pred_check_branch
    %25 = sbr.rel (0) target = $region29
  $region28: #{vqvae2_forward.32} parent=0 // pred_region
    _
  $region29: #{vqvae2_forward.32} parent=0 // pred_fallthru
    _
  %v27 = vld [vmem:[%s0] sm:$0xf]
  %v28 = vunpack.c.l.bf16 %v27
  %v29 = vmax.bf16 %v27, 0
  %v30 = vld [vmem:[%s1] sm:$0xf]
  %v31 = vld [vmem:[%s1 + $0x4] sm:$0xf]
  %v32 = vld [vmem:[%s1 + $0x8] sm:$0xf]
  %v33 = vld [vmem:[%s1 + $0xc] sm:$0xf]
  %v34 = vld [vmem:[%s1 + $0x10] sm:$0xf]
  %v35 = vld [vmem:[%s1 + $0x14] sm:$0xf]
  %v36 = vld [vmem:[%s1 + $0x18] sm:$0xf]
  %v37 = vld [vmem:[%s1 + $0x1c] sm:$0xf]
  %v38 = vld [vmem:[%s1 + $0x20] sm:$0xf]
  %v39 = vld [vmem:[%s1 + $0x24] sm:$0xf]
  %v40 = vld [vmem:[%s1 + $0x28] sm:$0xf]
  %v41 = vld [vmem:[%s1 + $0x2c] sm:$0xf]
  %v42 = vld [vmem:[%s1 + $0x30] sm:$0xf]
  %v43 = vld [vmem:[%s1 + $0x34] sm:$0xf]
  %v44 = vld [vmem:[%s1 + $0x38] sm:$0xf]
  %v45 = vld [vmem:[%s1 + $0x3c] sm:$0xf]
  %v46 = vld [vmem:[%s1 + $0x40] sm:$0xf]
  %v47 = vld [vmem:[%s1 + $0x44] sm:$0xf]
  %v50 = vunpack.c.l.s4 1983009808
  %v51 = vunpack.c.0.s8 %v50
  %v52 = vlaneseq
  %v53 = vshrl.u32 %v52, 7
  %v54 = vsub.s32 %v51, %v53
  %v55 = vrot.slane %v29, %v54
  %v56 = vcombine.high %v55, %v55
  %v76 = vunpack.c.l.b16 %v30
  %v77 = vunpack.c.l.b16 %v31
  %v78 = vunpack.c.l.b16 %v32
  %v79 = vunpack.c.l.b16 %v33
  %v80 = vunpack.c.l.b16 %v34
  %v81 = vunpack.c.l.b16 %v35
  %v82 = vunpack.c.l.b16 %v36
  %v83 = vunpack.c.l.b16 %v37
  %v84 = vunpack.c.l.b16 %v38
  %v85 = vunpack.c.l.b16 %v39
  %v86 = vunpack.c.l.b16 %v40
  %v87 = vunpack.c.l.b16 %v41
  %v88 = vunpack.c.l.b16 %v42
  %v89 = vunpack.c.l.b16 %v43
  %v90 = vunpack.c.l.b16 %v44
  %v91 = vunpack.c.l.b16 %v45
  %v92 = vunpack.c.l.b16 %v46
  %v93 = vunpack.c.l.b16 %v47
  %v94 = vpack.c.b16 %v77, %v76
  %v95 = vpack.c.b16 %v79, %v78
  %v96 = vpack.c.b16 %v81, %v80
  %v97 = vpack.c.b16 %v83, %v82
  %v98 = vpack.c.b16 %v85, %v84
  %v99 = vpack.c.b16 %v87, %v86
  %v100 = vpack.c.b16 %v89, %v88
  %v101 = vpack.c.b16 %v91, %v90
  %v102 = vpack.c.b16 %v93, %v92
  %vm112 = vcmask 130048
  %v114 = vsel %vm112, %v56, 0
  %116 = vmatprep.subr.bf16.mxu0 0
  %117 = vmatpush1.bf16.msra.mxu0 %v94
  %118 = vmatprep.subr.bf16.mxu0 0
  %119 = vmatpush1.bf16.msra.mxu0 %v95
  %120 = vmatprep.subr.bf16.mxu0 0
  %121 = vmatpush1.bf16.msra.mxu0 %v96
  %122 = vmatprep.subr.bf16.mxu0 0
  %123 = vmatpush1.bf16.msra.mxu0 %v97
  %124 = vmatprep.subr.bf16.mxu0 0
  %125 = vmatpush1.bf16.msra.mxu0 %v98
  %126 = vmatprep.subr.bf16.mxu0 0
  %127 = vmatpush1.bf16.msra.mxu0 %v99
  %128 = vmatprep.subr.bf16.mxu0 0
  %129 = vmatpush1.bf16.msra.mxu0 %v100
  %130 = vmatprep.subr.bf16.mxu0 0
  %131 = vmatpush1.bf16.msra.mxu0 %v101
  %132 = vmatprep.subr.bf16.mxu0 0
  %133 = vmatpush1.bf16.msra.mxu0 %v102
  %134 = vmatprep.subr.bf16.mxu0 0
  %135 = vmatpush1.bf16.msra.mxu0 0
  %136 = vmatprep.subr.bf16.mxu0 0
  %137 = vmatpush1.bf16.msra.mxu0 0
  %138 = vmatprep.subr.bf16.mxu0 0
  %139 = vmatpush1.bf16.msra.mxu0 0
  %140 = vmatprep.subr.bf16.mxu0 0
  %141 = vmatpush1.bf16.msra.mxu0 0
  %142 = vmatprep.subr.bf16.mxu0 0
  %143 = vmatpush1.bf16.msra.mxu0 0
  %144 = vmatprep.subr.bf16.mxu0 0
  %145 = vmatpush1.bf16.msra.mxu0 0
  %146 = vmatprep.subr.bf16.mxu0 0
  %147 = vmatpush1.bf16.msra.mxu0 0
  %148 = vmatprep.mubr.bf16.mxu0 %v114
  %149 = vmatmul.mubr.bf16.gmra.mrb[0].mxu0 %v55
  %v150 = vpop.f32.mrb[0].mxu0
  %v151 = vadd.f32 0.0, %v150
  %v152 = vpop.f32.mrb[0].mxu0
  %v153 = vpop.f32.mrb[0].mxu0
  %v154 = vpop.f32.mrb[0].mxu0
  %155 = vdwg.mxu0
  %v156 = vld [vmem:[%s2] sm:$0x1]
  %v158 = vlaneseq
  %v159 = vshrl.u32 %v158, 7
  %v160 = vsub.s32 0, %v159
  %v161 = vrot.slane %v156, %v160
  %v163 = vmul.f32 %v151, %v161
  %v164 = vld [vmem:[%s3] sm:$0x1]
  %v166 = vlaneseq
  %v167 = vshrl.u32 %v166, 7
  %v168 = vsub.s32 0, %v167
  %v169 = vrot.slane %v164, %v168
  %v171 = vadd.f32 %v163, %v169
  %v172 = vmax.f32 %v171, 0.0
  %v173 = vpack.c.bf16 %v172, %v172
  %v174 = vld [vmem:[%s4] sm:$0x3]
  %vm175 = vcmask 31744
  %v177 = vsel %vm175, %v173, 0
  %vm179 = vcmask 1041408
  %v181 = vsel %vm179, %v174, 0
  %183 = vmatprep.subr.bf16.mxu0 0
  %184 = vmatpush1.bf16.msra.mxu0 %v181
  %185 = vmatprep.subr.bf16.mxu0 0
  %186 = vmatpush1.bf16.msra.mxu0 0
  %187 = vmatprep.subr.bf16.mxu0 0
  %188 = vmatpush1.bf16.msra.mxu0 0
  %189 = vmatprep.subr.bf16.mxu0 0
  %190 = vmatpush1.bf16.msra.mxu0 0
  %191 = vmatprep.subr.bf16.mxu0 0
  %192 = vmatpush1.bf16.msra.mxu0 0
  %193 = vmatprep.subr.bf16.mxu0 0
  %194 = vmatpush1.bf16.msra.mxu0 0
  %195 = vmatprep.subr.bf16.mxu0 0
  %196 = vmatpush1.bf16.msra.mxu0 0
  %197 = vmatprep.subr.bf16.mxu0 0
  %198 = vmatpush1.bf16.msra.mxu0 0
  %199 = vmatprep.subr.bf16.mxu0 0
  %200 = vmatpush1.bf16.msra.mxu0 0
  %201 = vmatprep.subr.bf16.mxu0 0
  %202 = vmatpush1.bf16.msra.mxu0 0
  %203 = vmatprep.subr.bf16.mxu0 0
  %204 = vmatpush1.bf16.msra.mxu0 0
  %205 = vmatprep.subr.bf16.mxu0 0
  %206 = vmatpush1.bf16.msra.mxu0 0
  %207 = vmatprep.subr.bf16.mxu0 0
  %208 = vmatpush1.bf16.msra.mxu0 0
  %209 = vmatprep.subr.bf16.mxu0 0
  %210 = vmatpush1.bf16.msra.mxu0 0
  %211 = vmatprep.subr.bf16.mxu0 0
  %212 = vmatpush1.bf16.msra.mxu0 0
  %213 = vmatprep.subr.bf16.mxu0 0
  %214 = vmatpush1.bf16.msra.mxu0 0
  %215 = vmatprep.mubr.bf16.mxu0 0
  %216 = vmatmul.mubr.bf16.gmra.mrb[0].mxu0 %v177
  %v217 = vpop.f32.mrb[0].mxu0
  %v218 = vadd.f32 0.0, %v217
  %v219 = vpop.f32.mrb[0].mxu0
  %v220 = vpop.f32.mrb[0].mxu0
  %v221 = vpop.f32.mrb[0].mxu0
  %222 = vdwg.mxu0
  %v223 = vld [vmem:[%s5] sm:$0x1]
  %v225 = vlaneseq
  %v226 = vshrl.u32 %v225, 7
  %v227 = vsub.s32 0, %v226
  %v228 = vrot.slane %v223, %v227
  %v230 = vmul.f32 %v218, %v228
  %v231 = vld [vmem:[%s6] sm:$0x1]
  %v233 = vlaneseq
  %v234 = vshrl.u32 %v233, 7
  %v235 = vsub.s32 0, %v234
  %v236 = vrot.slane %v231, %v235
  %v238 = vadd.f32 %v230, %v236
  %240 = vrot.lane.b32.xlu0 %v28, 64
  %v241 = vpop.permute.xlu0 %240
  %v243 = vadd.f32 %v238, %v241
  %v244 = vmax.f32 %v243, 0.0
  %v245 = vpack.c.bf16 %v244, %v244
  %vm246 = vcmask 123904
  %247 = vst.msk [vmem:[%s7] sm:$0x3] %vm246, %v245
  // Predicated region
  $region30: #{vqvae2_forward.32} parent=0 // pred_check
    _
  $region31: #{vqvae2_forward.32} parent=0 // pred_check_branch
    %249 = sbr.rel (0) target = $region33
  $region32: #{vqvae2_forward.32} parent=0 // pred_region
    _
  $region33: #{vqvae2_forward.32} parent=0 // pred_fallthru
    _
  // Predicated region
  $region34: #{vqvae2_forward.32} parent=0 // pred_check
    _
  $region35: #{vqvae2_forward.32} parent=0 // pred_check_branch
    %251 = sbr.rel (0) target = $region37
  $region36: #{vqvae2_forward.32} parent=0 // pred_region
    _
  $region37: #{vqvae2_forward.32} parent=0 // pred_fallthru
    _

// kernel: vqvae2_forward.31
$region0: #{vqvae2_forward.31}
  #allocation0 [shape = 'u32[]', space=smem, size = 0x4, offset = 0x4, fixed_abs, tag = 'smem constant byte address 0x4 - core index']
  #allocation1 [shape = 'u32[144,128]{1,0:T(1,128)}', space=vmem, size = 0x12000, scoped, tag = 'internal scratch']
  %s0 = inlined_call_operand.vmem [shape: bf16[4,144], index: 0, kind: input, shape index: {}]
  %s1 = inlined_call_operand.vmem [shape: bf16[144,4], index: 1, kind: input, shape index: {}]
  %s2 = inlined_call_operand.vmem [shape: f32[1,4], index: 2, kind: input, shape index: {}]
  %s3 = inlined_call_operand.vmem [shape: f32[1,4], index: 3, kind: input, shape index: {}]
  %s4 = inlined_call_operand.vmem [shape: bf16[4,16], index: 4, kind: input, shape index: {}]
  %s5 = inlined_call_operand.vmem [shape: f32[1,16], index: 5, kind: input, shape index: {}]
  %s6 = inlined_call_operand.vmem [shape: f32[1,16], index: 6, kind: input, shape index: {}]
  %s7 = inlined_call_operand.vmem [shape: bf16[4,16], index: 7, kind: output, shape index: {}]
  %s8 = sld [smem:[#allocation0]]
  $region38: #{vqvae2_forward.31} parent=0
    _
  %s10 = ssub.s32 1, %s8
  %s11 = scalar_select 0, %s10, %s8
  // Predicated region
  $region2: #{vqvae2_forward.31} parent=0 // pred_check
    _
  $region3: #{vqvae2_forward.31} parent=0 // pred_check_branch
    %13 = sbr.rel (0) target = $region5
  $region4: #{vqvae2_forward.31} parent=0 // pred_region
    _
  $region5: #{vqvae2_forward.31} parent=0 // pred_fallthru
    _
  // Predicated region
  $region6: #{vqvae2_forward.31} parent=0 // pred_check
    _
  $region7: #{vqvae2_forward.31} parent=0 // pred_check_branch
    %15 = sbr.rel (0) target = $region9
  $region8: #{vqvae2_forward.31} parent=0 // pred_region
    _
  $region9: #{vqvae2_forward.31} parent=0 // pred_fallthru
    _
  // Predicated region
  $region10: #{vqvae2_forward.31} parent=0 // pred_check
    _
  $region11: #{vqvae2_forward.31} parent=0 // pred_check_branch
    %17 = sbr.rel (0) target = $region13
  $region12: #{vqvae2_forward.31} parent=0 // pred_region
    _
  $region13: #{vqvae2_forward.31} parent=0 // pred_fallthru
    _
  // Predicated region
  $region14: #{vqvae2_forward.31} parent=0 // pred_check
    _
  $region15: #{vqvae2_forward.31} parent=0 // pred_check_branch
    %19 = sbr.rel (0) target = $region17
  $region16: #{vqvae2_forward.31} parent=0 // pred_region
    _
  $region17: #{vqvae2_forward.31} parent=0 // pred_fallthru
    _
  // Predicated region
  $region18: #{vqvae2_forward.31} parent=0 // pred_check
    _
  $region19: #{vqvae2_forward.31} parent=0 // pred_check_branch
    %21 = sbr.rel (0) target = $region21
  $region20: #{vqvae2_forward.31} parent=0 // pred_region
    _
  $region21: #{vqvae2_forward.31} parent=0 // pred_fallthru
    _
  // Predicated region
  $region22: #{vqvae2_forward.31} parent=0 // pred_check
    _
  $region23: #{vqvae2_forward.31} parent=0 // pred_check_branch
    %23 = sbr.rel (0) target = $region25
  $region24: #{vqvae2_forward.31} parent=0 // pred_region
    _
  $region25: #{vqvae2_forward.31} parent=0 // pred_fallthru
    _
  // Predicated region
  $region26: #{vqvae2_forward.31} parent=0 // pred_check
    _
  $region27: #{vqvae2_forward.31} parent=0 // pred_check_branch
    %25 = sbr.rel (0) target = $region29
  $region28: #{vqvae2_forward.31} parent=0 // pred_region
    _
  $region29: #{vqvae2_forward.31} parent=0 // pred_fallthru
    _
  %v27 = vld [vmem:[%s0] sm:$0xf]
  %v28 = vunpack.c.l.bf16 %v27
  %v29 = vmax.bf16 %v27, 0
  %v30 = vld [vmem:[%s1] sm:$0xf]
  %v31 = vld [vmem:[%s1 + $0x4] sm:$0xf]
  %v32 = vld [vmem:[%s1 + $0x8] sm:$0xf]
  %v33 = vld [vmem:[%s1 + $0xc] sm:$0xf]
  %v34 = vld [vmem:[%s1 + $0x10] sm:$0xf]
  %v35 = vld [vmem:[%s1 + $0x14] sm:$0xf]
  %v36 = vld [vmem:[%s1 + $0x18] sm:$0xf]
  %v37 = vld [vmem:[%s1 + $0x1c] sm:$0xf]
  %v38 = vld [vmem:[%s1 + $0x20] sm:$0xf]
  %v39 = vld [vmem:[%s1 + $0x24] sm:$0xf]
  %v40 = vld [vmem:[%s1 + $0x28] sm:$0xf]
  %v41 = vld [vmem:[%s1 + $0x2c] sm:$0xf]
  %v42 = vld [vmem:[%s1 + $0x30] sm:$0xf]
  %v43 = vld [vmem:[%s1 + $0x34] sm:$0xf]
  %v44 = vld [vmem:[%s1 + $0x38] sm:$0xf]
  %v45 = vld [vmem:[%s1 + $0x3c] sm:$0xf]
  %v46 = vld [vmem:[%s1 + $0x40] sm:$0xf]
  %v47 = vld [vmem:[%s1 + $0x44] sm:$0xf]
  %v50 = vunpack.c.l.s4 1983009808
  %v51 = vunpack.c.0.s8 %v50
  %v52 = vlaneseq
  %v53 = vshrl.u32 %v52, 7
  %v54 = vsub.s32 %v51, %v53
  %v55 = vrot.slane %v29, %v54
  %v56 = vcombine.high %v55, %v55
  %v76 = vunpack.c.l.b16 %v30
  %v77 = vunpack.c.l.b16 %v31
  %v78 = vunpack.c.l.b16 %v32
  %v79 = vunpack.c.l.b16 %v33
  %v80 = vunpack.c.l.b16 %v34
  %v81 = vunpack.c.l.b16 %v35
  %v82 = vunpack.c.l.b16 %v36
  %v83 = vunpack.c.l.b16 %v37
  %v84 = vunpack.c.l.b16 %v38
  %v85 = vunpack.c.l.b16 %v39
  %v86 = vunpack.c.l.b16 %v40
  %v87 = vunpack.c.l.b16 %v41
  %v88 = vunpack.c.l.b16 %v42
  %v89 = vunpack.c.l.b16 %v43
  %v90 = vunpack.c.l.b16 %v44
  %v91 = vunpack.c.l.b16 %v45
  %v92 = vunpack.c.l.b16 %v46
  %v93 = vunpack.c.l.b16 %v47
  %v94 = vpack.c.b16 %v77, %v76
  %v95 = vpack.c.b16 %v79, %v78
  %v96 = vpack.c.b16 %v81, %v80
  %v97 = vpack.c.b16 %v83, %v82
  %v98 = vpack.c.b16 %v85, %v84
  %v99 = vpack.c.b16 %v87, %v86
  %v100 = vpack.c.b16 %v89, %v88
  %v101 = vpack.c.b16 %v91, %v90
  %v102 = vpack.c.b16 %v93, %v92
  %vm112 = vcmask 130048
  %v114 = vsel %vm112, %v56, 0
  %116 = vmatprep.subr.bf16.mxu0 0
  %117 = vmatpush1.bf16.msra.mxu0 %v94
  %118 = vmatprep.subr.bf16.mxu0 0
  %119 = vmatpush1.bf16.msra.mxu0 %v95
  %120 = vmatprep.subr.bf16.mxu0 0
  %121 = vmatpush1.bf16.msra.mxu0 %v96
  %122 = vmatprep.subr.bf16.mxu0 0
  %123 = vmatpush1.bf16.msra.mxu0 %v97
  %124 = vmatprep.subr.bf16.mxu0 0
  %125 = vmatpush1.bf16.msra.mxu0 %v98
  %126 = vmatprep.subr.bf16.mxu0 0
  %127 = vmatpush1.bf16.msra.mxu0 %v99
  %128 = vmatprep.subr.bf16.mxu0 0
  %129 = vmatpush1.bf16.msra.mxu0 %v100
  %130 = vmatprep.subr.bf16.mxu0 0
  %131 = vmatpush1.bf16.msra.mxu0 %v101
  %132 = vmatprep.subr.bf16.mxu0 0
  %133 = vmatpush1.bf16.msra.mxu0 %v102
  %134 = vmatprep.subr.bf16.mxu0 0
  %135 = vmatpush1.bf16.msra.mxu0 0
  %136 = vmatprep.subr.bf16.mxu0 0
  %137 = vmatpush1.bf16.msra.mxu0 0
  %138 = vmatprep.subr.bf16.mxu0 0
  %139 = vmatpush1.bf16.msra.mxu0 0
  %140 = vmatprep.subr.bf16.mxu0 0
  %141 = vmatpush1.bf16.msra.mxu0 0
  %142 = vmatprep.subr.bf16.mxu0 0
  %143 = vmatpush1.bf16.msra.mxu0 0
  %144 = vmatprep.subr.bf16.mxu0 0
  %145 = vmatpush1.bf16.msra.mxu0 0
  %146 = vmatprep.subr.bf16.mxu0 0
  %147 = vmatpush1.bf16.msra.mxu0 0
  %148 = vmatprep.mubr.bf16.mxu0 %v114
  %149 = vmatmul.mubr.bf16.gmra.mrb[0].mxu0 %v55
  %v150 = vpop.f32.mrb[0].mxu0
  %v151 = vadd.f32 0.0, %v150
  %v152 = vpop.f32.mrb[0].mxu0
  %v153 = vpop.f32.mrb[0].mxu0
  %v154 = vpop.f32.mrb[0].mxu0
  %155 = vdwg.mxu0
  %v156 = vld [vmem:[%s2] sm:$0x1]
  %v158 = vlaneseq
  %v159 = vshrl.u32 %v158, 7
  %v160 = vsub.s32 0, %v159
  %v161 = vrot.slane %v156, %v160
  %v163 = vmul.f32 %v151, %v161
  %v164 = vld [vmem:[%s3] sm:$0x1]
  %v166 = vlaneseq
  %v167 = vshrl.u32 %v166, 7
  %v168 = vsub.s32 0, %v167
  %v169 = vrot.slane %v164, %v168
  %v171 = vadd.f32 %v163, %v169
  %v172 = vmax.f32 %v171, 0.0
  %v173 = vpack.c.bf16 %v172, %v172
  %v174 = vld [vmem:[%s4] sm:$0x3]
  %vm175 = vcmask 31744
  %v177 = vsel %vm175, %v173, 0
  %vm179 = vcmask 1041408
  %v181 = vsel %vm179, %v174, 0
  %183 = vmatprep.subr.bf16.mxu0 0
  %184 = vmatpush1.bf16.msra.mxu0 %v181
  %185 = vmatprep.subr.bf16.mxu0 0
  %186 = vmatpush1.bf16.msra.mxu0 0
  %187 = vmatprep.subr.bf16.mxu0 0
  %188 = vmatpush1.bf16.msra.mxu0 0
  %189 = vmatprep.subr.bf16.mxu0 0
  %190 = vmatpush1.bf16.msra.mxu0 0
  %191 = vmatprep.subr.bf16.mxu0 0
  %192 = vmatpush1.bf16.msra.mxu0 0
  %193 = vmatprep.subr.bf16.mxu0 0
  %194 = vmatpush1.bf16.msra.mxu0 0
  %195 = vmatprep.subr.bf16.mxu0 0
  %196 = vmatpush1.bf16.msra.mxu0 0
  %197 = vmatprep.subr.bf16.mxu0 0
  %198 = vmatpush1.bf16.msra.mxu0 0
  %199 = vmatprep.subr.bf16.mxu0 0
  %200 = vmatpush1.bf16.msra.mxu0 0
  %201 = vmatprep.subr.bf16.mxu0 0
  %202 = vmatpush1.bf16.msra.mxu0 0
  %203 = vmatprep.subr.bf16.mxu0 0
  %204 = vmatpush1.bf16.msra.mxu0 0
  %205 = vmatprep.subr.bf16.mxu0 0
  %206 = vmatpush1.bf16.msra.mxu0 0
  %207 = vmatprep.subr.bf16.mxu0 0
  %208 = vmatpush1.bf16.msra.mxu0 0
  %209 = vmatprep.subr.bf16.mxu0 0
  %210 = vmatpush1.bf16.msra.mxu0 0
  %211 = vmatprep.subr.bf16.mxu0 0
  %212 = vmatpush1.bf16.msra.mxu0 0
  %213 = vmatprep.subr.bf16.mxu0 0
  %214 = vmatpush1.bf16.msra.mxu0 0
  %215 = vmatprep.mubr.bf16.mxu0 0
  %216 = vmatmul.mubr.bf16.gmra.mrb[0].mxu0 %v177
  %v217 = vpop.f32.mrb[0].mxu0
  %v218 = vadd.f32 0.0, %v217
  %v219 = vpop.f32.mrb[0].mxu0
  %v220 = vpop.f32.mrb[0].mxu0
  %v221 = vpop.f32.mrb[0].mxu0
  %222 = vdwg.mxu0
  %v223 = vld [vmem:[%s5] sm:$0x1]
  %v225 = vlaneseq
  %v226 = vshrl.u32 %v225, 7
  %v227 = vsub.s32 0, %v226
  %v228 = vrot.slane %v223, %v227
  %v230 = vmul.f32 %v218, %v228
  %v231 = vld [vmem:[%s6] sm:$0x1]
  %v233 = vlaneseq
  %v234 = vshrl.u32 %v233, 7
  %v235 = vsub.s32 0, %v234
  %v236 = vrot.slane %v231, %v235
  %v238 = vadd.f32 %v230, %v236
  %240 = vrot.lane.b32.xlu0 %v28, 64
  %v241 = vpop.permute.xlu0 %240
  %v243 = vadd.f32 %v238, %v241
  %v244 = vpack.c.bf16 %v243, %v243
  %vm245 = vcmask 123904
  %246 = vst.msk [vmem:[%s7] sm:$0x3] %vm245, %v244
  // Predicated region
  $region30: #{vqvae2_forward.31} parent=0 // pred_check
    _
  $region31: #{vqvae2_forward.31} parent=0 // pred_check_branch
    %248 = sbr.rel (0) target = $region33
  $region32: #{vqvae2_forward.31} parent=0 // pred_region
    _
  $region33: #{vqvae2_forward.31} parent=0 // pred_fallthru
    _
  // Predicated region
  $region34: #{vqvae2_forward.31} parent=0 // pred_check
    _
  $region35: #{vqvae2_forward.31} parent=0 // pred_check_branch
    %250 = sbr.rel (0) target = $region37
  $region36: #{vqvae2_forward.31} parent=0 // pred_region
    _
  $region37: #{vqvae2_forward.31} parent=0 // pred_fallthru
    _

// kernel: vqvae2_forward.33
$region0: #{vqvae2_forward.33}
  #allocation0 [shape = 'u32[]', space=smem, size = 0x4, offset = 0x4, fixed_abs, tag = 'smem constant byte address 0x4 - core index']
  #allocation1 [shape = 'u32[144,128]{1,0:T(1,128)}', space=vmem, size = 0x12000, scoped, tag = 'internal scratch']
  %s0 = inlined_call_operand.vmem [shape: bf16[4,16], index: 0, kind: input, shape index: {}]
  %s1 = inlined_call_operand.vmem [shape: bf16[16,8], index: 1, kind: input, shape index: {}]
  %s2 = inlined_call_operand.vmem [shape: f32[1,8], index: 2, kind: input, shape index: {}]
  %s3 = inlined_call_operand.vmem [shape: f32[16,8], index: 3, kind: input, shape index: {}]
  %s4 = inlined_call_operand.vmem [shape: bf16[4,8], index: 4, kind: output, shape index: {0}]
  %s5 = inlined_call_operand.hbm [shape: f32[1,1,1], index: 5, kind: output, shape index: {1}]
  %6 = xla_tuple %s4, %s5
  %s7 = sld [smem:[#allocation0]]
  $region34: #{vqvae2_forward.33} parent=0
    _
  %s9 = ssub.s32 1, %s7
  %s10 = scalar_select 0, %s9, %s7
  $region1: #{vqvae2_forward.33} parent=0
    #allocation2 [shape = 'u8[512]{0}', space=vmem, size = 0x400, scoped, tag = 'output window, operand 1, single buffered']
    #allocation3 [shape = 's32[1]{0}', space=sflag, size = 0x4, scoped, tag = 'scoped memory for vqvae2_forward.33']
    %11 = vsyncpa [#allocation3], 0
    // Predicated region
    $region2: #{vqvae2_forward.33} parent=1 // pred_check
      _
    $region3: #{vqvae2_forward.33} parent=1 // pred_check_branch
      %13 = sbr.rel (0) target = $region5
    $region4: #{vqvae2_forward.33} parent=1 // pred_region
      _
    $region5: #{vqvae2_forward.33} parent=1 // pred_fallthru
      _
    // Predicated region
    $region6: #{vqvae2_forward.33} parent=1 // pred_check
      _
    $region7: #{vqvae2_forward.33} parent=1 // pred_check_branch
      %15 = sbr.rel (0) target = $region9
    $region8: #{vqvae2_forward.33} parent=1 // pred_region
      _
    $region9: #{vqvae2_forward.33} parent=1 // pred_fallthru
      _
    // Predicated region
    $region10: #{vqvae2_forward.33} parent=1 // pred_check
      _
    $region11: #{vqvae2_forward.33} parent=1 // pred_check_branch
      %17 = sbr.rel (0) target = $region13
    $region12: #{vqvae2_forward.33} parent=1 // pred_region
      _
    $region13: #{vqvae2_forward.33} parent=1 // pred_fallthru
      _
    // Predicated region
    $region14: #{vqvae2_forward.33} parent=1 // pred_check
      _
    $region15: #{vqvae2_forward.33} parent=1 // pred_check_branch
      %19 = sbr.rel (0) target = $region17
    $region16: #{vqvae2_forward.33} parent=1 // pred_region
      _
    $region17: #{vqvae2_forward.33} parent=1 // pred_fallthru
      _
    %v21 = vld [vmem:[%s0] sm:$0x3]
    %v22 = vld [vmem:[%s1] sm:$0xf]
    %v23 = vld [vmem:[%s1 + $0x4] sm:$0xf]
    %v24 = vld [vmem:[%s2] sm:$0x1]
    %v26 = vlaneseq
    %v27 = vshrl.u32 %v26, 7
    %v28 = vsub.s32 0, %v27
    %v29 = vrot.slane %v24, %v28
    %v33 = vunpack.c.l.b16 %v22
    %v34 = vunpack.c.l.b16 %v23
    %v35 = vpack.c.b16 %v34, %v33
    %vm37 = vcmask 130048
    %v39 = vsel %vm37, %v21, 0
    %41 = vmatprep.subr.bf16.mxu0 0
    %42 = vmatpush1.bf16.msra.mxu0 %v35
    %43 = vmatprep.subr.bf16.mxu0 0
    %44 = vmatpush1.bf16.msra.mxu0 0
    %45 = vmatprep.subr.bf16.mxu0 0
    %46 = vmatpush1.bf16.msra.mxu0 0
    %47 = vmatprep.subr.bf16.mxu0 0
    %48 = vmatpush1.bf16.msra.mxu0 0
    %49 = vmatprep.subr.bf16.mxu0 0
    %50 = vmatpush1.bf16.msra.mxu0 0
    %51 = vmatprep.subr.bf16.mxu0 0
    %52 = vmatpush1.bf16.msra.mxu0 0
    %53 = vmatprep.subr.bf16.mxu0 0
    %54 = vmatpush1.bf16.msra.mxu0 0
    %55 = vmatprep.subr.bf16.mxu0 0
    %56 = vmatpush1.bf16.msra.mxu0 0
    %57 = vmatprep.subr.bf16.mxu0 0
    %58 = vmatpush1.bf16.msra.mxu0 0
    %59 = vmatprep.subr.bf16.mxu0 0
    %60 = vmatpush1.bf16.msra.mxu0 0
    %61 = vmatprep.subr.bf16.mxu0 0
    %62 = vmatpush1.bf16.msra.mxu0 0
    %63 = vmatprep.subr.bf16.mxu0 0
    %64 = vmatpush1.bf16.msra.mxu0 0
    %65 = vmatprep.subr.bf16.mxu0 0
    %66 = vmatpush1.bf16.msra.mxu0 0
    %67 = vmatprep.subr.bf16.mxu0 0
    %68 = vmatpush1.bf16.msra.mxu0 0
    %69 = vmatprep.subr.bf16.mxu0 0
    %70 = vmatpush1.bf16.msra.mxu0 0
    %71 = vmatprep.subr.bf16.mxu0 0
    %72 = vmatpush1.bf16.msra.mxu0 0
    %73 = vmatprep.mubr.bf16.mxu0 0
    %74 = vmatmul.mubr.bf16.gmra.mrb[0].mxu0 %v39
    %v75 = vpop.f32.mrb[0].mxu0
    %v76 = vadd.f32 %v29, %v75
    %v77 = vpop.f32.mrb[0].mxu0
    %v78 = vpop.f32.mrb[0].mxu0
    %v79 = vpop.f32.mrb[0].mxu0
    %80 = vdwg.mxu0
    %v81 = vld [vmem:[%s3] sm:$0xff]
    %v82 = vld [vmem:[%s3 + $0x8] sm:$0xff]
    %v83 = vpack.c.bf16 %v76, %v76
    %v84 = vpack.c.bf16 %v82, %v81
    %vm85 = vcmask 64512
    %v87 = vsel %vm85, %v83, 0
    %v90 = vsel %vm85, %v84, 0
    %92 = vmatprep.subr.bf16.mxu0 0
    %93 = vmatpush1.bf16.xpose.msra.mxu0 %v90
    %94 = vmatprep.subr.bf16.mxu0 0
    %95 = vmatpush1.bf16.xpose.msra.mxu0 0
    %96 = vmatprep.subr.bf16.mxu0 0
    %97 = vmatpush1.bf16.xpose.msra.mxu0 0
    %98 = vmatprep.subr.bf16.mxu0 0
    %99 = vmatpush1.bf16.xpose.msra.mxu0 0
    %100 = vmatprep.subr.bf16.mxu0 0
    %101 = vmatpush1.bf16.xpose.msra.mxu0 0
    %102 = vmatprep.subr.bf16.mxu0 0
    %103 = vmatpush1.bf16.xpose.msra.mxu0 0
    %104 = vmatprep.subr.bf16.mxu0 0
    %105 = vmatpush1.bf16.xpose.msra.mxu0 0
    %106 = vmatprep.subr.bf16.mxu0 0
    %107 = vmatpush1.bf16.xpose.msra.mxu0 0
    %108 = vmatprep.subr.bf16.mxu0 0
    %109 = vmatpush1.bf16.xpose.msra.mxu0 0
    %110 = vmatprep.subr.bf16.mxu0 0
    %111 = vmatpush1.bf16.xpose.msra.mxu0 0
    %112 = vmatprep.subr.bf16.mxu0 0
    %113 = vmatpush1.bf16.xpose.msra.mxu0 0
    %114 = vmatprep.subr.bf16.mxu0 0
    %115 = vmatpush1.bf16.xpose.msra.mxu0 0
    %116 = vmatprep.subr.bf16.mxu0 0
    %117 = vmatpush1.bf16.xpose.msra.mxu0 0
    %118 = vmatprep.subr.bf16.mxu0 0
    %119 = vmatpush1.bf16.xpose.msra.mxu0 0
    %120 = vmatprep.subr.bf16.mxu0 0
    %121 = vmatpush1.bf16.xpose.msra.mxu0 0
    %122 = vmatprep.subr.bf16.mxu0 0
    %123 = vmatpush1.bf16.xpose.msra.mxu0 0
    %124 = vmatprep.mubr.bf16.mxu0 0
    %125 = vmatmul.mubr.bf16.gmra.mrb[0].mxu0 %v87
    %v126 = vpop.f32.mrb[0].mxu0
    %v127 = vadd.f32 0.0, %v126
    %v128 = vpop.f32.mrb[0].mxu0
    %v129 = vpop.f32.mrb[0].mxu0
    %v130 = vpop.f32.mrb[0].mxu0
    %131 = vdwg.mxu0
    %v132 = vmul.f32 %v76, %v76
    %vm133 = vcmask 60416
    %v134 = vsel %vm133, %v132, 0.0
    %135 = vadd.xlane.f32.xlu0 %v134
    %v136 = vpop.xlane.xlu0 %135
    %v137 = vmul.f32 %v81, %v81
    %v138 = vmul.f32 %v82, %v82
    %v139 = vsel %vm85, %v137, 0.0
    %140 = vadd.xlane.f32.xlu0 %v139
    %v141 = vpop.xlane.xlu0 %140
    %v142 = vsel %vm85, %v138, 0.0
    %143 = vadd.xlane.f32.xlu0 %v142
    %v144 = vpop.xlane.xlu0 %143
    %v147 = vlaneseq
    %v148 = vand.u32 %v147, 127
    %v149 = vlaneseq
    %v150 = vshrl.u32 %v149, 7
    %v151 = vsub.s32 %v148, %v150
    %v152 = vrot.slane %v141, %v151
    %v153 = vadd.s32 %v148, 4294967288
    %v154 = vlaneseq
    %v155 = vshrl.u32 %v154, 7
    %v156 = vsub.s32 %v153, %v155
    %v157 = vrot.slane %v144, %v156
    %vm158 = vcmask 130112
    %v159 = vsel %vm158, %v157, %v152
    %vm160 = vcmask 1042434
    %v161 = vsel %vm160, %v159, %v159
    %vm162 = vcmask 1043459
    %v163 = vsel %vm162, %v159, %v161
    %v165 = vadd.f32 %v136, %v163
    %v166 = vmul.f32 %v127, 2.0
    %v167 = vsub.f32 %v165, %v166
    %vm168 = vcmask 125952
    %v169 = vsel %vm168, %v167, inf
    %170 = vmin.xlane.f32.xlu0 %v169
    %v171 = vpop.xlane.xlu0 %170
    %vm172 = vcmp.eq.f32.partialorder %v167, %v171
    %v173 = vsel %vm172, %v148, 16
    %v174 = vsel %vm168, %v173, 2147483647
    %v175 = vand.u32 %v174, 65535
    %v176 = vshra.s32 %v174, 16
    %v177 = vcvt.s32.f32 %v175
    %v178 = vcvt.s32.f32 %v176
    %179 = vmin.xlane.f32.xlu0 %v178
    %v180 = vpop.xlane.xlu0 %179
    %vm181 = vcmp.eq.f32.partialorder %v178, %v180
    %v182 = vsel %vm181, %v177, inf
    %183 = vmin.xlane.f32.xlu0 %v182
    %v184 = vpop.xlane.xlu0 %183
    %v185 = vcvt.f32.s32 %v184
    %v186 = vcvt.f32.s32 %v180
    %v187 = vshll.u32 %v186, 16
    %v188 = vadd.s32 %v187, %v185
    %vm189 = vcmp.eq.s32.totalorder %v148, %v188
    %v190 = vsel %vm189, 1, 0
    %v191 = vcvt.s32.f32 %v190
    %v193 = vsel %vm37, %v191, 0
    %195 = vmatprep.subr.mxu0 0.0
    %196 = vmatpush1.msra.mxu0 %v81
    %197 = vmatprep.subr.mxu0 0.0
    %198 = vmatpush1.msra.mxu0 %v82
    %199 = vmatprep.subr.mxu0 0.0
    %200 = vmatpush1.msra.mxu0 0.0
    %201 = vmatprep.subr.mxu0 0.0
    %202 = vmatpush1.msra.mxu0 0.0
    %203 = vmatprep.subr.mxu0 0.0
    %204 = vmatpush1.msra.mxu0 0.0
    %205 = vmatprep.subr.mxu0 0.0
    %206 = vmatpush1.msra.mxu0 0.0
    %207 = vmatprep.subr.mxu0 0.0
    %208 = vmatpush1.msra.mxu0 0.0
    %209 = vmatprep.subr.mxu0 0.0
    %210 = vmatpush1.msra.mxu0 0.0
    %211 = vmatprep.subr.mxu0 0.0
    %212 = vmatpush1.msra.mxu0 0.0
    %213 = vmatprep.subr.mxu0 0.0
    %214 = vmatpush1.msra.mxu0 0.0
    %215 = vmatprep.subr.mxu0 0.0
    %216 = vmatpush1.msra.mxu0 0.0
    %217 = vmatprep.subr.mxu0 0.0
    %218 = vmatpush1.msra.mxu0 0.0
    %219 = vmatprep.subr.mxu0 0.0
    %220 = vmatpush1.msra.mxu0 0.0
    %221 = vmatprep.subr.mxu0 0.0
    %222 = vmatpush1.msra.mxu0 0.0
    %223 = vmatprep.subr.mxu0 0.0
    %224 = vmatpush1.msra.mxu0 0.0
    %225 = vmatprep.subr.mxu0 0.0
    %226 = vmatpush1.msra.mxu0 0.0
    %227 = vmatprep.subr.mxu0 0.0
    %228 = vmatpush1.msra.mxu0 0.0
    %229 = vmatprep.subr.mxu0 0.0
    %230 = vmatpush1.msra.mxu0 0.0
    %231 = vmatprep.subr.mxu0 0.0
    %232 = vmatpush1.msra.mxu0 0.0
    %233 = vmatprep.subr.mxu0 0.0
    %234 = vmatpush1.msra.mxu0 0.0
    %235 = vmatprep.subr.mxu0 0.0
    %236 = vmatpush1.msra.mxu0 0.0
    %237 = vmatprep.subr.mxu0 0.0
    %238 = vmatpush1.msra.mxu0 0.0
    %239 = vmatprep.subr.mxu0 0.0
    %240 = vmatpush1.msra.mxu0 0.0
    %241 = vmatprep.subr.mxu0 0.0
    %242 = vmatpush1.msra.mxu0 0.0
    %243 = vmatprep.subr.mxu0 0.0
    %244 = vmatpush1.msra.mxu0 0.0
    %245 = vmatprep.subr.mxu0 0.0
    %246 = vmatpush1.msra.mxu0 0.0
    %247 = vmatprep.subr.mxu0 0.0
    %248 = vmatpush1.msra.mxu0 0.0
    %249 = vmatprep.subr.mxu0 0.0
    %250 = vmatpush1.msra.mxu0 0.0
    %251 = vmatprep.subr.mxu0 0.0
    %252 = vmatpush1.msra.mxu0 0.0
    %253 = vmatprep.subr.mxu0 0.0
    %254 = vmatpush1.msra.mxu0 0.0
    %255 = vmatprep.subr.mxu0 0.0
    %256 = vmatpush1.msra.mxu0 0.0
    %257 = vmatprep.subr.mxu0 0.0
    %258 = vmatpush1.msra.mxu0 0.0
    %259 = vmatprep.mubr.f32.mxu0 0.0
    %260 = vmatmul.mubr.f32.gmra.mrb[0].mxu0 %v193
    %v261 = vpop.f32.mrb[0].mxu0
    %v262 = vadd.f32 0.0, %v261
    %v263 = vpop.f32.mrb[0].mxu0
    %264 = vdwg.mxu0
    %v265 = vpack.c.bf16 %v262, %v262
    %vm266 = vcmask 58368
    %267 = vst.msk [vmem:[%s4] sm:$0x3] %vm266, %v265
    %v268 = vlaneseq
    %v269 = vshrl.u32 %v268, 7
    %s270 = smul.u32 0, 4
    %v271 = vstv %s270
    %v272 = vadd.s32 %v269, %v271
    %vm273 = vcmp.lt.s32.totalorder %v272, 4
    %v274 = vsub.f32 %v262, %v76
    %v275 = vsel %vm273, 1, 0
    %vm276 = vcmp.eq.s32.totalorder %v275, 1
    %v277 = vsel %vm276, %v274, 0.0
    %v278 = vmul.f32 %v277, %v277
    %v279 = vsel %vm133, %v278, 0.0
    %280 = vadd.xlane.f32.xlu0 %v279
    %v281 = vpop.xlane.xlu0 %280
    %v282 = vrot.slane %v281, 4
    %v283 = vadd.f32 %v281, %v282
    %v284 = vrot.slane %v283, 2
    %v285 = vadd.f32 %v283, %v284
    %v286 = vrot.slane %v285, 1
    %v287 = vadd.f32 %v285, %v286
    %s288 = vtos %v287
    %v289 = vstv %s288
    %vm290 = vcmask 0
    %291 = vst.msk [vmem:[#allocation2] sm:$0x1] %vm290, %v289
    // Predicated region
    $region18: #{vqvae2_forward.33} parent=1 // pred_check
      _
    $region19: #{vqvae2_forward.33} parent=1 // pred_check_branch
      %293 = sbr.rel (0) target = $region21
    $region20: #{vqvae2_forward.33} parent=1 // pred_region
      _
    $region21: #{vqvae2_forward.33} parent=1 // pred_fallthru
      _
    // Predicated region
    $region22: #{vqvae2_forward.33} parent=1 // pred_check
      _
    $region23: #{vqvae2_forward.33} parent=1 // pred_check_branch
      %295 = sbr.rel (0) target = $region25
    $region24: #{vqvae2_forward.33} parent=1 // pred_region
      %s297 = ssub.s32 16, 16
      %298 = vsyncadd [#allocation3], %s297
      %s300 = sshll.u32 [#allocation2], 4
      %s301 = int_to_ptr.vmem [resolvable:$true] %s300
      %303 = dma.vmem_to_hbm [thread:$0]  %s301, 16, %s5, [#allocation3]
    $region25: #{vqvae2_forward.33} parent=1 // pred_fallthru
      _
    // Predicated region
    $region26: #{vqvae2_forward.33} parent=1 // pred_check
      _
    $region27: #{vqvae2_forward.33} parent=1 // pred_check_branch
      %305 = sbr.rel (0) target = $region29
    $region28: #{vqvae2_forward.33} parent=1 // pred_region
      _
    $region29: #{vqvae2_forward.33} parent=1 // pred_fallthru
      _
    // Predicated region
    $region30: #{vqvae2_forward.33} parent=1 // pred_check
      _
    $region31: #{vqvae2_forward.33} parent=1 // pred_check_branch
      %307 = sbr.rel (0) target = $region33
    $region32: #{vqvae2_forward.33} parent=1 // pred_region
      %308 = dma.done [#allocation3], 16
    $region33: #{vqvae2_forward.33} parent=1 // pred_fallthru
      _
    %309 = vsyncpa [#allocation3], 1

// kernel: vqvae2_forward.37
$region0: #{vqvae2_forward.37}
  #allocation0 [shape = 'u32[]', space=smem, size = 0x4, offset = 0x4, fixed_abs, tag = 'smem constant byte address 0x4 - core index']
  #allocation1 [shape = 'u32[144,128]{1,0:T(1,128)}', space=vmem, size = 0x12000, scoped, tag = 'internal scratch']
  %s0 = inlined_call_operand.vmem [shape: bf16[4,144], index: 0, kind: input, shape index: {}]
  %s1 = inlined_call_operand.vmem [shape: bf16[144,32], index: 1, kind: input, shape index: {}]
  %s2 = inlined_call_operand.vmem [shape: f32[1,32], index: 2, kind: input, shape index: {}]
  %s3 = inlined_call_operand.vmem [shape: f32[1,32], index: 3, kind: input, shape index: {}]
  %s4 = inlined_call_operand.vmem [shape: bf16[4,32], index: 4, kind: output, shape index: {}]
  %s5 = sld [smem:[#allocation0]]
  $region26: #{vqvae2_forward.37} parent=0
    _
  %s7 = ssub.s32 1, %s5
  %s8 = scalar_select 0, %s7, %s5
  // Predicated region
  $region2: #{vqvae2_forward.37} parent=0 // pred_check
    _
  $region3: #{vqvae2_forward.37} parent=0 // pred_check_branch
    %10 = sbr.rel (0) target = $region5
  $region4: #{vqvae2_forward.37} parent=0 // pred_region
    _
  $region5: #{vqvae2_forward.37} parent=0 // pred_fallthru
    _
  // Predicated region
  $region6: #{vqvae2_forward.37} parent=0 // pred_check
    _
  $region7: #{vqvae2_forward.37} parent=0 // pred_check_branch
    %12 = sbr.rel (0) target = $region9
  $region8: #{vqvae2_forward.37} parent=0 // pred_region
    _
  $region9: #{vqvae2_forward.37} parent=0 // pred_fallthru
    _
  // Predicated region
  $region10: #{vqvae2_forward.37} parent=0 // pred_check
    _
  $region11: #{vqvae2_forward.37} parent=0 // pred_check_branch
    %14 = sbr.rel (0) target = $region13
  $region12: #{vqvae2_forward.37} parent=0 // pred_region
    _
  $region13: #{vqvae2_forward.37} parent=0 // pred_fallthru
    _
  // Predicated region
  $region14: #{vqvae2_forward.37} parent=0 // pred_check
    _
  $region15: #{vqvae2_forward.37} parent=0 // pred_check_branch
    %16 = sbr.rel (0) target = $region17
  $region16: #{vqvae2_forward.37} parent=0 // pred_region
    _
  $region17: #{vqvae2_forward.37} parent=0 // pred_fallthru
    _
  %v18 = vld [vmem:[%s0] sm:$0xf]
  %v19 = vld [vmem:[%s1] sm:$0xf]
  %v20 = vld [vmem:[%s1 + $0x4] sm:$0xf]
  %v21 = vld [vmem:[%s1 + $0x8] sm:$0xf]
  %v22 = vld [vmem:[%s1 + $0xc] sm:$0xf]
  %v23 = vld [vmem:[%s1 + $0x10] sm:$0xf]
  %v24 = vld [vmem:[%s1 + $0x14] sm:$0xf]
  %v25 = vld [vmem:[%s1 + $0x18] sm:$0xf]
  %v26 = vld [vmem:[%s1 + $0x1c] sm:$0xf]
  %v27 = vld [vmem:[%s1 + $0x20] sm:$0xf]
  %v28 = vld [vmem:[%s1 + $0x24] sm:$0xf]
  %v29 = vld [vmem:[%s1 + $0x28] sm:$0xf]
  %v30 = vld [vmem:[%s1 + $0x2c] sm:$0xf]
  %v31 = vld [vmem:[%s1 + $0x30] sm:$0xf]
  %v32 = vld [vmem:[%s1 + $0x34] sm:$0xf]
  %v33 = vld [vmem:[%s1 + $0x38] sm:$0xf]
  %v34 = vld [vmem:[%s1 + $0x3c] sm:$0xf]
  %v35 = vld [vmem:[%s1 + $0x40] sm:$0xf]
  %v36 = vld [vmem:[%s1 + $0x44] sm:$0xf]
  %v39 = vunpack.c.l.s4 1983009808
  %v40 = vunpack.c.0.s8 %v39
  %v41 = vlaneseq
  %v42 = vshrl.u32 %v41, 7
  %v43 = vsub.s32 %v40, %v42
  %v44 = vrot.slane %v18, %v43
  %v45 = vcombine.high %v44, %v44
  %v65 = vunpack.c.l.b16 %v19
  %v66 = vunpack.c.l.b16 %v20
  %v67 = vunpack.c.l.b16 %v21
  %v68 = vunpack.c.l.b16 %v22
  %v69 = vunpack.c.l.b16 %v23
  %v70 = vunpack.c.l.b16 %v24
  %v71 = vunpack.c.l.b16 %v25
  %v72 = vunpack.c.l.b16 %v26
  %v73 = vunpack.c.l.b16 %v27
  %v74 = vunpack.c.l.b16 %v28
  %v75 = vunpack.c.l.b16 %v29
  %v76 = vunpack.c.l.b16 %v30
  %v77 = vunpack.c.l.b16 %v31
  %v78 = vunpack.c.l.b16 %v32
  %v79 = vunpack.c.l.b16 %v33
  %v80 = vunpack.c.l.b16 %v34
  %v81 = vunpack.c.l.b16 %v35
  %v82 = vunpack.c.l.b16 %v36
  %v83 = vpack.c.b16 %v66, %v65
  %v84 = vpack.c.b16 %v68, %v67
  %v85 = vpack.c.b16 %v70, %v69
  %v86 = vpack.c.b16 %v72, %v71
  %v87 = vpack.c.b16 %v74, %v73
  %v88 = vpack.c.b16 %v76, %v75
  %v89 = vpack.c.b16 %v78, %v77
  %v90 = vpack.c.b16 %v80, %v79
  %v91 = vpack.c.b16 %v82, %v81
  %vm101 = vcmask 130048
  %v103 = vsel %vm101, %v45, 0
  %105 = vmatprep.subr.bf16.mxu0 0
  %106 = vmatpush1.bf16.msra.mxu0 %v83
  %107 = vmatprep.subr.bf16.mxu0 0
  %108 = vmatpush1.bf16.msra.mxu0 %v84
  %109 = vmatprep.subr.bf16.mxu0 0
  %110 = vmatpush1.bf16.msra.mxu0 %v85
  %111 = vmatprep.subr.bf16.mxu0 0
  %112 = vmatpush1.bf16.msra.mxu0 %v86
  %113 = vmatprep.subr.bf16.mxu0 0
  %114 = vmatpush1.bf16.msra.mxu0 %v87
  %115 = vmatprep.subr.bf16.mxu0 0
  %116 = vmatpush1.bf16.msra.mxu0 %v88
  %117 = vmatprep.subr.bf16.mxu0 0
  %118 = vmatpush1.bf16.msra.mxu0 %v89
  %119 = vmatprep.subr.bf16.mxu0 0
  %120 = vmatpush1.bf16.msra.mxu0 %v90
  %121 = vmatprep.subr.bf16.mxu0 0
  %122 = vmatpush1.bf16.msra.mxu0 %v91
  %123 = vmatprep.subr.bf16.mxu0 0
  %124 = vmatpush1.bf16.msra.mxu0 0
  %125 = vmatprep.subr.bf16.mxu0 0
  %126 = vmatpush1.bf16.msra.mxu0 0
  %127 = vmatprep.subr.bf16.mxu0 0
  %128 = vmatpush1.bf16.msra.mxu0 0
  %129 = vmatprep.subr.bf16.mxu0 0
  %130 = vmatpush1.bf16.msra.mxu0 0
  %131 = vmatprep.subr.bf16.mxu0 0
  %132 = vmatpush1.bf16.msra.mxu0 0
  %133 = vmatprep.subr.bf16.mxu0 0
  %134 = vmatpush1.bf16.msra.mxu0 0
  %135 = vmatprep.subr.bf16.mxu0 0
  %136 = vmatpush1.bf16.msra.mxu0 0
  %137 = vmatprep.mubr.bf16.mxu0 %v103
  %138 = vmatmul.mubr.bf16.gmra.mrb[0].mxu0 %v44
  %v139 = vpop.f32.mrb[0].mxu0
  %v140 = vadd.f32 0.0, %v139
  %v141 = vpop.f32.mrb[0].mxu0
  %v142 = vpop.f32.mrb[0].mxu0
  %v143 = vpop.f32.mrb[0].mxu0
  %144 = vdwg.mxu0
  %v145 = vld [vmem:[%s2] sm:$0x1]
  %v147 = vlaneseq
  %v148 = vshrl.u32 %v147, 7
  %v149 = vsub.s32 0, %v148
  %v150 = vrot.slane %v145, %v149
  %v152 = vmul.f32 %v140, %v150
  %v153 = vld [vmem:[%s3] sm:$0x1]
  %v155 = vlaneseq
  %v156 = vshrl.u32 %v155, 7
  %v157 = vsub.s32 0, %v156
  %v158 = vrot.slane %v153, %v157
  %v160 = vadd.f32 %v152, %v158
  %v161 = vpack.c.bf16 %v160, %v160
  %vm162 = vcmask 254976
  %163 = vst.msk [vmem:[%s4] sm:$0x3] %vm162, %v161
  // Predicated region
  $region18: #{vqvae2_forward.37} parent=0 // pred_check
    _
  $region19: #{vqvae2_forward.37} parent=0 // pred_check_branch
    %165 = sbr.rel (0) target = $region21
  $region20: #{vqvae2_forward.37} parent=0 // pred_region
    _
  $region21: #{vqvae2_forward.37} parent=0 // pred_fallthru
    _
  // Predicated region
  $region22: #{vqvae2_forward.37} parent=0 // pred_check
    _
  $region23: #{vqvae2_forward.37} parent=0 // pred_check_branch
    %167 = sbr.rel (0) target = $region25
  $region24: #{vqvae2_forward.37} parent=0 // pred_region
    _
  $region25: #{vqvae2_forward.37} parent=0 // pred_fallthru
    _

// kernel: vqvae2_forward.39
$region0: #{vqvae2_forward.39}
  #allocation0 [shape = 'u32[]', space=smem, size = 0x4, offset = 0x4, fixed_abs, tag = 'smem constant byte address 0x4 - core index']
  #allocation1 [shape = 'u32[144,128]{1,0:T(1,128)}', space=vmem, size = 0x12000, scoped, tag = 'internal scratch']
  %s0 = inlined_call_operand.vmem [shape: bf16[4,72], index: 0, kind: input, shape index: {}]
  %s1 = inlined_call_operand.vmem [shape: bf16[72,32], index: 1, kind: input, shape index: {}]
  %s2 = inlined_call_operand.vmem [shape: f32[1,32], index: 2, kind: input, shape index: {}]
  %s3 = inlined_call_operand.vmem [shape: f32[1,32], index: 3, kind: input, shape index: {}]
  %s4 = inlined_call_operand.vmem [shape: bf16[4,32], index: 4, kind: output, shape index: {}]
  %s5 = sld [smem:[#allocation0]]
  $region26: #{vqvae2_forward.39} parent=0
    _
  %s7 = ssub.s32 1, %s5
  %s8 = scalar_select 0, %s7, %s5
  // Predicated region
  $region2: #{vqvae2_forward.39} parent=0 // pred_check
    _
  $region3: #{vqvae2_forward.39} parent=0 // pred_check_branch
    %10 = sbr.rel (0) target = $region5
  $region4: #{vqvae2_forward.39} parent=0 // pred_region
    _
  $region5: #{vqvae2_forward.39} parent=0 // pred_fallthru
    _
  // Predicated region
  $region6: #{vqvae2_forward.39} parent=0 // pred_check
    _
  $region7: #{vqvae2_forward.39} parent=0 // pred_check_branch
    %12 = sbr.rel (0) target = $region9
  $region8: #{vqvae2_forward.39} parent=0 // pred_region
    _
  $region9: #{vqvae2_forward.39} parent=0 // pred_fallthru
    _
  // Predicated region
  $region10: #{vqvae2_forward.39} parent=0 // pred_check
    _
  $region11: #{vqvae2_forward.39} parent=0 // pred_check_branch
    %14 = sbr.rel (0) target = $region13
  $region12: #{vqvae2_forward.39} parent=0 // pred_region
    _
  $region13: #{vqvae2_forward.39} parent=0 // pred_fallthru
    _
  // Predicated region
  $region14: #{vqvae2_forward.39} parent=0 // pred_check
    _
  $region15: #{vqvae2_forward.39} parent=0 // pred_check_branch
    %16 = sbr.rel (0) target = $region17
  $region16: #{vqvae2_forward.39} parent=0 // pred_region
    _
  $region17: #{vqvae2_forward.39} parent=0 // pred_fallthru
    _
  %v18 = vld [vmem:[%s0] sm:$0x3]
  %v19 = vld [vmem:[%s1] sm:$0xf]
  %v20 = vld [vmem:[%s1 + $0x4] sm:$0xf]
  %v21 = vld [vmem:[%s1 + $0x8] sm:$0xf]
  %v22 = vld [vmem:[%s1 + $0xc] sm:$0xf]
  %v23 = vld [vmem:[%s1 + $0x10] sm:$0xf]
  %v24 = vld [vmem:[%s1 + $0x14] sm:$0xf]
  %v25 = vld [vmem:[%s1 + $0x18] sm:$0xf]
  %v26 = vld [vmem:[%s1 + $0x1c] sm:$0xf]
  %v27 = vld [vmem:[%s1 + $0x20] sm:$0xf]
  %v37 = vunpack.c.l.b16 %v19
  %v38 = vunpack.c.l.b16 %v20
  %v39 = vunpack.c.l.b16 %v21
  %v40 = vunpack.c.l.b16 %v22
  %v41 = vunpack.c.l.b16 %v23
  %v42 = vunpack.c.l.b16 %v24
  %v43 = vunpack.c.l.b16 %v25
  %v44 = vunpack.c.l.b16 %v26
  %v45 = vunpack.c.l.b16 %v27
  %v46 = vpack.c.b16 %v38, %v37
  %v47 = vpack.c.b16 %v40, %v39
  %v48 = vpack.c.b16 %v42, %v41
  %v49 = vpack.c.b16 %v44, %v43
  %v50 = vpack.c.b16 %v45, %v45
  %vm55 = vcmask 588800
  %v57 = vsel %vm55, %v18, 0
  %vm59 = vcmask 1043456
  %v61 = vsel %vm59, %v50, 0
  %63 = vmatprep.subr.bf16.mxu0 0
  %64 = vmatpush1.bf16.msra.mxu0 %v46
  %65 = vmatprep.subr.bf16.mxu0 0
  %66 = vmatpush1.bf16.msra.mxu0 %v47
  %67 = vmatprep.subr.bf16.mxu0 0
  %68 = vmatpush1.bf16.msra.mxu0 %v48
  %69 = vmatprep.subr.bf16.mxu0 0
  %70 = vmatpush1.bf16.msra.mxu0 %v49
  %71 = vmatprep.subr.bf16.mxu0 0
  %72 = vmatpush1.bf16.msra.mxu0 %v61
  %73 = vmatprep.subr.bf16.mxu0 0
  %74 = vmatpush1.bf16.msra.mxu0 0
  %75 = vmatprep.subr.bf16.mxu0 0
  %76 = vmatpush1.bf16.msra.mxu0 0
  %77 = vmatprep.subr.bf16.mxu0 0
  %78 = vmatpush1.bf16.msra.mxu0 0
  %79 = vmatprep.subr.bf16.mxu0 0
  %80 = vmatpush1.bf16.msra.mxu0 0
  %81 = vmatprep.subr.bf16.mxu0 0
  %82 = vmatpush1.bf16.msra.mxu0 0
  %83 = vmatprep.subr.bf16.mxu0 0
  %84 = vmatpush1.bf16.msra.mxu0 0
  %85 = vmatprep.subr.bf16.mxu0 0
  %86 = vmatpush1.bf16.msra.mxu0 0
  %87 = vmatprep.subr.bf16.mxu0 0
  %88 = vmatpush1.bf16.msra.mxu0 0
  %89 = vmatprep.subr.bf16.mxu0 0
  %90 = vmatpush1.bf16.msra.mxu0 0
  %91 = vmatprep.subr.bf16.mxu0 0
  %92 = vmatpush1.bf16.msra.mxu0 0
  %93 = vmatprep.subr.bf16.mxu0 0
  %94 = vmatpush1.bf16.msra.mxu0 0
  %95 = vmatprep.mubr.bf16.mxu0 0
  %96 = vmatmul.mubr.bf16.gmra.mrb[0].mxu0 %v57
  %v97 = vpop.f32.mrb[0].mxu0
  %v98 = vadd.f32 0.0, %v97
  %v99 = vpop.f32.mrb[0].mxu0
  %v100 = vpop.f32.mrb[0].mxu0
  %v101 = vpop.f32.mrb[0].mxu0
  %102 = vdwg.mxu0
  %v103 = vld [vmem:[%s2] sm:$0x1]
  %v105 = vlaneseq
  %v106 = vshrl.u32 %v105, 7
  %v107 = vsub.s32 0, %v106
  %v108 = vrot.slane %v103, %v107
  %v110 = vmul.f32 %v98, %v108
  %v111 = vld [vmem:[%s3] sm:$0x1]
  %v113 = vlaneseq
  %v114 = vshrl.u32 %v113, 7
  %v115 = vsub.s32 0, %v114
  %v116 = vrot.slane %v111, %v115
  %v118 = vadd.f32 %v110, %v116
  %v119 = vpack.c.bf16 %v118, %v118
  %vm120 = vcmask 254976
  %121 = vst.msk [vmem:[%s4] sm:$0x3] %vm120, %v119
  // Predicated region
  $region18: #{vqvae2_forward.39} parent=0 // pred_check
    _
  $region19: #{vqvae2_forward.39} parent=0 // pred_check_branch
    %123 = sbr.rel (0) target = $region21
  $region20: #{vqvae2_forward.39} parent=0 // pred_region
    _
  $region21: #{vqvae2_forward.39} parent=0 // pred_fallthru
    _
  // Predicated region
  $region22: #{vqvae2_forward.39} parent=0 // pred_check
    _
  $region23: #{vqvae2_forward.39} parent=0 // pred_check_branch
    %125 = sbr.rel (0) target = $region25
  $region24: #{vqvae2_forward.39} parent=0 // pred_region
    _
  $region25: #{vqvae2_forward.39} parent=0 // pred_fallthru
    _

// kernel: vqvae2_forward.43
$region0: #{vqvae2_forward.43}
  #allocation0 [shape = 'u32[]', space=smem, size = 0x4, offset = 0x4, fixed_abs, tag = 'smem constant byte address 0x4 - core index']
  #allocation1 [shape = 'u32[144,128]{1,0:T(1,128)}', space=vmem, size = 0x12000, scoped, tag = 'internal scratch']
  %s0 = inlined_call_operand.vmem [shape: bf16[16,144], index: 0, kind: input, shape index: {}]
  %s1 = inlined_call_operand.vmem [shape: bf16[144,32], index: 1, kind: input, shape index: {}]
  %s2 = inlined_call_operand.vmem [shape: f32[1,32], index: 2, kind: input, shape index: {}]
  %s3 = inlined_call_operand.vmem [shape: f32[1,32], index: 3, kind: input, shape index: {}]
  %s4 = inlined_call_operand.vmem [shape: bf16[16,32], index: 4, kind: output, shape index: {}]
  %s5 = sld [smem:[#allocation0]]
  $region26: #{vqvae2_forward.43} parent=0
    _
  %s7 = ssub.s32 1, %s5
  %s8 = scalar_select 0, %s7, %s5
  // Predicated region
  $region2: #{vqvae2_forward.43} parent=0 // pred_check
    _
  $region3: #{vqvae2_forward.43} parent=0 // pred_check_branch
    %10 = sbr.rel (0) target = $region5
  $region4: #{vqvae2_forward.43} parent=0 // pred_region
    _
  $region5: #{vqvae2_forward.43} parent=0 // pred_fallthru
    _
  // Predicated region
  $region6: #{vqvae2_forward.43} parent=0 // pred_check
    _
  $region7: #{vqvae2_forward.43} parent=0 // pred_check_branch
    %12 = sbr.rel (0) target = $region9
  $region8: #{vqvae2_forward.43} parent=0 // pred_region
    _
  $region9: #{vqvae2_forward.43} parent=0 // pred_fallthru
    _
  // Predicated region
  $region10: #{vqvae2_forward.43} parent=0 // pred_check
    _
  $region11: #{vqvae2_forward.43} parent=0 // pred_check_branch
    %14 = sbr.rel (0) target = $region13
  $region12: #{vqvae2_forward.43} parent=0 // pred_region
    _
  $region13: #{vqvae2_forward.43} parent=0 // pred_fallthru
    _
  // Predicated region
  $region14: #{vqvae2_forward.43} parent=0 // pred_check
    _
  $region15: #{vqvae2_forward.43} parent=0 // pred_check_branch
    %16 = sbr.rel (0) target = $region17
  $region16: #{vqvae2_forward.43} parent=0 // pred_region
    _
  $region17: #{vqvae2_forward.43} parent=0 // pred_fallthru
    _
  %v18 = vld [vmem:[%s0] sm:$0xff]
  %v19 = vld [vmem:[%s0 + $0x8] sm:$0xff]
  %v20 = vld [vmem:[%s1] sm:$0xf]
  %v21 = vld [vmem:[%s1 + $0x4] sm:$0xf]
  %v22 = vld [vmem:[%s1 + $0x8] sm:$0xf]
  %v23 = vld [vmem:[%s1 + $0xc] sm:$0xf]
  %v24 = vld [vmem:[%s1 + $0x10] sm:$0xf]
  %v25 = vld [vmem:[%s1 + $0x14] sm:$0xf]
  %v26 = vld [vmem:[%s1 + $0x18] sm:$0xf]
  %v27 = vld [vmem:[%s1 + $0x1c] sm:$0xf]
  %v28 = vld [vmem:[%s1 + $0x20] sm:$0xf]
  %v29 = vld [vmem:[%s1 + $0x24] sm:$0xf]
  %v30 = vld [vmem:[%s1 + $0x28] sm:$0xf]
  %v31 = vld [vmem:[%s1 + $0x2c] sm:$0xf]
  %v32 = vld [vmem:[%s1 + $0x30] sm:$0xf]
  %v33 = vld [vmem:[%s1 + $0x34] sm:$0xf]
  %v34 = vld [vmem:[%s1 + $0x38] sm:$0xf]
  %v35 = vld [vmem:[%s1 + $0x3c] sm:$0xf]
  %v36 = vld [vmem:[%s1 + $0x40] sm:$0xf]
  %v37 = vld [vmem:[%s1 + $0x44] sm:$0xf]
  %v40 = vunpack.c.l.b16 %v18
  %v41 = vunpack.c.h.b16 %v18
  %v42 = vunpack.c.l.b16 %v19
  %v43 = vunpack.c.h.b16 %v19
  %v44 = vpack.c.b16 %v42, %v40
  %v45 = vpack.c.b16 %v43, %v41
  %v65 = vunpack.c.l.b16 %v20
  %v66 = vunpack.c.l.b16 %v21
  %v67 = vunpack.c.l.b16 %v22
  %v68 = vunpack.c.l.b16 %v23
  %v69 = vunpack.c.l.b16 %v24
  %v70 = vunpack.c.l.b16 %v25
  %v71 = vunpack.c.l.b16 %v26
  %v72 = vunpack.c.l.b16 %v27
  %v73 = vunpack.c.l.b16 %v28
  %v74 = vunpack.c.l.b16 %v29
  %v75 = vunpack.c.l.b16 %v30
  %v76 = vunpack.c.l.b16 %v31
  %v77 = vunpack.c.l.b16 %v32
  %v78 = vunpack.c.l.b16 %v33
  %v79 = vunpack.c.l.b16 %v34
  %v80 = vunpack.c.l.b16 %v35
  %v81 = vunpack.c.l.b16 %v36
  %v82 = vunpack.c.l.b16 %v37
  %v83 = vpack.c.b16 %v66, %v65
  %v84 = vpack.c.b16 %v68, %v67
  %v85 = vpack.c.b16 %v70, %v69
  %v86 = vpack.c.b16 %v72, %v71
  %v87 = vpack.c.b16 %v74, %v73
  %v88 = vpack.c.b16 %v76, %v75
  %v89 = vpack.c.b16 %v78, %v77
  %v90 = vpack.c.b16 %v80, %v79
  %v91 = vpack.c.b16 %v82, %v81
  %vm101 = vcmask 130048
  %v103 = vsel %vm101, %v45, 0
  %105 = vmatprep.subr.bf16.mxu0 0
  %106 = vmatpush1.bf16.msra.mxu0 %v83
  %107 = vmatprep.subr.bf16.mxu0 0
  %108 = vmatpush1.bf16.msra.mxu0 %v84
  %109 = vmatprep.subr.bf16.mxu0 0
  %110 = vmatpush1.bf16.msra.mxu0 %v85
  %111 = vmatprep.subr.bf16.mxu0 0
  %112 = vmatpush1.bf16.msra.mxu0 %v86
  %113 = vmatprep.subr.bf16.mxu0 0
  %114 = vmatpush1.bf16.msra.mxu0 %v87
  %115 = vmatprep.subr.bf16.mxu0 0
  %116 = vmatpush1.bf16.msra.mxu0 %v88
  %117 = vmatprep.subr.bf16.mxu0 0
  %118 = vmatpush1.bf16.msra.mxu0 %v89
  %119 = vmatprep.subr.bf16.mxu0 0
  %120 = vmatpush1.bf16.msra.mxu0 %v90
  %121 = vmatprep.subr.bf16.mxu0 0
  %122 = vmatpush1.bf16.msra.mxu0 %v91
  %123 = vmatprep.subr.bf16.mxu0 0
  %124 = vmatpush1.bf16.msra.mxu0 0
  %125 = vmatprep.subr.bf16.mxu0 0
  %126 = vmatpush1.bf16.msra.mxu0 0
  %127 = vmatprep.subr.bf16.mxu0 0
  %128 = vmatpush1.bf16.msra.mxu0 0
  %129 = vmatprep.subr.bf16.mxu0 0
  %130 = vmatpush1.bf16.msra.mxu0 0
  %131 = vmatprep.subr.bf16.mxu0 0
  %132 = vmatpush1.bf16.msra.mxu0 0
  %133 = vmatprep.subr.bf16.mxu0 0
  %134 = vmatpush1.bf16.msra.mxu0 0
  %135 = vmatprep.subr.bf16.mxu0 0
  %136 = vmatpush1.bf16.msra.mxu0 0
  %137 = vmatprep.mubr.bf16.mxu0 %v103
  %138 = vmatmul.mubr.bf16.gmra.mrb[0].mxu0 %v44
  %v139 = vpop.f32.mrb[0].mxu0
  %v140 = vadd.f32 0.0, %v139
  %v141 = vpop.f32.mrb[0].mxu0
  %v142 = vpop.f32.mrb[0].mxu0
  %v143 = vadd.f32 0.0, %v142
  %v144 = vpop.f32.mrb[0].mxu0
  %145 = vdwg.mxu0
  %v146 = vld [vmem:[%s2] sm:$0x1]
  %v148 = vlaneseq
  %v149 = vshrl.u32 %v148, 7
  %v150 = vsub.s32 0, %v149
  %v151 = vrot.slane %v146, %v150
  %v153 = vmul.f32 %v140, %v151
  %v154 = vmul.f32 %v143, %v151
  %v155 = vld [vmem:[%s3] sm:$0x1]
  %v157 = vlaneseq
  %v158 = vshrl.u32 %v157, 7
  %v159 = vsub.s32 0, %v158
  %v160 = vrot.slane %v155, %v159
  %v162 = vadd.f32 %v153, %v160
  %v163 = vadd.f32 %v154, %v160
  %v164 = vmax.f32 %v162, 0.0
  %v165 = vmax.f32 %v163, 0.0
  %v166 = vpack.c.bf16 %v165, %v164
  %v168 = vunpack.c.l.b16 %v166
  %v169 = vunpack.c.h.b16 %v166
  %v170 = vpack.c.b16 %v168, %v168
  %v171 = vpack.c.b16 %v169, %v169
  %vm174 = vcmask 257024
  %175 = vst.msk [vmem:[%s4] sm:$0xf] %vm174, %v170
  %176 = vst.msk [vmem:[%s4 + $0x4] sm:$0xf] %vm174, %v171
  // Predicated region
  $region18: #{vqvae2_forward.43} parent=0 // pred_check
    _
  $region19: #{vqvae2_forward.43} parent=0 // pred_check_branch
    %178 = sbr.rel (0) target = $region21
  $region20: #{vqvae2_forward.43} parent=0 // pred_region
    _
  $region21: #{vqvae2_forward.43} parent=0 // pred_fallthru
    _
  // Predicated region
  $region22: #{vqvae2_forward.43} parent=0 // pred_check
    _
  $region23: #{vqvae2_forward.43} parent=0 // pred_check_branch
    %180 = sbr.rel (0) target = $region25
  $region24: #{vqvae2_forward.43} parent=0 // pred_region
    _
  $region25: #{vqvae2_forward.43} parent=0 // pred_fallthru
    _

// kernel: vqvae2_forward.38
$region0: #{vqvae2_forward.38}
  #allocation0 [shape = 'u32[]', space=smem, size = 0x4, offset = 0x4, fixed_abs, tag = 'smem constant byte address 0x4 - core index']
  #allocation1 [shape = 'u32[144,128]{1,0:T(1,128)}', space=vmem, size = 0x12000, scoped, tag = 'internal scratch']
  %s0 = inlined_call_operand.vmem [shape: bf16[16,24], index: 0, kind: input, shape index: {}]
  %s1 = inlined_call_operand.vmem [shape: bf16[24,8], index: 1, kind: input, shape index: {}]
  %s2 = inlined_call_operand.vmem [shape: f32[1,8], index: 2, kind: input, shape index: {}]
  %s3 = inlined_call_operand.vmem [shape: f32[16,8], index: 3, kind: input, shape index: {}]
  %s4 = inlined_call_operand.vmem [shape: bf16[16,8], index: 4, kind: output, shape index: {0}]
  %s5 = inlined_call_operand.hbm [shape: f32[1,1,1], index: 5, kind: output, shape index: {1}]
  %6 = xla_tuple %s4, %s5
  %s7 = sld [smem:[#allocation0]]
  $region34: #{vqvae2_forward.38} parent=0
    _
  %s9 = ssub.s32 1, %s7
  %s10 = scalar_select 0, %s9, %s7
  $region1: #{vqvae2_forward.38} parent=0
    #allocation2 [shape = 'u8[512]{0}', space=vmem, size = 0x400, scoped, tag = 'output window, operand 1, single buffered']
    #allocation3 [shape = 's32[1]{0}', space=sflag, size = 0x4, scoped, tag = 'scoped memory for vqvae2_forward.38']
    %11 = vsyncpa [#allocation3], 0
    // Predicated region
    $region2: #{vqvae2_forward.38} parent=1 // pred_check
      _
    $region3: #{vqvae2_forward.38} parent=1 // pred_check_branch
      %13 = sbr.rel (0) target = $region5
    $region4: #{vqvae2_forward.38} parent=1 // pred_region
      _
    $region5: #{vqvae2_forward.38} parent=1 // pred_fallthru
      _
    // Predicated region
    $region6: #{vqvae2_forward.38} parent=1 // pred_check
      _
    $region7: #{vqvae2_forward.38} parent=1 // pred_check_branch
      %15 = sbr.rel (0) target = $region9
    $region8: #{vqvae2_forward.38} parent=1 // pred_region
      _
    $region9: #{vqvae2_forward.38} parent=1 // pred_fallthru
      _
    // Predicated region
    $region10: #{vqvae2_forward.38} parent=1 // pred_check
      _
    $region11: #{vqvae2_forward.38} parent=1 // pred_check_branch
      %17 = sbr.rel (0) target = $region13
    $region12: #{vqvae2_forward.38} parent=1 // pred_region
      _
    $region13: #{vqvae2_forward.38} parent=1 // pred_fallthru
      _
    // Predicated region
    $region14: #{vqvae2_forward.38} parent=1 // pred_check
      _
    $region15: #{vqvae2_forward.38} parent=1 // pred_check_branch
      %19 = sbr.rel (0) target = $region17
    $region16: #{vqvae2_forward.38} parent=1 // pred_region
      _
    $region17: #{vqvae2_forward.38} parent=1 // pred_fallthru
      _
    %v21 = vld [vmem:[%s0] sm:$0xf]
    %v22 = vld [vmem:[%s0 + $0x4] sm:$0xf]
    %v23 = vld [vmem:[%s1] sm:$0xf]
    %v24 = vld [vmem:[%s1 + $0x4] sm:$0xf]
    %v25 = vld [vmem:[%s1 + $0x8] sm:$0xf]
    %v26 = vld [vmem:[%s2] sm:$0x1]
    %v28 = vlaneseq
    %v29 = vshrl.u32 %v28, 7
    %v30 = vsub.s32 0, %v29
    %v31 = vrot.slane %v26, %v30
    %v35 = vunpack.c.l.b16 %v21
    %v36 = vunpack.c.l.b16 %v22
    %v37 = vpack.c.b16 %v36, %v35
    %v41 = vunpack.c.l.b16 %v23
    %v42 = vunpack.c.l.b16 %v24
    %v43 = vunpack.c.l.b16 %v25
    %v44 = vpack.c.b16 %v42, %v41
    %v45 = vpack.c.b16 %v43, %v43
    %vm47 = vcmask 195584
    %v49 = vsel %vm47, %v37, 0
    %vm51 = vcmask 1043456
    %v53 = vsel %vm51, %v45, 0
    %55 = vmatprep.subr.bf16.mxu0 0
    %56 = vmatpush1.bf16.msra.mxu0 %v44
    %57 = vmatprep.subr.bf16.mxu0 0
    %58 = vmatpush1.bf16.msra.mxu0 %v53
    %59 = vmatprep.subr.bf16.mxu0 0
    %60 = vmatpush1.bf16.msra.mxu0 0
    %61 = vmatprep.subr.bf16.mxu0 0
    %62 = vmatpush1.bf16.msra.mxu0 0
    %63 = vmatprep.subr.bf16.mxu0 0
    %64 = vmatpush1.bf16.msra.mxu0 0
    %65 = vmatprep.subr.bf16.mxu0 0
    %66 = vmatpush1.bf16.msra.mxu0 0
    %67 = vmatprep.subr.bf16.mxu0 0
    %68 = vmatpush1.bf16.msra.mxu0 0
    %69 = vmatprep.subr.bf16.mxu0 0
    %70 = vmatpush1.bf16.msra.mxu0 0
    %71 = vmatprep.subr.bf16.mxu0 0
    %72 = vmatpush1.bf16.msra.mxu0 0
    %73 = vmatprep.subr.bf16.mxu0 0
    %74 = vmatpush1.bf16.msra.mxu0 0
    %75 = vmatprep.subr.bf16.mxu0 0
    %76 = vmatpush1.bf16.msra.mxu0 0
    %77 = vmatprep.subr.bf16.mxu0 0
    %78 = vmatpush1.bf16.msra.mxu0 0
    %79 = vmatprep.subr.bf16.mxu0 0
    %80 = vmatpush1.bf16.msra.mxu0 0
    %81 = vmatprep.subr.bf16.mxu0 0
    %82 = vmatpush1.bf16.msra.mxu0 0
    %83 = vmatprep.subr.bf16.mxu0 0
    %84 = vmatpush1.bf16.msra.mxu0 0
    %85 = vmatprep.subr.bf16.mxu0 0
    %86 = vmatpush1.bf16.msra.mxu0 0
    %87 = vmatprep.mubr.bf16.mxu0 0
    %88 = vmatmul.mubr.bf16.gmra.mrb[0].mxu0 %v49
    %v89 = vpop.f32.mrb[0].mxu0
    %v90 = vadd.f32 %v31, %v89
    %v91 = vpop.f32.mrb[0].mxu0
    %v92 = vpop.f32.mrb[0].mxu0
    %v93 = vadd.f32 %v31, %v92
    %v94 = vpop.f32.mrb[0].mxu0
    %95 = vdwg.mxu0
    %v96 = vld [vmem:[%s3] sm:$0xff]
    %v97 = vld [vmem:[%s3 + $0x8] sm:$0xff]
    %v98 = vpack.c.bf16 %v93, %v90
    %v99 = vpack.c.bf16 %v97, %v96
    %vm100 = vcmask 64512
    %v102 = vsel %vm100, %v98, 0
    %v105 = vsel %vm100, %v99, 0
    %107 = vmatprep.subr.bf16.mxu0 0
    %108 = vmatpush1.bf16.xpose.msra.mxu0 %v105
    %109 = vmatprep.subr.bf16.mxu0 0
    %110 = vmatpush1.bf16.xpose.msra.mxu0 0
    %111 = vmatprep.subr.bf16.mxu0 0
    %112 = vmatpush1.bf16.xpose.msra.mxu0 0
    %113 = vmatprep.subr.bf16.mxu0 0
    %114 = vmatpush1.bf16.xpose.msra.mxu0 0
    %115 = vmatprep.subr.bf16.mxu0 0
    %116 = vmatpush1.bf16.xpose.msra.mxu0 0
    %117 = vmatprep.subr.bf16.mxu0 0
    %118 = vmatpush1.bf16.xpose.msra.mxu0 0
    %119 = vmatprep.subr.bf16.mxu0 0
    %120 = vmatpush1.bf16.xpose.msra.mxu0 0
    %121 = vmatprep.subr.bf16.mxu0 0
    %122 = vmatpush1.bf16.xpose.msra.mxu0 0
    %123 = vmatprep.subr.bf16.mxu0 0
    %124 = vmatpush1.bf16.xpose.msra.mxu0 0
    %125 = vmatprep.subr.bf16.mxu0 0
    %126 = vmatpush1.bf16.xpose.msra.mxu0 0
    %127 = vmatprep.subr.bf16.mxu0 0
    %128 = vmatpush1.bf16.xpose.msra.mxu0 0
    %129 = vmatprep.subr.bf16.mxu0 0
    %130 = vmatpush1.bf16.xpose.msra.mxu0 0
    %131 = vmatprep.subr.bf16.mxu0 0
    %132 = vmatpush1.bf16.xpose.msra.mxu0 0
    %133 = vmatprep.subr.bf16.mxu0 0
    %134 = vmatpush1.bf16.xpose.msra.mxu0 0
    %135 = vmatprep.subr.bf16.mxu0 0
    %136 = vmatpush1.bf16.xpose.msra.mxu0 0
    %137 = vmatprep.subr.bf16.mxu0 0
    %138 = vmatpush1.bf16.xpose.msra.mxu0 0
    %139 = vmatprep.mubr.bf16.mxu0 0
    %140 = vmatmul.mubr.bf16.gmra.mrb[0].mxu0 %v102
    %v141 = vpop.f32.mrb[0].mxu0
    %v142 = vadd.f32 0.0, %v141
    %v143 = vpop.f32.mrb[0].mxu0
    %v144 = vpop.f32.mrb[0].mxu0
    %v145 = vadd.f32 0.0, %v144
    %v146 = vpop.f32.mrb[0].mxu0
    %147 = vdwg.mxu0
    %v148 = vmul.f32 %v90, %v90
    %v149 = vmul.f32 %v93, %v93
    %v150 = vsel %vm100, %v148, 0.0
    %151 = vadd.xlane.f32.xlu0 %v150
    %v152 = vpop.xlane.xlu0 %151
    %v153 = vsel %vm100, %v149, 0.0
    %154 = vadd.xlane.f32.xlu0 %v153
    %v155 = vpop.xlane.xlu0 %154
    %v156 = vmul.f32 %v96, %v96
    %v157 = vmul.f32 %v97, %v97
    %v158 = vsel %vm100, %v156, 0.0
    %159 = vadd.xlane.f32.xlu0 %v158
    %v160 = vpop.xlane.xlu0 %159
    %v161 = vsel %vm100, %v157, 0.0
    %162 = vadd.xlane.f32.xlu0 %v161
    %v163 = vpop.xlane.xlu0 %162
    %v166 = vlaneseq
    %v167 = vand.u32 %v166, 127
    %v168 = vlaneseq
    %v169 = vshrl.u32 %v168, 7
    %v170 = vsub.s32 %v167, %v169
    %v171 = vrot.slane %v160, %v170
    %v172 = vadd.s32 %v167, 4294967288
    %v173 = vlaneseq
    %v174 = vshrl.u32 %v173, 7
    %v175 = vsub.s32 %v172, %v174
    %v176 = vrot.slane %v163, %v175
    %vm177 = vcmask 130112
    %v178 = vsel %vm177, %v176, %v171
    %vm179 = vcmask 1042434
    %v180 = vsel %vm179, %v178, %v178
    %vm181 = vcmask 1043459
    %v182 = vsel %vm181, %v178, %v180
    %vm183 = vcmask 1044484
    %v184 = vsel %vm183, %v178, %v182
    %vm185 = vcmask 1045509
    %v186 = vsel %vm185, %v178, %v184
    %vm187 = vcmask 1046534
    %v188 = vsel %vm187, %v178, %v186
    %vm189 = vcmask 1047559
    %v190 = vsel %vm189, %v178, %v188
    %v192 = vadd.f32 %v152, %v190
    %v193 = vadd.f32 %v155, %v190
    %v194 = vmul.f32 %v142, 2.0
    %v195 = vmul.f32 %v145, 2.0
    %v196 = vsub.f32 %v192, %v194
    %v197 = vsub.f32 %v193, %v195
    %vm198 = vcmask 130048
    %v199 = vsel %vm198, %v196, inf
    %200 = vmin.xlane.f32.xlu0 %v199
    %v201 = vpop.xlane.xlu0 %200
    %v202 = vsel %vm198, %v197, inf
    %203 = vmin.xlane.f32.xlu0 %v202
    %v204 = vpop.xlane.xlu0 %203
    %vm205 = vcmp.eq.f32.partialorder %v196, %v201
    %vm206 = vcmp.eq.f32.partialorder %v197, %v204
    %v207 = vsel %vm205, %v167, 16
    %v208 = vsel %vm206, %v167, 16
    %v209 = vsel %vm198, %v207, 2147483647
    %v210 = vand.u32 %v209, 65535
    %v211 = vshra.s32 %v209, 16
    %v212 = vcvt.s32.f32 %v210
    %v213 = vcvt.s32.f32 %v211
    %214 = vmin.xlane.f32.xlu0 %v213
    %v215 = vpop.xlane.xlu0 %214
    %vm216 = vcmp.eq.f32.partialorder %v213, %v215
    %v217 = vsel %vm216, %v212, inf
    %218 = vmin.xlane.f32.xlu0 %v217
    %v219 = vpop.xlane.xlu0 %218
    %v220 = vcvt.f32.s32 %v219
    %v221 = vcvt.f32.s32 %v215
    %v222 = vshll.u32 %v221, 16
    %v223 = vadd.s32 %v222, %v220
    %v224 = vsel %vm198, %v208, 2147483647
    %v225 = vand.u32 %v224, 65535
    %v226 = vshra.s32 %v224, 16
    %v227 = vcvt.s32.f32 %v225
    %v228 = vcvt.s32.f32 %v226
    %229 = vmin.xlane.f32.xlu0 %v228
    %v230 = vpop.xlane.xlu0 %229
    %vm231 = vcmp.eq.f32.partialorder %v228, %v230
    %v232 = vsel %vm231, %v227, inf
    %233 = vmin.xlane.f32.xlu0 %v232
    %v234 = vpop.xlane.xlu0 %233
    %v235 = vcvt.f32.s32 %v234
    %v236 = vcvt.f32.s32 %v230
    %v237 = vshll.u32 %v236, 16
    %v238 = vadd.s32 %v237, %v235
    %vm239 = vcmp.eq.s32.totalorder %v167, %v223
    %vm240 = vcmp.eq.s32.totalorder %v167, %v238
    %v241 = vsel %vm239, 1, 0
    %v242 = vsel %vm240, 1, 0
    %v243 = vcvt.s32.f32 %v241
    %v244 = vcvt.s32.f32 %v242
    %v246 = vsel %vm198, %v243, 0
    %v249 = vsel %vm198, %v244, 0
    %251 = vmatprep.subr.mxu0 0.0
    %252 = vmatpush1.msra.mxu0 %v96
    %253 = vmatprep.subr.mxu0 0.0
    %254 = vmatpush1.msra.mxu0 %v97
    %255 = vmatprep.subr.mxu0 0.0
    %256 = vmatpush1.msra.mxu0 0.0
    %257 = vmatprep.subr.mxu0 0.0
    %258 = vmatpush1.msra.mxu0 0.0
    %259 = vmatprep.subr.mxu0 0.0
    %260 = vmatpush1.msra.mxu0 0.0
    %261 = vmatprep.subr.mxu0 0.0
    %262 = vmatpush1.msra.mxu0 0.0
    %263 = vmatprep.subr.mxu0 0.0
    %264 = vmatpush1.msra.mxu0 0.0
    %265 = vmatprep.subr.mxu0 0.0
    %266 = vmatpush1.msra.mxu0 0.0
    %267 = vmatprep.subr.mxu0 0.0
    %268 = vmatpush1.msra.mxu0 0.0
    %269 = vmatprep.subr.mxu0 0.0
    %270 = vmatpush1.msra.mxu0 0.0
    %271 = vmatprep.subr.mxu0 0.0
    %272 = vmatpush1.msra.mxu0 0.0
    %273 = vmatprep.subr.mxu0 0.0
    %274 = vmatpush1.msra.mxu0 0.0
    %275 = vmatprep.subr.mxu0 0.0
    %276 = vmatpush1.msra.mxu0 0.0
    %277 = vmatprep.subr.mxu0 0.0
    %278 = vmatpush1.msra.mxu0 0.0
    %279 = vmatprep.subr.mxu0 0.0
    %280 = vmatpush1.msra.mxu0 0.0
    %281 = vmatprep.subr.mxu0 0.0
    %282 = vmatpush1.msra.mxu0 0.0
    %283 = vmatprep.subr.mxu0 0.0
    %284 = vmatpush1.msra.mxu0 0.0
    %285 = vmatprep.subr.mxu0 0.0
    %286 = vmatpush1.msra.mxu0 0.0
    %287 = vmatprep.subr.mxu0 0.0
    %288 = vmatpush1.msra.mxu0 0.0
    %289 = vmatprep.subr.mxu0 0.0
    %290 = vmatpush1.msra.mxu0 0.0
    %291 = vmatprep.subr.mxu0 0.0
    %292 = vmatpush1.msra.mxu0 0.0
    %293 = vmatprep.subr.mxu0 0.0
    %294 = vmatpush1.msra.mxu0 0.0
    %295 = vmatprep.subr.mxu0 0.0
    %296 = vmatpush1.msra.mxu0 0.0
    %297 = vmatprep.subr.mxu0 0.0
    %298 = vmatpush1.msra.mxu0 0.0
    %299 = vmatprep.subr.mxu0 0.0
    %300 = vmatpush1.msra.mxu0 0.0
    %301 = vmatprep.subr.mxu0 0.0
    %302 = vmatpush1.msra.mxu0 0.0
    %303 = vmatprep.subr.mxu0 0.0
    %304 = vmatpush1.msra.mxu0 0.0
    %305 = vmatprep.subr.mxu0 0.0
    %306 = vmatpush1.msra.mxu0 0.0
    %307 = vmatprep.subr.mxu0 0.0
    %308 = vmatpush1.msra.mxu0 0.0
    %309 = vmatprep.subr.mxu0 0.0
    %310 = vmatpush1.msra.mxu0 0.0
    %311 = vmatprep.subr.mxu0 0.0
    %312 = vmatpush1.msra.mxu0 0.0
    %313 = vmatprep.subr.mxu0 0.0
    %314 = vmatpush1.msra.mxu0 0.0
    %315 = vmatprep.mubr.f32.mxu0 0.0
    %316 = vmatmul.mubr.f32.gmra.mrb[0].mxu0 %v246
    %v317 = vpop.f32.mrb[0].mxu0
    %v318 = vadd.f32 0.0, %v317
    %v319 = vpop.f32.mrb[0].mxu0
    %320 = vmatprep.mubr.f32.mxu0 0.0
    %321 = vmatmul.mubr.f32.gmra.mrb[0].mxu0 %v249
    %v322 = vpop.f32.mrb[0].mxu0
    %v323 = vadd.f32 0.0, %v322
    %v324 = vpop.f32.mrb[0].mxu0
    %325 = vdwg.mxu0
    %v326 = vpack.c.bf16 %v323, %v318
    %v328 = vunpack.c.l.b16 %v326
    %v329 = vunpack.c.h.b16 %v326
    %v330 = vpack.c.b16 %v328, %v328
    %v331 = vpack.c.b16 %v329, %v329
    %vm334 = vcmask 60416
    %335 = vst.msk [vmem:[%s4] sm:$0xf] %vm334, %v330
    %336 = vst.msk [vmem:[%s4 + $0x4] sm:$0xf] %vm334, %v331
    %v337 = vlaneseq
    %v338 = vshrl.u32 %v337, 7
    %v339 = vadd.s32 %v338, 8
    %s340 = smul.u32 0, 16
    %v341 = vstv %s340
    %v342 = vadd.s32 %v338, %v341
    %v343 = vadd.s32 %v339, %v341
    %vm344 = vcmp.lt.s32.totalorder %v342, 16
    %vm345 = vcmp.lt.s32.totalorder %v343, 16
    %v346 = vsub.f32 %v318, %v90
    %v347 = vsub.f32 %v323, %v93
    %v348 = vsel %vm344, 1, 0
    %v349 = vsel %vm345, 1, 0
    %vm350 = vcmp.eq.s32.totalorder %v348, 1
    %vm351 = vcmp.eq.s32.totalorder %v349, 1
    %v352 = vsel %vm350, %v346, 0.0
    %v353 = vsel %vm351, %v347, 0.0
    %v354 = vmul.f32 %v352, %v352
    %v355 = vmul.f32 %v353, %v353
    %v356 = vsel %vm100, %v354, 0.0
    %v357 = vsel %vm100, %v355, 0.0
    %v358 = vadd.f32 %v356, %v357
    %359 = vadd.xlane.f32.xlu0 %v358
    %v360 = vpop.xlane.xlu0 %359
    %v361 = vrot.slane %v360, 4
    %v362 = vadd.f32 %v360, %v361
    %v363 = vrot.slane %v362, 2
    %v364 = vadd.f32 %v362, %v363
    %v365 = vrot.slane %v364, 1
    %v366 = vadd.f32 %v364, %v365
    %s367 = vtos %v366
    %v368 = vstv %s367
    %vm369 = vcmask 0
    %370 = vst.msk [vmem:[#allocation2] sm:$0x1] %vm369, %v368
    // Predicated region
    $region18: #{vqvae2_forward.38} parent=1 // pred_check
      _
    $region19: #{vqvae2_forward.38} parent=1 // pred_check_branch
      %372 = sbr.rel (0) target = $region21
    $region20: #{vqvae2_forward.38} parent=1 // pred_region
      _
    $region21: #{vqvae2_forward.38} parent=1 // pred_fallthru
      _
    // Predicated region
    $region22: #{vqvae2_forward.38} parent=1 // pred_check
      _
    $region23: #{vqvae2_forward.38} parent=1 // pred_check_branch
      %374 = sbr.rel (0) target = $region25
    $region24: #{vqvae2_forward.38} parent=1 // pred_region
      %s376 = ssub.s32 16, 16
      %377 = vsyncadd [#allocation3], %s376
      %s379 = sshll.u32 [#allocation2], 4
      %s380 = int_to_ptr.vmem [resolvable:$true] %s379
      %382 = dma.vmem_to_hbm [thread:$0]  %s380, 16, %s5, [#allocation3]
    $region25: #{vqvae2_forward.38} parent=1 // pred_fallthru
      _
    // Predicated region
    $region26: #{vqvae2_forward.38} parent=1 // pred_check
      _
    $region27: #{vqvae2_forward.38} parent=1 // pred_check_branch
      %384 = sbr.rel (0) target = $region29
    $region28: #{vqvae2_forward.38} parent=1 // pred_region
      _
    $region29: #{vqvae2_forward.38} parent=1 // pred_fallthru
      _
    // Predicated region
    $region30: #{vqvae2_forward.38} parent=1 // pred_check
      _
    $region31: #{vqvae2_forward.38} parent=1 // pred_check_branch
      %386 = sbr.rel (0) target = $region33
    $region32: #{vqvae2_forward.38} parent=1 // pred_region
      %387 = dma.done [#allocation3], 16
    $region33: #{vqvae2_forward.38} parent=1 // pred_fallthru
      _
    %388 = vsyncpa [#allocation3], 1

// kernel: vqvae2_forward.44
$region0: #{vqvae2_forward.44}
  #allocation0 [shape = 'u32[]', space=smem, size = 0x4, offset = 0x4, fixed_abs, tag = 'smem constant byte address 0x4 - core index']
  #allocation1 [shape = 'u32[144,128]{1,0:T(1,128)}', space=vmem, size = 0x12000, scoped, tag = 'internal scratch']
  %s0 = inlined_call_operand.vmem [shape: bf16[64,72], index: 0, kind: input, shape index: {}]
  %s1 = inlined_call_operand.vmem [shape: bf16[72,4], index: 1, kind: input, shape index: {}]
  %s2 = inlined_call_operand.vmem [shape: f32[1,4], index: 2, kind: input, shape index: {}]
  %s3 = inlined_call_operand.vmem [shape: f32[1,4], index: 3, kind: input, shape index: {}]
  %s4 = inlined_call_operand.vmem [shape: bf16[64,4], index: 4, kind: output, shape index: {}]
  %s5 = sld [smem:[#allocation0]]
  $region26: #{vqvae2_forward.44} parent=0
    _
  %s7 = ssub.s32 1, %s5
  %s8 = scalar_select 0, %s7, %s5
  // Predicated region
  $region2: #{vqvae2_forward.44} parent=0 // pred_check
    _
  $region3: #{vqvae2_forward.44} parent=0 // pred_check_branch
    %10 = sbr.rel (0) target = $region5
  $region4: #{vqvae2_forward.44} parent=0 // pred_region
    _
  $region5: #{vqvae2_forward.44} parent=0 // pred_fallthru
    _
  // Predicated region
  $region6: #{vqvae2_forward.44} parent=0 // pred_check
    _
  $region7: #{vqvae2_forward.44} parent=0 // pred_check_branch
    %12 = sbr.rel (0) target = $region9
  $region8: #{vqvae2_forward.44} parent=0 // pred_region
    _
  $region9: #{vqvae2_forward.44} parent=0 // pred_fallthru
    _
  // Predicated region
  $region10: #{vqvae2_forward.44} parent=0 // pred_check
    _
  $region11: #{vqvae2_forward.44} parent=0 // pred_check_branch
    %14 = sbr.rel (0) target = $region13
  $region12: #{vqvae2_forward.44} parent=0 // pred_region
    _
  $region13: #{vqvae2_forward.44} parent=0 // pred_fallthru
    _
  // Predicated region
  $region14: #{vqvae2_forward.44} parent=0 // pred_check
    _
  $region15: #{vqvae2_forward.44} parent=0 // pred_check_branch
    %16 = sbr.rel (0) target = $region17
  $region16: #{vqvae2_forward.44} parent=0 // pred_region
    _
  $region17: #{vqvae2_forward.44} parent=0 // pred_fallthru
    _
  %v18 = vld [vmem:[%s0] sm:$0xf]
  %v19 = vld [vmem:[%s0 + $0x4] sm:$0xf]
  %v20 = vld [vmem:[%s0 + $0x8] sm:$0xf]
  %v21 = vld [vmem:[%s0 + $0xc] sm:$0xf]
  %v22 = vld [vmem:[%s0 + $0x10] sm:$0xf]
  %v23 = vld [vmem:[%s0 + $0x14] sm:$0xf]
  %v24 = vld [vmem:[%s0 + $0x18] sm:$0xf]
  %v25 = vld [vmem:[%s0 + $0x1c] sm:$0xf]
  %v26 = vld [vmem:[%s1] sm:$0xf]
  %v27 = vld [vmem:[%s1 + $0x4] sm:$0xf]
  %v28 = vld [vmem:[%s1 + $0x8] sm:$0xf]
  %v29 = vld [vmem:[%s1 + $0xc] sm:$0xf]
  %v30 = vld [vmem:[%s1 + $0x10] sm:$0xf]
  %v31 = vld [vmem:[%s1 + $0x14] sm:$0xf]
  %v32 = vld [vmem:[%s1 + $0x18] sm:$0xf]
  %v33 = vld [vmem:[%s1 + $0x1c] sm:$0xf]
  %v34 = vld [vmem:[%s1 + $0x20] sm:$0xf]
  %v43 = vunpack.c.l.b16 %v18
  %v44 = vunpack.c.l.b16 %v19
  %v45 = vunpack.c.l.b16 %v20
  %v46 = vunpack.c.l.b16 %v21
  %v47 = vunpack.c.l.b16 %v22
  %v48 = vunpack.c.l.b16 %v23
  %v49 = vunpack.c.l.b16 %v24
  %v50 = vunpack.c.l.b16 %v25
  %v51 = vpack.c.b16 %v44, %v43
  %v52 = vpack.c.b16 %v46, %v45
  %v53 = vpack.c.b16 %v48, %v47
  %v54 = vpack.c.b16 %v50, %v49
  %v64 = vunpack.c.l.b16 %v26
  %v65 = vunpack.c.l.b16 %v27
  %v66 = vunpack.c.l.b16 %v28
  %v67 = vunpack.c.l.b16 %v29
  %v68 = vunpack.c.l.b16 %v30
  %v69 = vunpack.c.l.b16 %v31
  %v70 = vunpack.c.l.b16 %v32
  %v71 = vunpack.c.l.b16 %v33
  %v72 = vunpack.c.l.b16 %v34
  %v73 = vpack.c.b16 %v65, %v64
  %v74 = vpack.c.b16 %v67, %v66
  %v75 = vpack.c.b16 %v69, %v68
  %v76 = vpack.c.b16 %v71, %v70
  %v77 = vpack.c.b16 %v72, %v72
  %vm82 = vcmask 588800
  %v84 = vsel %vm82, %v51, 0
  %v87 = vsel %vm82, %v52, 0
  %v90 = vsel %vm82, %v53, 0
  %v93 = vsel %vm82, %v54, 0
  %vm95 = vcmask 1043456
  %v97 = vsel %vm95, %v77, 0
  %99 = vmatprep.subr.bf16.mxu0 0
  %100 = vmatpush1.bf16.msra.mxu0 %v73
  %101 = vmatprep.subr.bf16.mxu0 0
  %102 = vmatpush1.bf16.msra.mxu0 %v74
  %103 = vmatprep.subr.bf16.mxu0 0
  %104 = vmatpush1.bf16.msra.mxu0 %v75
  %105 = vmatprep.subr.bf16.mxu0 0
  %106 = vmatpush1.bf16.msra.mxu0 %v76
  %107 = vmatprep.subr.bf16.mxu0 0
  %108 = vmatpush1.bf16.msra.mxu0 %v97
  %109 = vmatprep.subr.bf16.mxu0 0
  %110 = vmatpush1.bf16.msra.mxu0 0
  %111 = vmatprep.subr.bf16.mxu0 0
  %112 = vmatpush1.bf16.msra.mxu0 0
  %113 = vmatprep.subr.bf16.mxu0 0
  %114 = vmatpush1.bf16.msra.mxu0 0
  %115 = vmatprep.subr.bf16.mxu0 0
  %116 = vmatpush1.bf16.msra.mxu0 0
  %117 = vmatprep.subr.bf16.mxu0 0
  %118 = vmatpush1.bf16.msra.mxu0 0
  %119 = vmatprep.subr.bf16.mxu0 0
  %120 = vmatpush1.bf16.msra.mxu0 0
  %121 = vmatprep.subr.bf16.mxu0 0
  %122 = vmatpush1.bf16.msra.mxu0 0
  %123 = vmatprep.subr.bf16.mxu0 0
  %124 = vmatpush1.bf16.msra.mxu0 0
  %125 = vmatprep.subr.bf16.mxu0 0
  %126 = vmatpush1.bf16.msra.mxu0 0
  %127 = vmatprep.subr.bf16.mxu0 0
  %128 = vmatpush1.bf16.msra.mxu0 0
  %129 = vmatprep.subr.bf16.mxu0 0
  %130 = vmatpush1.bf16.msra.mxu0 0
  %131 = vmatprep.mubr.bf16.mxu0 0
  %132 = vmatmul.mubr.bf16.gmra.mrb[0].mxu0 %v84
  %v133 = vpop.f32.mrb[0].mxu0
  %v134 = vadd.f32 0.0, %v133
  %v135 = vpop.f32.mrb[0].mxu0
  %v136 = vpop.f32.mrb[0].mxu0
  %v137 = vadd.f32 0.0, %v136
  %v138 = vpop.f32.mrb[0].mxu0
  %139 = vmatprep.mubr.bf16.mxu0 0
  %140 = vmatmul.mubr.bf16.gmra.mrb[0].mxu0 %v87
  %v141 = vpop.f32.mrb[0].mxu0
  %v142 = vadd.f32 0.0, %v141
  %v143 = vpop.f32.mrb[0].mxu0
  %v144 = vpop.f32.mrb[0].mxu0
  %v145 = vadd.f32 0.0, %v144
  %v146 = vpop.f32.mrb[0].mxu0
  %147 = vmatprep.mubr.bf16.mxu0 0
  %148 = vmatmul.mubr.bf16.gmra.mrb[0].mxu0 %v90
  %v149 = vpop.f32.mrb[0].mxu0
  %v150 = vadd.f32 0.0, %v149
  %v151 = vpop.f32.mrb[0].mxu0
  %v152 = vpop.f32.mrb[0].mxu0
  %v153 = vadd.f32 0.0, %v152
  %v154 = vpop.f32.mrb[0].mxu0
  %155 = vmatprep.mubr.bf16.mxu0 0
  %156 = vmatmul.mubr.bf16.gmra.mrb[0].mxu0 %v93
  %v157 = vpop.f32.mrb[0].mxu0
  %v158 = vadd.f32 0.0, %v157
  %v159 = vpop.f32.mrb[0].mxu0
  %v160 = vpop.f32.mrb[0].mxu0
  %v161 = vadd.f32 0.0, %v160
  %v162 = vpop.f32.mrb[0].mxu0
  %163 = vdwg.mxu0
  %v164 = vld [vmem:[%s2] sm:$0x1]
  %v166 = vlaneseq
  %v167 = vshrl.u32 %v166, 7
  %v168 = vsub.s32 0, %v167
  %v169 = vrot.slane %v164, %v168
  %v171 = vmul.f32 %v134, %v169
  %v172 = vmul.f32 %v137, %v169
  %v173 = vmul.f32 %v142, %v169
  %v174 = vmul.f32 %v145, %v169
  %v175 = vmul.f32 %v150, %v169
  %v176 = vmul.f32 %v153, %v169
  %v177 = vmul.f32 %v158, %v169
  %v178 = vmul.f32 %v161, %v169
  %v179 = vld [vmem:[%s3] sm:$0x1]
  %v181 = vlaneseq
  %v182 = vshrl.u32 %v181, 7
  %v183 = vsub.s32 0, %v182
  %v184 = vrot.slane %v179, %v183
  %v186 = vadd.f32 %v171, %v184
  %v187 = vadd.f32 %v172, %v184
  %v188 = vadd.f32 %v173, %v184
  %v189 = vadd.f32 %v174, %v184
  %v190 = vadd.f32 %v175, %v184
  %v191 = vadd.f32 %v176, %v184
  %v192 = vadd.f32 %v177, %v184
  %v193 = vadd.f32 %v178, %v184
  %v194 = vmax.f32 %v186, 0.0
  %v195 = vmax.f32 %v187, 0.0
  %v196 = vmax.f32 %v188, 0.0
  %v197 = vmax.f32 %v189, 0.0
  %v198 = vmax.f32 %v190, 0.0
  %v199 = vmax.f32 %v191, 0.0
  %v200 = vmax.f32 %v192, 0.0
  %v201 = vmax.f32 %v193, 0.0
  %v202 = vpack.c.bf16 %v195, %v194
  %v203 = vpack.c.bf16 %v197, %v196
  %v204 = vpack.c.bf16 %v199, %v198
  %v205 = vpack.c.bf16 %v201, %v200
  %v210 = vunpack.c.l.b16 %v202
  %v211 = vunpack.c.h.b16 %v202
  %v212 = vunpack.c.l.b16 %v203
  %v213 = vunpack.c.h.b16 %v203
  %v214 = vunpack.c.l.b16 %v204
  %v215 = vunpack.c.h.b16 %v204
  %v216 = vunpack.c.l.b16 %v205
  %v217 = vunpack.c.h.b16 %v205
  %v218 = vpack.c.b16 %v210, %v210
  %v219 = vpack.c.b16 %v211, %v211
  %v220 = vpack.c.b16 %v212, %v212
  %v221 = vpack.c.b16 %v213, %v213
  %v222 = vpack.c.b16 %v214, %v214
  %v223 = vpack.c.b16 %v215, %v215
  %v224 = vpack.c.b16 %v216, %v216
  %v225 = vpack.c.b16 %v217, %v217
  %vm234 = vcmask 27648
  %235 = vst.msk [vmem:[%s4] sm:$0xf] %vm234, %v218
  %236 = vst.msk [vmem:[%s4 + $0x4] sm:$0xf] %vm234, %v219
  %237 = vst.msk [vmem:[%s4 + $0x8] sm:$0xf] %vm234, %v220
  %238 = vst.msk [vmem:[%s4 + $0xc] sm:$0xf] %vm234, %v221
  %239 = vst.msk [vmem:[%s4 + $0x10] sm:$0xf] %vm234, %v222
  %240 = vst.msk [vmem:[%s4 + $0x14] sm:$0xf] %vm234, %v223
  %241 = vst.msk [vmem:[%s4 + $0x18] sm:$0xf] %vm234, %v224
  %242 = vst.msk [vmem:[%s4 + $0x1c] sm:$0xf] %vm234, %v225
  // Predicated region
  $region18: #{vqvae2_forward.44} parent=0 // pred_check
    _
  $region19: #{vqvae2_forward.44} parent=0 // pred_check_branch
    %244 = sbr.rel (0) target = $region21
  $region20: #{vqvae2_forward.44} parent=0 // pred_region
    _
  $region21: #{vqvae2_forward.44} parent=0 // pred_fallthru
    _
  // Predicated region
  $region22: #{vqvae2_forward.44} parent=0 // pred_check
    _
  $region23: #{vqvae2_forward.44} parent=0 // pred_check_branch
    %246 = sbr.rel (0) target = $region25
  $region24: #{vqvae2_forward.44} parent=0 // pred_region
    _
  $region25: #{vqvae2_forward.44} parent=0 // pred_fallthru
    _

// kernel: vqvae2_forward.45
$region0: #{vqvae2_forward.45}
  #allocation0 [shape = 'u32[]', space=smem, size = 0x4, offset = 0x4, fixed_abs, tag = 'smem constant byte address 0x4 - core index']
  #allocation1 [shape = 'u32[144,128]{1,0:T(1,128)}', space=vmem, size = 0x12000, scoped, tag = 'internal scratch']
  %s0 = inlined_call_operand.vmem [shape: bf16[256,128], index: 0, kind: input, shape index: {}]
  %s1 = inlined_call_operand.vmem [shape: bf16[128,8], index: 1, kind: input, shape index: {}]
  %s2 = inlined_call_operand.vmem [shape: f32[1,8], index: 2, kind: input, shape index: {}]
  %s3 = inlined_call_operand.vmem [shape: f32[1,8], index: 3, kind: input, shape index: {}]
  %s4 = inlined_call_operand.vmem [shape: f32[256,8], index: 4, kind: output, shape index: {}]
  %s5 = sld [smem:[#allocation0]]
  $region26: #{vqvae2_forward.45} parent=0
    _
  %s7 = ssub.s32 1, %s5
  %s8 = scalar_select 0, %s7, %s5
  // Predicated region
  $region2: #{vqvae2_forward.45} parent=0 // pred_check
    _
  $region3: #{vqvae2_forward.45} parent=0 // pred_check_branch
    %10 = sbr.rel (0) target = $region5
  $region4: #{vqvae2_forward.45} parent=0 // pred_region
    _
  $region5: #{vqvae2_forward.45} parent=0 // pred_fallthru
    _
  // Predicated region
  $region6: #{vqvae2_forward.45} parent=0 // pred_check
    _
  $region7: #{vqvae2_forward.45} parent=0 // pred_check_branch
    %12 = sbr.rel (0) target = $region9
  $region8: #{vqvae2_forward.45} parent=0 // pred_region
    _
  $region9: #{vqvae2_forward.45} parent=0 // pred_fallthru
    _
  // Predicated region
  $region10: #{vqvae2_forward.45} parent=0 // pred_check
    _
  $region11: #{vqvae2_forward.45} parent=0 // pred_check_branch
    %14 = sbr.rel (0) target = $region13
  $region12: #{vqvae2_forward.45} parent=0 // pred_region
    _
  $region13: #{vqvae2_forward.45} parent=0 // pred_fallthru
    _
  // Predicated region
  $region14: #{vqvae2_forward.45} parent=0 // pred_check
    _
  $region15: #{vqvae2_forward.45} parent=0 // pred_check_branch
    %16 = sbr.rel (0) target = $region17
  $region16: #{vqvae2_forward.45} parent=0 // pred_region
    _
  $region17: #{vqvae2_forward.45} parent=0 // pred_fallthru
    _
  %v18 = vld [vmem:[%s0] sm:$0xf]
  %v19 = vld [vmem:[%s0 + $0x4] sm:$0xf]
  %v20 = vld [vmem:[%s0 + $0x8] sm:$0xf]
  %v21 = vld [vmem:[%s0 + $0xc] sm:$0xf]
  %v22 = vld [vmem:[%s0 + $0x10] sm:$0xf]
  %v23 = vld [vmem:[%s0 + $0x14] sm:$0xf]
  %v24 = vld [vmem:[%s0 + $0x18] sm:$0xf]
  %v25 = vld [vmem:[%s0 + $0x1c] sm:$0xf]
  %v26 = vld [vmem:[%s0 + $0x20] sm:$0xf]
  %v27 = vld [vmem:[%s0 + $0x24] sm:$0xf]
  %v28 = vld [vmem:[%s0 + $0x28] sm:$0xf]
  %v29 = vld [vmem:[%s0 + $0x2c] sm:$0xf]
  %v30 = vld [vmem:[%s0 + $0x30] sm:$0xf]
  %v31 = vld [vmem:[%s0 + $0x34] sm:$0xf]
  %v32 = vld [vmem:[%s0 + $0x38] sm:$0xf]
  %v33 = vld [vmem:[%s0 + $0x3c] sm:$0xf]
  %v34 = vld [vmem:[%s0 + $0x40] sm:$0xf]
  %v35 = vld [vmem:[%s0 + $0x44] sm:$0xf]
  %v36 = vld [vmem:[%s0 + $0x48] sm:$0xf]
  %v37 = vld [vmem:[%s0 + $0x4c] sm:$0xf]
  %v38 = vld [vmem:[%s0 + $0x50] sm:$0xf]
  %v39 = vld [vmem:[%s0 + $0x54] sm:$0xf]
  %v40 = vld [vmem:[%s0 + $0x58] sm:$0xf]
  %v41 = vld [vmem:[%s0 + $0x5c] sm:$0xf]
  %v42 = vld [vmem:[%s0 + $0x60] sm:$0xf]
  %v43 = vld [vmem:[%s0 + $0x64] sm:$0xf]
  %v44 = vld [vmem:[%s0 + $0x68] sm:$0xf]
  %v45 = vld [vmem:[%s0 + $0x6c] sm:$0xf]
  %v46 = vld [vmem:[%s0 + $0x70] sm:$0xf]
  %v47 = vld [vmem:[%s0 + $0x74] sm:$0xf]
  %v48 = vld [vmem:[%s0 + $0x78] sm:$0xf]
  %v49 = vld [vmem:[%s0 + $0x7c] sm:$0xf]
  %v50 = vld [vmem:[%s1] sm:$0xf]
  %v51 = vld [vmem:[%s1 + $0x4] sm:$0xf]
  %v52 = vld [vmem:[%s1 + $0x8] sm:$0xf]
  %v53 = vld [vmem:[%s1 + $0xc] sm:$0xf]
  %v54 = vld [vmem:[%s1 + $0x10] sm:$0xf]
  %v55 = vld [vmem:[%s1 + $0x14] sm:$0xf]
  %v56 = vld [vmem:[%s1 + $0x18] sm:$0xf]
  %v57 = vld [vmem:[%s1 + $0x1c] sm:$0xf]
  %v58 = vld [vmem:[%s1 + $0x20] sm:$0xf]
  %v59 = vld [vmem:[%s1 + $0x24] sm:$0xf]
  %v60 = vld [vmem:[%s1 + $0x28] sm:$0xf]
  %v61 = vld [vmem:[%s1 + $0x2c] sm:$0xf]
  %v62 = vld [vmem:[%s1 + $0x30] sm:$0xf]
  %v63 = vld [vmem:[%s1 + $0x34] sm:$0xf]
  %v64 = vld [vmem:[%s1 + $0x38] sm:$0xf]
  %v65 = vld [vmem:[%s1 + $0x3c] sm:$0xf]
  %v98 = vunpack.c.l.b16 %v18
  %v99 = vunpack.c.l.b16 %v19
  %v100 = vunpack.c.l.b16 %v20
  %v101 = vunpack.c.l.b16 %v21
  %v102 = vunpack.c.l.b16 %v22
  %v103 = vunpack.c.l.b16 %v23
  %v104 = vunpack.c.l.b16 %v24
  %v105 = vunpack.c.l.b16 %v25
  %v106 = vunpack.c.l.b16 %v26
  %v107 = vunpack.c.l.b16 %v27
  %v108 = vunpack.c.l.b16 %v28
  %v109 = vunpack.c.l.b16 %v29
  %v110 = vunpack.c.l.b16 %v30
  %v111 = vunpack.c.l.b16 %v31
  %v112 = vunpack.c.l.b16 %v32
  %v113 = vunpack.c.l.b16 %v33
  %v114 = vunpack.c.l.b16 %v34
  %v115 = vunpack.c.l.b16 %v35
  %v116 = vunpack.c.l.b16 %v36
  %v117 = vunpack.c.l.b16 %v37
  %v118 = vunpack.c.l.b16 %v38
  %v119 = vunpack.c.l.b16 %v39
  %v120 = vunpack.c.l.b16 %v40
  %v121 = vunpack.c.l.b16 %v41
  %v122 = vunpack.c.l.b16 %v42
  %v123 = vunpack.c.l.b16 %v43
  %v124 = vunpack.c.l.b16 %v44
  %v125 = vunpack.c.l.b16 %v45
  %v126 = vunpack.c.l.b16 %v46
  %v127 = vunpack.c.l.b16 %v47
  %v128 = vunpack.c.l.b16 %v48
  %v129 = vunpack.c.l.b16 %v49
  %v130 = vpack.c.b16 %v99, %v98
  %v131 = vpack.c.b16 %v101, %v100
  %v132 = vpack.c.b16 %v103, %v102
  %v133 = vpack.c.b16 %v105, %v104
  %v134 = vpack.c.b16 %v107, %v106
  %v135 = vpack.c.b16 %v109, %v108
  %v136 = vpack.c.b16 %v111, %v110
  %v137 = vpack.c.b16 %v113, %v112
  %v138 = vpack.c.b16 %v115, %v114
  %v139 = vpack.c.b16 %v117, %v116
  %v140 = vpack.c.b16 %v119, %v118
  %v141 = vpack.c.b16 %v121, %v120
  %v142 = vpack.c.b16 %v123, %v122
  %v143 = vpack.c.b16 %v125, %v124
  %v144 = vpack.c.b16 %v127, %v126
  %v145 = vpack.c.b16 %v129, %v128
  %v178 = vunpack.c.l.b16 %v50
  %v179 = vunpack.c.l.b16 %v51
  %v180 = vunpack.c.l.b16 %v52
  %v181 = vunpack.c.l.b16 %v53
  %v182 = vunpack.c.l.b16 %v54
  %v183 = vunpack.c.l.b16 %v55
  %v184 = vunpack.c.l.b16 %v56
  %v185 = vunpack.c.l.b16 %v57
  %v186 = vunpack.c.l.b16 %v58
  %v187 = vunpack.c.l.b16 %v59
  %v188 = vunpack.c.l.b16 %v60
  %v189 = vunpack.c.l.b16 %v61
  %v190 = vunpack.c.l.b16 %v62
  %v191 = vunpack.c.l.b16 %v63
  %v192 = vunpack.c.l.b16 %v64
  %v193 = vunpack.c.l.b16 %v65
  %v194 = vpack.c.b16 %v179, %v178
  %v195 = vpack.c.b16 %v181, %v180
  %v196 = vpack.c.b16 %v183, %v182
  %v197 = vpack.c.b16 %v185, %v184
  %v198 = vpack.c.b16 %v187, %v186
  %v199 = vpack.c.b16 %v189, %v188
  %v200 = vpack.c.b16 %v191, %v190
  %v201 = vpack.c.b16 %v193, %v192
  %210 = vmatprep.subr.bf16.mxu0 0
  %211 = vmatpush1.bf16.msra.mxu0 %v194
  %212 = vmatprep.subr.bf16.mxu0 0
  %213 = vmatpush1.bf16.msra.mxu0 %v195
  %214 = vmatprep.subr.bf16.mxu0 0
  %215 = vmatpush1.bf16.msra.mxu0 %v196
  %216 = vmatprep.subr.bf16.mxu0 0
  %217 = vmatpush1.bf16.msra.mxu0 %v197
  %218 = vmatprep.subr.bf16.mxu0 0
  %219 = vmatpush1.bf16.msra.mxu0 %v198
  %220 = vmatprep.subr.bf16.mxu0 0
  %221 = vmatpush1.bf16.msra.mxu0 %v199
  %222 = vmatprep.subr.bf16.mxu0 0
  %223 = vmatpush1.bf16.msra.mxu0 %v200
  %224 = vmatprep.subr.bf16.mxu0 0
  %225 = vmatpush1.bf16.msra.mxu0 %v201
  %226 = vmatprep.subr.bf16.mxu0 0
  %227 = vmatpush1.bf16.msra.mxu0 0
  %228 = vmatprep.subr.bf16.mxu0 0
  %229 = vmatpush1.bf16.msra.mxu0 0
  %230 = vmatprep.subr.bf16.mxu0 0
  %231 = vmatpush1.bf16.msra.mxu0 0
  %232 = vmatprep.subr.bf16.mxu0 0
  %233 = vmatpush1.bf16.msra.mxu0 0
  %234 = vmatprep.subr.bf16.mxu0 0
  %235 = vmatpush1.bf16.msra.mxu0 0
  %236 = vmatprep.subr.bf16.mxu0 0
  %237 = vmatpush1.bf16.msra.mxu0 0
  %238 = vmatprep.subr.bf16.mxu0 0
  %239 = vmatpush1.bf16.msra.mxu0 0
  %240 = vmatprep.subr.bf16.mxu0 0
  %241 = vmatpush1.bf16.msra.mxu0 0
  %242 = vmatprep.mubr.bf16.mxu0 0
  %243 = vmatmul.mubr.bf16.gmra.mrb[0].mxu0 %v130
  %v244 = vpop.f32.mrb[0].mxu0
  %v245 = vadd.f32 0.0, %v244
  %v246 = vpop.f32.mrb[0].mxu0
  %v247 = vpop.f32.mrb[0].mxu0
  %v248 = vadd.f32 0.0, %v247
  %v249 = vpop.f32.mrb[0].mxu0
  %250 = vmatprep.mubr.bf16.mxu0 0
  %251 = vmatmul.mubr.bf16.gmra.mrb[0].mxu0 %v131
  %v252 = vpop.f32.mrb[0].mxu0
  %v253 = vadd.f32 0.0, %v252
  %v254 = vpop.f32.mrb[0].mxu0
  %v255 = vpop.f32.mrb[0].mxu0
  %v256 = vadd.f32 0.0, %v255
  %v257 = vpop.f32.mrb[0].mxu0
  %258 = vmatprep.mubr.bf16.mxu0 0
  %259 = vmatmul.mubr.bf16.gmra.mrb[0].mxu0 %v132
  %v260 = vpop.f32.mrb[0].mxu0
  %v261 = vadd.f32 0.0, %v260
  %v262 = vpop.f32.mrb[0].mxu0
  %v263 = vpop.f32.mrb[0].mxu0
  %v264 = vadd.f32 0.0, %v263
  %v265 = vpop.f32.mrb[0].mxu0
  %266 = vmatprep.mubr.bf16.mxu0 0
  %267 = vmatmul.mubr.bf16.gmra.mrb[0].mxu0 %v133
  %v268 = vpop.f32.mrb[0].mxu0
  %v269 = vadd.f32 0.0, %v268
  %v270 = vpop.f32.mrb[0].mxu0
  %v271 = vpop.f32.mrb[0].mxu0
  %v272 = vadd.f32 0.0, %v271
  %v273 = vpop.f32.mrb[0].mxu0
  %274 = vmatprep.mubr.bf16.mxu0 0
  %275 = vmatmul.mubr.bf16.gmra.mrb[0].mxu0 %v134
  %v276 = vpop.f32.mrb[0].mxu0
  %v277 = vadd.f32 0.0, %v276
  %v278 = vpop.f32.mrb[0].mxu0
  %v279 = vpop.f32.mrb[0].mxu0
  %v280 = vadd.f32 0.0, %v279
  %v281 = vpop.f32.mrb[0].mxu0
  %282 = vmatprep.mubr.bf16.mxu0 0
  %283 = vmatmul.mubr.bf16.gmra.mrb[0].mxu0 %v135
  %v284 = vpop.f32.mrb[0].mxu0
  %v285 = vadd.f32 0.0, %v284
  %v286 = vpop.f32.mrb[0].mxu0
  %v287 = vpop.f32.mrb[0].mxu0
  %v288 = vadd.f32 0.0, %v287
  %v289 = vpop.f32.mrb[0].mxu0
  %290 = vmatprep.mubr.bf16.mxu0 0
  %291 = vmatmul.mubr.bf16.gmra.mrb[0].mxu0 %v136
  %v292 = vpop.f32.mrb[0].mxu0
  %v293 = vadd.f32 0.0, %v292
  %v294 = vpop.f32.mrb[0].mxu0
  %v295 = vpop.f32.mrb[0].mxu0
  %v296 = vadd.f32 0.0, %v295
  %v297 = vpop.f32.mrb[0].mxu0
  %298 = vmatprep.mubr.bf16.mxu0 0
  %299 = vmatmul.mubr.bf16.gmra.mrb[0].mxu0 %v137
  %v300 = vpop.f32.mrb[0].mxu0
  %v301 = vadd.f32 0.0, %v300
  %v302 = vpop.f32.mrb[0].mxu0
  %v303 = vpop.f32.mrb[0].mxu0
  %v304 = vadd.f32 0.0, %v303
  %v305 = vpop.f32.mrb[0].mxu0
  %306 = vmatprep.mubr.bf16.mxu0 0
  %307 = vmatmul.mubr.bf16.gmra.mrb[0].mxu0 %v138
  %v308 = vpop.f32.mrb[0].mxu0
  %v309 = vadd.f32 0.0, %v308
  %v310 = vpop.f32.mrb[0].mxu0
  %v311 = vpop.f32.mrb[0].mxu0
  %v312 = vadd.f32 0.0, %v311
  %v313 = vpop.f32.mrb[0].mxu0
  %314 = vmatprep.mubr.bf16.mxu0 0
  %315 = vmatmul.mubr.bf16.gmra.mrb[0].mxu0 %v139
  %v316 = vpop.f32.mrb[0].mxu0
  %v317 = vadd.f32 0.0, %v316
  %v318 = vpop.f32.mrb[0].mxu0
  %v319 = vpop.f32.mrb[0].mxu0
  %v320 = vadd.f32 0.0, %v319
  %v321 = vpop.f32.mrb[0].mxu0
  %322 = vmatprep.mubr.bf16.mxu0 0
  %323 = vmatmul.mubr.bf16.gmra.mrb[0].mxu0 %v140
  %v324 = vpop.f32.mrb[0].mxu0
  %v325 = vadd.f32 0.0, %v324
  %v326 = vpop.f32.mrb[0].mxu0
  %v327 = vpop.f32.mrb[0].mxu0
  %v328 = vadd.f32 0.0, %v327
  %v329 = vpop.f32.mrb[0].mxu0
  %330 = vmatprep.mubr.bf16.mxu0 0
  %331 = vmatmul.mubr.bf16.gmra.mrb[0].mxu0 %v141
  %v332 = vpop.f32.mrb[0].mxu0
  %v333 = vadd.f32 0.0, %v332
  %v334 = vpop.f32.mrb[0].mxu0
  %v335 = vpop.f32.mrb[0].mxu0
  %v336 = vadd.f32 0.0, %v335
  %v337 = vpop.f32.mrb[0].mxu0
  %338 = vmatprep.mubr.bf16.mxu0 0
  %339 = vmatmul.mubr.bf16.gmra.mrb[0].mxu0 %v142
  %v340 = vpop.f32.mrb[0].mxu0
  %v341 = vadd.f32 0.0, %v340
  %v342 = vpop.f32.mrb[0].mxu0
  %v343 = vpop.f32.mrb[0].mxu0
  %v344 = vadd.f32 0.0, %v343
  %v345 = vpop.f32.mrb[0].mxu0
  %346 = vmatprep.mubr.bf16.mxu0 0
  %347 = vmatmul.mubr.bf16.gmra.mrb[0].mxu0 %v143
  %v348 = vpop.f32.mrb[0].mxu0
  %v349 = vadd.f32 0.0, %v348
  %v350 = vpop.f32.mrb[0].mxu0
  %v351 = vpop.f32.mrb[0].mxu0
  %v352 = vadd.f32 0.0, %v351
  %v353 = vpop.f32.mrb[0].mxu0
  %354 = vmatprep.mubr.bf16.mxu0 0
  %355 = vmatmul.mubr.bf16.gmra.mrb[0].mxu0 %v144
  %v356 = vpop.f32.mrb[0].mxu0
  %v357 = vadd.f32 0.0, %v356
  %v358 = vpop.f32.mrb[0].mxu0
  %v359 = vpop.f32.mrb[0].mxu0
  %v360 = vadd.f32 0.0, %v359
  %v361 = vpop.f32.mrb[0].mxu0
  %362 = vmatprep.mubr.bf16.mxu0 0
  %363 = vmatmul.mubr.bf16.gmra.mrb[0].mxu0 %v145
  %v364 = vpop.f32.mrb[0].mxu0
  %v365 = vadd.f32 0.0, %v364
  %v366 = vpop.f32.mrb[0].mxu0
  %v367 = vpop.f32.mrb[0].mxu0
  %v368 = vadd.f32 0.0, %v367
  %v369 = vpop.f32.mrb[0].mxu0
  %370 = vdwg.mxu0
  %v371 = vld [vmem:[%s2] sm:$0x1]
  %v373 = vlaneseq
  %v374 = vshrl.u32 %v373, 7
  %v375 = vsub.s32 0, %v374
  %v376 = vrot.slane %v371, %v375
  %v378 = vmul.f32 %v245, %v376
  %v379 = vmul.f32 %v248, %v376
  %v380 = vmul.f32 %v253, %v376
  %v381 = vmul.f32 %v256, %v376
  %v382 = vmul.f32 %v261, %v376
  %v383 = vmul.f32 %v264, %v376
  %v384 = vmul.f32 %v269, %v376
  %v385 = vmul.f32 %v272, %v376
  %v386 = vmul.f32 %v277, %v376
  %v387 = vmul.f32 %v280, %v376
  %v388 = vmul.f32 %v285, %v376
  %v389 = vmul.f32 %v288, %v376
  %v390 = vmul.f32 %v293, %v376
  %v391 = vmul.f32 %v296, %v376
  %v392 = vmul.f32 %v301, %v376
  %v393 = vmul.f32 %v304, %v376
  %v394 = vmul.f32 %v309, %v376
  %v395 = vmul.f32 %v312, %v376
  %v396 = vmul.f32 %v317, %v376
  %v397 = vmul.f32 %v320, %v376
  %v398 = vmul.f32 %v325, %v376
  %v399 = vmul.f32 %v328, %v376
  %v400 = vmul.f32 %v333, %v376
  %v401 = vmul.f32 %v336, %v376
  %v402 = vmul.f32 %v341, %v376
  %v403 = vmul.f32 %v344, %v376
  %v404 = vmul.f32 %v349, %v376
  %v405 = vmul.f32 %v352, %v376
  %v406 = vmul.f32 %v357, %v376
  %v407 = vmul.f32 %v360, %v376
  %v408 = vmul.f32 %v365, %v376
  %v409 = vmul.f32 %v368, %v376
  %v410 = vld [vmem:[%s3] sm:$0x1]
  %v412 = vlaneseq
  %v413 = vshrl.u32 %v412, 7
  %v414 = vsub.s32 0, %v413
  %v415 = vrot.slane %v410, %v414
  %v417 = vadd.f32 %v378, %v415
  %v418 = vadd.f32 %v379, %v415
  %v419 = vadd.f32 %v380, %v415
  %v420 = vadd.f32 %v381, %v415
  %v421 = vadd.f32 %v382, %v415
  %v422 = vadd.f32 %v383, %v415
  %v423 = vadd.f32 %v384, %v415
  %v424 = vadd.f32 %v385, %v415
  %v425 = vadd.f32 %v386, %v415
  %v426 = vadd.f32 %v387, %v415
  %v427 = vadd.f32 %v388, %v415
  %v428 = vadd.f32 %v389, %v415
  %v429 = vadd.f32 %v390, %v415
  %v430 = vadd.f32 %v391, %v415
  %v431 = vadd.f32 %v392, %v415
  %v432 = vadd.f32 %v393, %v415
  %v433 = vadd.f32 %v394, %v415
  %v434 = vadd.f32 %v395, %v415
  %v435 = vadd.f32 %v396, %v415
  %v436 = vadd.f32 %v397, %v415
  %v437 = vadd.f32 %v398, %v415
  %v438 = vadd.f32 %v399, %v415
  %v439 = vadd.f32 %v400, %v415
  %v440 = vadd.f32 %v401, %v415
  %v441 = vadd.f32 %v402, %v415
  %v442 = vadd.f32 %v403, %v415
  %v443 = vadd.f32 %v404, %v415
  %v444 = vadd.f32 %v405, %v415
  %v445 = vadd.f32 %v406, %v415
  %v446 = vadd.f32 %v407, %v415
  %v447 = vadd.f32 %v408, %v415
  %v448 = vadd.f32 %v409, %v415
  %vm449 = vcmask 64512
  %450 = vst.msk [vmem:[%s4] sm:$0xff] %vm449, %v417
  %451 = vst.msk [vmem:[%s4 + $0x8] sm:$0xff] %vm449, %v418
  %452 = vst.msk [vmem:[%s4 + $0x10] sm:$0xff] %vm449, %v419
  %453 = vst.msk [vmem:[%s4 + $0x18] sm:$0xff] %vm449, %v420
  %454 = vst.msk [vmem:[%s4 + $0x20] sm:$0xff] %vm449, %v421
  %455 = vst.msk [vmem:[%s4 + $0x28] sm:$0xff] %vm449, %v422
  %456 = vst.msk [vmem:[%s4 + $0x30] sm:$0xff] %vm449, %v423
  %457 = vst.msk [vmem:[%s4 + $0x38] sm:$0xff] %vm449, %v424
  %458 = vst.msk [vmem:[%s4 + $0x40] sm:$0xff] %vm449, %v425
  %459 = vst.msk [vmem:[%s4 + $0x48] sm:$0xff] %vm449, %v426
  %460 = vst.msk [vmem:[%s4 + $0x50] sm:$0xff] %vm449, %v427
  %461 = vst.msk [vmem:[%s4 + $0x58] sm:$0xff] %vm449, %v428
  %462 = vst.msk [vmem:[%s4 + $0x60] sm:$0xff] %vm449, %v429
  %463 = vst.msk [vmem:[%s4 + $0x68] sm:$0xff] %vm449, %v430
  %464 = vst.msk [vmem:[%s4 + $0x70] sm:$0xff] %vm449, %v431
  %465 = vst.msk [vmem:[%s4 + $0x78] sm:$0xff] %vm449, %v432
  %466 = vst.msk [vmem:[%s4 + $0x80] sm:$0xff] %vm449, %v433
  %467 = vst.msk [vmem:[%s4 + $0x88] sm:$0xff] %vm449, %v434
  %468 = vst.msk [vmem:[%s4 + $0x90] sm:$0xff] %vm449, %v435
  %469 = vst.msk [vmem:[%s4 + $0x98] sm:$0xff] %vm449, %v436
  %470 = vst.msk [vmem:[%s4 + $0xa0] sm:$0xff] %vm449, %v437
  %471 = vst.msk [vmem:[%s4 + $0xa8] sm:$0xff] %vm449, %v438
  %472 = vst.msk [vmem:[%s4 + $0xb0] sm:$0xff] %vm449, %v439
  %473 = vst.msk [vmem:[%s4 + $0xb8] sm:$0xff] %vm449, %v440
  %474 = vst.msk [vmem:[%s4 + $0xc0] sm:$0xff] %vm449, %v441
  %475 = vst.msk [vmem:[%s4 + $0xc8] sm:$0xff] %vm449, %v442
  %476 = vst.msk [vmem:[%s4 + $0xd0] sm:$0xff] %vm449, %v443
  %477 = vst.msk [vmem:[%s4 + $0xd8] sm:$0xff] %vm449, %v444
  %478 = vst.msk [vmem:[%s4 + $0xe0] sm:$0xff] %vm449, %v445
  %479 = vst.msk [vmem:[%s4 + $0xe8] sm:$0xff] %vm449, %v446
  %480 = vst.msk [vmem:[%s4 + $0xf0] sm:$0xff] %vm449, %v447
  %481 = vst.msk [vmem:[%s4 + $0xf8] sm:$0xff] %vm449, %v448
  // Predicated region
  $region18: #{vqvae2_forward.45} parent=0 // pred_check
    _
  $region19: #{vqvae2_forward.45} parent=0 // pred_check_branch
    %483 = sbr.rel (0) target = $region21
  $region20: #{vqvae2_forward.45} parent=0 // pred_region
    _
  $region21: #{vqvae2_forward.45} parent=0 // pred_fallthru
    _
  // Predicated region
  $region22: #{vqvae2_forward.45} parent=0 // pred_check
    _
  $region23: #{vqvae2_forward.45} parent=0 // pred_check_branch
    %485 = sbr.rel (0) target = $region25
  $region24: #{vqvae2_forward.45} parent=0 // pred_region
    _
  $region25: #{vqvae2_forward.45} parent=0 // pred_fallthru
    _

</llo_original>
